<compile_context>
chip_gen: v7x
topology: tpu7x:2x2x1
jax: 0.10.0
libtpu: 0.0.40
codegen_flags: <defaults>
</compile_context>

<pallas_src>
import numpy as np
import jax
import jax.numpy as jnp
from jax import lax
from jax.experimental import pallas as pl
from jax.experimental.pallas import tpu as pltpu

# ----- model constants (from the PyTorch snippet + small chosen hyper-params) -----
D_MODEL = 7
SRC_LEN = 5
N_POSITION = SRC_LEN + 1
SRC_VOCAB = {'P': 0, 'ich': 1, 'mochte': 2, 'ein': 3, 'bier': 4}
SRC_VOCAB_SIZE = len(SRC_VOCAB)

N_HEADS = 2      # not in snippet -> chosen small
D_K = 8
D_V = 8
D_FF = 16
N_LAYERS = 2

assert D_K == D_V  # required for the fused [3, H, D, Dk] projection stacking


def get_sinusoid_encoding_table(n_position, d_model):
    def cal_angle(position, hid_idx):
        return position / np.power(10000, 2 * (hid_idx // 2) / d_model)

    def get_posi_angle_vec(position):
        return [cal_angle(position, hid_j) for hid_j in range(d_model)]

    tbl = np.array([get_posi_angle_vec(p) for p in range(n_position)])
    tbl[:, 0::2] = np.sin(tbl[:, 0::2])
    tbl[:, 1::2] = np.cos(tbl[:, 1::2])
    return jnp.asarray(tbl, dtype=jnp.float32)


# ----------------------------- fused Pallas encoder -----------------------------
def encoder_kernel(x_ref, mask_ref, wqkv_ref, bqkv_ref, wo_ref, w1_ref, w2_ref,
                   bf1_ref, vecs_ref, y_ref, attn_ref):
    """Whole encoder (all layers, whole batch) in a single kernel invocation.

    x_ref    : [B, S, D]                 residual stream
    mask_ref : [G, S, S]   additive pad mask (-1e9 on pad keys), G = B*H, g = b*H+h
    wqkv_ref : [L, 3*G, D, Dk]           per-(proj, batch, head) projections,
                                         q weights pre-scaled by 1/sqrt(Dk)
    bqkv_ref : [L, 3*G, 1, Dk]           matching biases (bq pre-scaled)
    wo_ref   : [L, G, Dv, D]             per-head output projection (broadcast over B)
    w1_ref   : [L, B, D, D_FF]           FFN weights (broadcast over B for batched dot)
    w2_ref   : [L, B, D_FF, D]
    bf1_ref  : [L, 1, D_FF]
    vecs_ref : [L, 6, D]                 rows: bo, g1, be1, bf2, g2, be2
    y_ref    : [B, S, D]
    attn_ref : [L, G, S, S]
    """
    B, S, D = x_ref.shape
    G = B * N_HEADS
    x = x_ref[...]                                            # [B, S, D]
    mask_add = mask_ref[...]                                  # [G, S, S]

    def layer_norm(v, gain, bias):
        mu = jnp.mean(v, axis=-1, keepdims=True)
        var = jnp.mean((v - mu) ** 2, axis=-1, keepdims=True)
        return (v - mu) * lax.rsqrt(var + 1e-5) * gain + bias

    for l in range(N_LAYERS):                                 # static unroll: fused layers
        wqkv = wqkv_ref[l]                                    # [3G, D, Dk]
        bqkv = bqkv_ref[l]                                    # [3G, 1, Dk]
        wo = wo_ref[l]                                        # [G, Dv, D]
        w1 = w1_ref[l]                                        # [B, D, D_FF]
        w2 = w2_ref[l]                                        # [B, D_FF, D]
        bf1 = bf1_ref[l]                                      # [1, D_FF]
        vecs = vecs_ref[l]                                    # [6, D]
        bo, g1, be1, bf2, g2, be2 = (vecs[i:i + 1, :] for i in range(6))

        # ---- multi-head self-attention: heads & batch as a leading MXU batch dim ----
        # replicate the activations across (proj, head); ordering matches g3 = p*G + b*H + h
        xg = jnp.broadcast_to(x[None, :, None],
                              (3, B, N_HEADS, S, D)).reshape(3 * G, S, D)
        qkv = jnp.einsum('gsd,gdk->gsk', xg, wqkv,
                         preferred_element_type=jnp.float32) + bqkv          # [3G, S, Dk]
        q = qkv[0:G]                                                         # [G, S, Dk]
        k = qkv[G:2 * G]
        v = qkv[2 * G:3 * G]

        # scores for all B*H heads at once; additive pad mask (no compare/select)
        scores = jnp.einsum('gqd,gkd->gqk', q, k,
                            preferred_element_type=jnp.float32) + mask_add   # [G, S, S]
        m = jnp.max(scores, axis=-1, keepdims=True)
        e = jnp.exp(scores - m)
        p = e * pl.reciprocal(jnp.sum(e, axis=-1, keepdims=True), approx=False)
        attn_ref[l] = p                                                      # one store / layer

        ctx = jnp.einsum('gqk,gkd->gqd', p, v,
                         preferred_element_type=jnp.float32)                 # [G, S, Dv]
        proj = jnp.einsum('gsv,gvd->gsd', ctx, wo,
                          preferred_element_type=jnp.float32)                # [G, S, D]
        proj4 = proj.reshape(B, N_HEADS, S, D)                               # leading split
        attn_out = proj4[:, 0]
        for h in range(1, N_HEADS):                                          # sum over heads
            attn_out = attn_out + proj4[:, h]
        attn_out = attn_out + bo                                             # [B, S, D]

        h1 = layer_norm(attn_out + x, g1, be1)                               # residual + LN

        # ---- position-wise FFN (batched over B, no lane-minor reshapes) ----
        ff = jnp.maximum(jnp.einsum('bsd,bdf->bsf', h1, w1,
                                    preferred_element_type=jnp.float32) + bf1, 0.0)
        ff = jnp.einsum('bsf,bfd->bsd', ff, w2,
                        preferred_element_type=jnp.float32) + bf2
        x = layer_norm(ff + h1, g2, be2)                                     # residual + LN

    y_ref[...] = x


def encoder_pallas(x3, mask_add, wqkv, bqkv, wo, w1, w2, bf1, vecs):
    B, S, _ = x3.shape
    G = B * N_HEADS
    vmem = lambda: pl.BlockSpec(memory_space=pltpu.MemorySpace.VMEM)
    out_shape = (
        jax.ShapeDtypeStruct((B, S, D_MODEL), jnp.float32),
        jax.ShapeDtypeStruct((N_LAYERS, G, S, S), jnp.float32),
    )
    # Grid-less fused call: total state is a few tens of KB, far under VMEM on
    # v5e/v6e/v7x; per-grid-step overhead (~0.35 us) would exceed the compute.
    return pl.pallas_call(
        encoder_kernel,
        in_specs=[vmem() for _ in range(9)],
        out_specs=(vmem(), vmem()),
        out_shape=out_shape,
    )(x3, mask_add, wqkv, bqkv, wo, w1, w2, bf1, vecs)


# ----------------------------- parameter setup (glue) -----------------------------
def init_layer_params(key):
    ks = jax.random.split(key, 12)

    def rnd(k, shape, scale=0.2):
        return (scale * jax.random.normal(k, shape)).astype(jnp.float32)

    wq = rnd(ks[0], (D_MODEL, N_HEADS * D_K)); bq = rnd(ks[1], (1, N_HEADS * D_K), 0.05)
    wk = rnd(ks[2], (D_MODEL, N_HEADS * D_K)); bk = rnd(ks[3], (1, N_HEADS * D_K), 0.05)
    wv = rnd(ks[4], (D_MODEL, N_HEADS * D_V)); bv = rnd(ks[5], (1, N_HEADS * D_V), 0.05)
    wo = rnd(ks[6], (N_HEADS * D_V, D_MODEL)); bo = rnd(ks[7], (1, D_MODEL), 0.05)
    g1 = jnp.ones((1, D_MODEL), jnp.float32); be1 = jnp.zeros((1, D_MODEL), jnp.float32)
    w1 = rnd(ks[8], (D_MODEL, D_FF));          bf1 = rnd(ks[9], (1, D_FF), 0.05)
    w2 = rnd(ks[10], (D_FF, D_MODEL));         bf2 = rnd(ks[11], (1, D_MODEL), 0.05)
    g2 = jnp.ones((1, D_MODEL), jnp.float32); be2 = jnp.zeros((1, D_MODEL), jnp.float32)
    return (wq, bq, wk, bk, wv, bv, wo, bo, g1, be1, w1, bf1, w2, bf2, g2, be2)


def stack_layer_params(layer_params):
    """Stack per-layer weights, split per head, with 1/sqrt(Dk) folded into q."""
    scale = jnp.float32(1.0 / np.sqrt(D_K))

    def heads_w(w):   # [D, H*Dk] -> [H, D, Dk]
        return jnp.transpose(w.reshape(D_MODEL, N_HEADS, D_K), (1, 0, 2))

    def heads_b(b):   # [1, H*Dk] -> [H, Dk]
        return b.reshape(N_HEADS, D_K)

    wqkv_l, bqkv_l, wo_l, w1_l, w2_l, bf1_l, vecs_l = ([] for _ in range(7))
    for (wq, bq, wk, bk, wv, bv, wo, bo, g1, be1, w1, bf1, w2, bf2, g2, be2) in layer_params:
        wqkv_l.append(jnp.stack([heads_w(wq * scale), heads_w(wk), heads_w(wv)], 0))  # [3,H,D,Dk]
        bqkv_l.append(jnp.stack([heads_b(bq * scale), heads_b(bk), heads_b(bv)], 0))  # [3,H,Dk]
        wo_l.append(wo.reshape(N_HEADS, D_V, D_MODEL))                                # [H,Dv,D]
        w1_l.append(w1); w2_l.append(w2); bf1_l.append(bf1)
        vecs_l.append(jnp.concatenate([bo, g1, be1, bf2, g2, be2], axis=0))           # [6, D]
    stack = lambda xs: jnp.stack(xs, axis=0)
    return (stack(wqkv_l), stack(bqkv_l), stack(wo_l), stack(w1_l), stack(w2_l),
            stack(bf1_l), stack(vecs_l))


@jax.jit
def encoder_forward(enc_inputs, src_emb_w, pos_table, stacked):
    wqkv3, bqkv3, wo_h, w1s, w2s, bf1s, vecs = stacked
    B, S = enc_inputs.shape
    L, G = N_LAYERS, B * N_HEADS

    # src_emb(enc_inputs) + pos_emb([[1,2,3,4,0]])  (embedding gathers are tiny glue)
    pos_ids = jnp.array([[1, 2, 3, 4, 0]], dtype=jnp.int32)
    x3 = (src_emb_w[enc_inputs] + pos_table[pos_ids]).astype(jnp.float32)     # [B,S,D]

    # get_attn_pad_mask + masked_fill(-1e9) folded into one ADDITIVE mask [B*H, S, S]
    pad = (enc_inputs == 0)
    mask_add = jnp.where(pad, jnp.float32(-1e9), jnp.float32(0.0))            # [B, S] (keys)
    mask_add = jnp.broadcast_to(mask_add[:, None, None, :],
                                (B, N_HEADS, S, S)).reshape(G, S, S)

    # broadcast weights over batch (outside the kernel) so in-kernel dots are
    # plain leading-batch-dim einsums with no lane slicing or in-loop broadcasts.
    wqkv_g = jnp.broadcast_to(wqkv3[:, :, None],
                              (L, 3, B, N_HEADS, D_MODEL, D_K)).reshape(L, 3 * G, D_MODEL, D_K)
    bqkv_g = jnp.broadcast_to(bqkv3[:, :, None],
                              (L, 3, B, N_HEADS, D_K)).reshape(L, 3 * G, 1, D_K)
    wo_g = jnp.broadcast_to(wo_h[:, None],
                            (L, B, N_HEADS, D_V, D_MODEL)).reshape(L, G, D_V, D_MODEL)
    w1_b = jnp.broadcast_to(w1s[:, None], (L, B, D_MODEL, D_FF))
    w2_b = jnp.broadcast_to(w2s[:, None], (L, B, D_FF, D_MODEL))

    y, attn_all = encoder_pallas(x3, mask_add, wqkv_g, bqkv_g, wo_g, w1_b, w2_b, bf1s, vecs)
    attn_all = attn_all.reshape(L, B, N_HEADS, S, S)
    attns = [attn_all[l] for l in range(N_LAYERS)]            # list of [B,H,S,S], as PyTorch
    return y, attns


if __name__ == "__main__":
    key = jax.random.PRNGKey(0)
    k_emb, *k_layers = jax.random.split(key, 1 + N_LAYERS)

    # deterministic synthetic parameters
    src_emb_w = (0.2 * jax.random.normal(k_emb, (SRC_VOCAB_SIZE, D_MODEL))).astype(jnp.float32)
    pos_table = get_sinusoid_encoding_table(N_POSITION, D_MODEL)   # frozen sinusoid table
    layer_params = [init_layer_params(k) for k in k_layers]
    stacked = stack_layer_params(layer_params)

    # batch=2 token-id sequences (0 == 'P' pad token, exercising the pad mask)
    enc_inputs = jnp.array([[1, 2, 3, 4, 0],
                            [1, 2, 3, 0, 0]], dtype=jnp.int32)

    enc_outputs, enc_self_attns = encoder_forward(enc_inputs, src_emb_w, pos_table, stacked)
    jax.block_until_ready((enc_outputs, enc_self_attns))

    assert enc_outputs.shape == (2, SRC_LEN, D_MODEL)
    assert all(a.shape == (2, N_HEADS, SRC_LEN, SRC_LEN) for a in enc_self_attns)
    assert bool(jnp.all(jnp.isfinite(enc_outputs)))
    # attention rows are exact softmax (exact reciprocal) -> sum to ~1
    assert bool(jnp.allclose(jnp.sum(enc_self_attns[0], axis=-1), 1.0, atol=1e-5))
    print("KERNEL_OK")
</pallas_src>

<mosaic_0001>
module attributes {stable_mosaic.version = 11 : i64} {
  func.func @encoder_kernel(%arg0: memref<2x5x7xf32, #tpu.memory_space<vmem>>, %arg1: memref<4x5x5xf32, #tpu.memory_space<vmem>>, %arg2: memref<2x12x7x8xf32, #tpu.memory_space<vmem>>, %arg3: memref<2x12x1x8xf32, #tpu.memory_space<vmem>>, %arg4: memref<2x4x8x7xf32, #tpu.memory_space<vmem>>, %arg5: memref<2x2x7x16xf32, #tpu.memory_space<vmem>>, %arg6: memref<2x2x16x7xf32, #tpu.memory_space<vmem>>, %arg7: memref<2x1x16xf32, #tpu.memory_space<vmem>>, %arg8: memref<2x6x7xf32, #tpu.memory_space<vmem>>, %arg9: memref<2x5x7xf32, #tpu.memory_space<vmem>>, %arg10: memref<2x4x5x5xf32, #tpu.memory_space<vmem>>) attributes {dimension_semantics = [], scalar_prefetch = 0 : i64, scratch_operands = 0 : i64, tpu.core_type = #tpu.core_type<tc>} {
    %c0 = arith.constant 0 : index
    %c0_0 = arith.constant 0 : index
    %c0_1 = arith.constant 0 : index
    %0 = vector.load %arg0[%c0, %c0_0, %c0_1] : memref<2x5x7xf32, #tpu.memory_space<vmem>>, vector<2x5x7xf32>
    %c0_2 = arith.constant 0 : index
    %c0_3 = arith.constant 0 : index
    %c0_4 = arith.constant 0 : index
    %1 = vector.load %arg1[%c0_2, %c0_3, %c0_4] : memref<4x5x5xf32, #tpu.memory_space<vmem>>, vector<4x5x5xf32>
    %c0_5 = arith.constant 0 : index
    %c0_6 = arith.constant 0 : index
    %c0_7 = arith.constant 0 : index
    %c0_8 = arith.constant 0 : index
    %2 = vector.load %arg2[%c0_5, %c0_6, %c0_7, %c0_8] : memref<2x12x7x8xf32, #tpu.memory_space<vmem>>, vector<1x12x7x8xf32>
    %3 = vector.shape_cast %2 : vector<1x12x7x8xf32> to vector<12x7x8xf32>
    %c0_9 = arith.constant 0 : index
    %c0_10 = arith.constant 0 : index
    %c0_11 = arith.constant 0 : index
    %c0_12 = arith.constant 0 : index
    %4 = vector.load %arg3[%c0_9, %c0_10, %c0_11, %c0_12] : memref<2x12x1x8xf32, #tpu.memory_space<vmem>>, vector<1x12x1x8xf32>
    %5 = vector.shape_cast %4 : vector<1x12x1x8xf32> to vector<12x1x8xf32>
    %c0_13 = arith.constant 0 : index
    %c0_14 = arith.constant 0 : index
    %c0_15 = arith.constant 0 : index
    %c0_16 = arith.constant 0 : index
    %6 = vector.load %arg4[%c0_13, %c0_14, %c0_15, %c0_16] : memref<2x4x8x7xf32, #tpu.memory_space<vmem>>, vector<1x4x8x7xf32>
    %7 = vector.shape_cast %6 : vector<1x4x8x7xf32> to vector<4x8x7xf32>
    %c0_17 = arith.constant 0 : index
    %c0_18 = arith.constant 0 : index
    %c0_19 = arith.constant 0 : index
    %c0_20 = arith.constant 0 : index
    %8 = vector.load %arg5[%c0_17, %c0_18, %c0_19, %c0_20] : memref<2x2x7x16xf32, #tpu.memory_space<vmem>>, vector<1x2x7x16xf32>
    %9 = vector.shape_cast %8 : vector<1x2x7x16xf32> to vector<2x7x16xf32>
    %c0_21 = arith.constant 0 : index
    %c0_22 = arith.constant 0 : index
    %c0_23 = arith.constant 0 : index
    %c0_24 = arith.constant 0 : index
    %10 = vector.load %arg6[%c0_21, %c0_22, %c0_23, %c0_24] : memref<2x2x16x7xf32, #tpu.memory_space<vmem>>, vector<1x2x16x7xf32>
    %11 = vector.shape_cast %10 : vector<1x2x16x7xf32> to vector<2x16x7xf32>
    %c0_25 = arith.constant 0 : index
    %c0_26 = arith.constant 0 : index
    %c0_27 = arith.constant 0 : index
    %12 = vector.load %arg7[%c0_25, %c0_26, %c0_27] : memref<2x1x16xf32, #tpu.memory_space<vmem>>, vector<1x1x16xf32>
    %13 = vector.shape_cast %12 : vector<1x1x16xf32> to vector<1x16xf32>
    %c0_28 = arith.constant 0 : index
    %c0_29 = arith.constant 0 : index
    %c0_30 = arith.constant 0 : index
    %14 = vector.load %arg8[%c0_28, %c0_29, %c0_30] : memref<2x6x7xf32, #tpu.memory_space<vmem>>, vector<1x6x7xf32>
    %15 = vector.shape_cast %14 : vector<1x6x7xf32> to vector<6x7xf32>
    %16 = vector.extract_strided_slice %15 {offsets = [0, 0], sizes = [1, 7], strides = [1, 1]} : vector<6x7xf32> to vector<1x7xf32>
    %17 = vector.extract_strided_slice %15 {offsets = [1, 0], sizes = [1, 7], strides = [1, 1]} : vector<6x7xf32> to vector<1x7xf32>
    %18 = vector.extract_strided_slice %15 {offsets = [2, 0], sizes = [1, 7], strides = [1, 1]} : vector<6x7xf32> to vector<1x7xf32>
    %19 = vector.extract_strided_slice %15 {offsets = [3, 0], sizes = [1, 7], strides = [1, 1]} : vector<6x7xf32> to vector<1x7xf32>
    %20 = vector.extract_strided_slice %15 {offsets = [4, 0], sizes = [1, 7], strides = [1, 1]} : vector<6x7xf32> to vector<1x7xf32>
    %21 = vector.extract_strided_slice %15 {offsets = [5, 0], sizes = [1, 7], strides = [1, 1]} : vector<6x7xf32> to vector<1x7xf32>
    %22 = vector.shape_cast %0 : vector<2x5x7xf32> to vector<1x2x1x5x7xf32>
    %23 = vector.shape_cast %22 : vector<1x2x1x5x7xf32> to vector<1x2x1x5x7xf32>
    %24 = vector.broadcast %23 : vector<1x2x1x5x7xf32> to vector<3x2x2x5x7xf32>
    %25 = vector.shape_cast %24 : vector<3x2x2x5x7xf32> to vector<12x5x7xf32>
    "tpu.trace_start"() <{level = 10 : i32, message = "gsd,gdk->gsk"}> : () -> ()
    %cst = arith.constant dense<0.000000e+00> : vector<12x5x8xf32>
    %26 = tpu.matmul %25, %3, %cst {dimension_numbers = #tpu.dot_dimension_numbers<[2], [1], [1], [2], [0, 0, 0, 1, 1, 2], [0], [0]>} : vector<12x5x7xf32>, vector<12x7x8xf32>, vector<12x5x8xf32> -> vector<12x5x8xf32>
    "tpu.trace_stop"() : () -> ()
    %27 = vector.broadcast %5 : vector<12x1x8xf32> to vector<12x5x8xf32>
    %28 = arith.addf %26, %27 : vector<12x5x8xf32>
    %29 = vector.extract_strided_slice %28 {offsets = [0, 0, 0], sizes = [4, 5, 8], strides = [1, 1, 1]} : vector<12x5x8xf32> to vector<4x5x8xf32>
    %30 = vector.extract_strided_slice %28 {offsets = [4, 0, 0], sizes = [4, 5, 8], strides = [1, 1, 1]} : vector<12x5x8xf32> to vector<4x5x8xf32>
    %31 = vector.extract_strided_slice %28 {offsets = [8, 0, 0], sizes = [4, 5, 8], strides = [1, 1, 1]} : vector<12x5x8xf32> to vector<4x5x8xf32>
    "tpu.trace_start"() <{level = 10 : i32, message = "gqd,gkd->gqk"}> : () -> ()
    %cst_31 = arith.constant dense<0.000000e+00> : vector<4x5x5xf32>
    %32 = tpu.matmul %29, %30, %cst_31 {dimension_numbers = #tpu.dot_dimension_numbers<[2], [2], [1], [1], [0, 0, 0, 1, 1, 1], [0], [0]>} : vector<4x5x8xf32>, vector<4x5x8xf32>, vector<4x5x5xf32> -> vector<4x5x5xf32>
    "tpu.trace_stop"() : () -> ()
    %33 = arith.addf %32, %1 : vector<4x5x5xf32>
    %cst_32 = arith.constant dense<0xFF800000> : vector<4x5xf32>
    %34 = vector.multi_reduction <maximumf>, %33, %cst_32 [2] : vector<4x5x5xf32> to vector<4x5xf32>
    %35 = vector.shape_cast %34 : vector<4x5xf32> to vector<4x5x1xf32>
    %36 = vector.broadcast %35 : vector<4x5x1xf32> to vector<4x5x5xf32>
    %37 = arith.subf %33, %36 : vector<4x5x5xf32>
    %38 = math.exp %37 : vector<4x5x5xf32>
    %cst_33 = arith.constant dense<0.000000e+00> : vector<4x5xf32>
    %39 = vector.multi_reduction <add>, %38, %cst_33 [2] : vector<4x5x5xf32> to vector<4x5xf32>
    %40 = vector.shape_cast %39 : vector<4x5xf32> to vector<4x5x1xf32>
    %41 = tpu.reciprocal %40 : vector<4x5x1xf32> -> vector<4x5x1xf32>
    %42 = vector.broadcast %41 : vector<4x5x1xf32> to vector<4x5x5xf32>
    %43 = arith.mulf %38, %42 : vector<4x5x5xf32>
    %c0_34 = arith.constant 0 : index
    %c0_35 = arith.constant 0 : index
    %c0_36 = arith.constant 0 : index
    %c0_37 = arith.constant 0 : index
    %44 = vector.load %arg10[%c0_34, %c0_35, %c0_36, %c0_37] : memref<2x4x5x5xf32, #tpu.memory_space<vmem>>, vector<1x4x5x5xf32>
    %45 = vector.shape_cast %44 : vector<1x4x5x5xf32> to vector<4x5x5xf32>
    %46 = vector.shape_cast %43 : vector<4x5x5xf32> to vector<1x4x5x5xf32>
    tpu.vector_store %arg10[%c0_34, %c0_35, %c0_36, %c0_37], %46 {strides = array<i32>} : memref<2x4x5x5xf32, #tpu.memory_space<vmem>>, vector<1x4x5x5xf32>,
    "tpu.trace_start"() <{level = 10 : i32, message = "gqk,gkd->gqd"}> : () -> ()
    %cst_38 = arith.constant dense<0.000000e+00> : vector<4x5x8xf32>
    %47 = tpu.matmul %43, %31, %cst_38 {dimension_numbers = #tpu.dot_dimension_numbers<[2], [1], [1], [2], [0, 0, 0, 1, 1, 2], [0], [0]>} : vector<4x5x5xf32>, vector<4x5x8xf32>, vector<4x5x8xf32> -> vector<4x5x8xf32>
    "tpu.trace_stop"() : () -> ()
    "tpu.trace_start"() <{level = 10 : i32, message = "gsv,gvd->gsd"}> : () -> ()
    %cst_39 = arith.constant dense<0.000000e+00> : vector<4x5x7xf32>
    %48 = tpu.matmul %47, %7, %cst_39 {dimension_numbers = #tpu.dot_dimension_numbers<[2], [1], [1], [2], [0, 0, 0, 1, 1, 2], [0], [0]>} : vector<4x5x8xf32>, vector<4x8x7xf32>, vector<4x5x7xf32> -> vector<4x5x7xf32>
    "tpu.trace_stop"() : () -> ()
    %49 = vector.shape_cast %48 : vector<4x5x7xf32> to vector<2x2x5x7xf32>
    %50 = vector.extract_strided_slice %49 {offsets = [0, 0, 0, 0], sizes = [2, 1, 5, 7], strides = [1, 1, 1, 1]} : vector<2x2x5x7xf32> to vector<2x1x5x7xf32>
    %51 = vector.shape_cast %50 : vector<2x1x5x7xf32> to vector<2x5x7xf32>
    %52 = vector.extract_strided_slice %49 {offsets = [0, 1, 0, 0], sizes = [2, 1, 5, 7], strides = [1, 1, 1, 1]} : vector<2x2x5x7xf32> to vector<2x1x5x7xf32>
    %53 = vector.shape_cast %52 : vector<2x1x5x7xf32> to vector<2x5x7xf32>
    %54 = arith.addf %51, %53 : vector<2x5x7xf32>
    %55 = vector.shape_cast %16 : vector<1x7xf32> to vector<1x1x7xf32>
    %56 = vector.broadcast %55 : vector<1x1x7xf32> to vector<2x5x7xf32>
    %57 = arith.addf %54, %56 : vector<2x5x7xf32>
    %58 = arith.addf %57, %0 : vector<2x5x7xf32>
    %cst_40 = arith.constant dense<0.000000e+00> : vector<2x5xf32>
    %59 = vector.multi_reduction <add>, %58, %cst_40 [2] : vector<2x5x7xf32> to vector<2x5xf32>
    %60 = vector.shape_cast %59 : vector<2x5xf32> to vector<2x5x1xf32>
    %cst_41 = arith.constant 7.000000e+00 : f32
    %61 = vector.broadcast %cst_41 : f32 to vector<2x5x1xf32>
    %62 = arith.divf %60, %61 : vector<2x5x1xf32>
    %63 = vector.broadcast %62 : vector<2x5x1xf32> to vector<2x5x7xf32>
    %64 = arith.subf %58, %63 : vector<2x5x7xf32>
    %65 = arith.mulf %64, %64 : vector<2x5x7xf32>
    %cst_42 = arith.constant dense<0.000000e+00> : vector<2x5xf32>
    %66 = vector.multi_reduction <add>, %65, %cst_42 [2] : vector<2x5x7xf32> to vector<2x5xf32>
    %67 = vector.shape_cast %66 : vector<2x5xf32> to vector<2x5x1xf32>
    %cst_43 = arith.constant 7.000000e+00 : f32
    %68 = vector.broadcast %cst_43 : f32 to vector<2x5x1xf32>
    %69 = arith.divf %67, %68 : vector<2x5x1xf32>
    %70 = vector.broadcast %62 : vector<2x5x1xf32> to vector<2x5x7xf32>
    %71 = arith.subf %58, %70 : vector<2x5x7xf32>
    %cst_44 = arith.constant 9.99999974E-6 : f32
    %72 = vector.broadcast %cst_44 : f32 to vector<2x5x1xf32>
    %73 = arith.addf %69, %72 : vector<2x5x1xf32>
    %74 = math.rsqrt %73 : vector<2x5x1xf32>
    %75 = vector.broadcast %74 : vector<2x5x1xf32> to vector<2x5x7xf32>
    %76 = arith.mulf %71, %75 : vector<2x5x7xf32>
    %77 = vector.shape_cast %17 : vector<1x7xf32> to vector<1x1x7xf32>
    %78 = vector.broadcast %77 : vector<1x1x7xf32> to vector<2x5x7xf32>
    %79 = arith.mulf %76, %78 : vector<2x5x7xf32>
    %80 = vector.shape_cast %18 : vector<1x7xf32> to vector<1x1x7xf32>
    %81 = vector.broadcast %80 : vector<1x1x7xf32> to vector<2x5x7xf32>
    %82 = arith.addf %79, %81 : vector<2x5x7xf32>
    "tpu.trace_start"() <{level = 10 : i32, message = "bsd,bdf->bsf"}> : () -> ()
    %cst_45 = arith.constant dense<0.000000e+00> : vector<2x5x16xf32>
    %83 = tpu.matmul %82, %9, %cst_45 {dimension_numbers = #tpu.dot_dimension_numbers<[2], [1], [1], [2], [0, 0, 0, 1, 1, 2], [0], [0]>} : vector<2x5x7xf32>, vector<2x7x16xf32>, vector<2x5x16xf32> -> vector<2x5x16xf32>
    "tpu.trace_stop"() : () -> ()
    %84 = vector.shape_cast %13 : vector<1x16xf32> to vector<1x1x16xf32>
    %85 = vector.broadcast %84 : vector<1x1x16xf32> to vector<2x5x16xf32>
    %86 = arith.addf %83, %85 : vector<2x5x16xf32>
    %cst_46 = arith.constant 0.000000e+00 : f32
    %87 = vector.broadcast %cst_46 : f32 to vector<2x5x16xf32>
    %88 = arith.maximumf %86, %87 : vector<2x5x16xf32>
    "tpu.trace_start"() <{level = 10 : i32, message = "bsf,bfd->bsd"}> : () -> ()
    %cst_47 = arith.constant dense<0.000000e+00> : vector<2x5x7xf32>
    %89 = tpu.matmul %88, %11, %cst_47 {dimension_numbers = #tpu.dot_dimension_numbers<[2], [1], [1], [2], [0, 0, 0, 1, 1, 2], [0], [0]>} : vector<2x5x16xf32>, vector<2x16x7xf32>, vector<2x5x7xf32> -> vector<2x5x7xf32>
    "tpu.trace_stop"() : () -> ()
    %90 = vector.shape_cast %19 : vector<1x7xf32> to vector<1x1x7xf32>
    %91 = vector.broadcast %90 : vector<1x1x7xf32> to vector<2x5x7xf32>
    %92 = arith.addf %89, %91 : vector<2x5x7xf32>
    %93 = arith.addf %92, %82 : vector<2x5x7xf32>
    %cst_48 = arith.constant dense<0.000000e+00> : vector<2x5xf32>
    %94 = vector.multi_reduction <add>, %93, %cst_48 [2] : vector<2x5x7xf32> to vector<2x5xf32>
    %95 = vector.shape_cast %94 : vector<2x5xf32> to vector<2x5x1xf32>
    %cst_49 = arith.constant 7.000000e+00 : f32
    %96 = vector.broadcast %cst_49 : f32 to vector<2x5x1xf32>
    %97 = arith.divf %95, %96 : vector<2x5x1xf32>
    %98 = vector.broadcast %97 : vector<2x5x1xf32> to vector<2x5x7xf32>
    %99 = arith.subf %93, %98 : vector<2x5x7xf32>
    %100 = arith.mulf %99, %99 : vector<2x5x7xf32>
    %cst_50 = arith.constant dense<0.000000e+00> : vector<2x5xf32>
    %101 = vector.multi_reduction <add>, %100, %cst_50 [2] : vector<2x5x7xf32> to vector<2x5xf32>
    %102 = vector.shape_cast %101 : vector<2x5xf32> to vector<2x5x1xf32>
    %cst_51 = arith.constant 7.000000e+00 : f32
    %103 = vector.broadcast %cst_51 : f32 to vector<2x5x1xf32>
    %104 = arith.divf %102, %103 : vector<2x5x1xf32>
    %105 = vector.broadcast %97 : vector<2x5x1xf32> to vector<2x5x7xf32>
    %106 = arith.subf %93, %105 : vector<2x5x7xf32>
    %cst_52 = arith.constant 9.99999974E-6 : f32
    %107 = vector.broadcast %cst_52 : f32 to vector<2x5x1xf32>
    %108 = arith.addf %104, %107 : vector<2x5x1xf32>
    %109 = math.rsqrt %108 : vector<2x5x1xf32>
    %110 = vector.broadcast %109 : vector<2x5x1xf32> to vector<2x5x7xf32>
    %111 = arith.mulf %106, %110 : vector<2x5x7xf32>
    %112 = vector.shape_cast %20 : vector<1x7xf32> to vector<1x1x7xf32>
    %113 = vector.broadcast %112 : vector<1x1x7xf32> to vector<2x5x7xf32>
    %114 = arith.mulf %111, %113 : vector<2x5x7xf32>
    %115 = vector.shape_cast %21 : vector<1x7xf32> to vector<1x1x7xf32>
    %116 = vector.broadcast %115 : vector<1x1x7xf32> to vector<2x5x7xf32>
    %117 = arith.addf %114, %116 : vector<2x5x7xf32>
    %c1 = arith.constant 1 : index
    %c0_53 = arith.constant 0 : index
    %c0_54 = arith.constant 0 : index
    %c0_55 = arith.constant 0 : index
    %118 = vector.load %arg2[%c1, %c0_53, %c0_54, %c0_55] : memref<2x12x7x8xf32, #tpu.memory_space<vmem>>, vector<1x12x7x8xf32>
    %119 = vector.shape_cast %118 : vector<1x12x7x8xf32> to vector<12x7x8xf32>
    %c1_56 = arith.constant 1 : index
    %c0_57 = arith.constant 0 : index
    %c0_58 = arith.constant 0 : index
    %c0_59 = arith.constant 0 : index
    %120 = vector.load %arg3[%c1_56, %c0_57, %c0_58, %c0_59] : memref<2x12x1x8xf32, #tpu.memory_space<vmem>>, vector<1x12x1x8xf32>
    %121 = vector.shape_cast %120 : vector<1x12x1x8xf32> to vector<12x1x8xf32>
    %c1_60 = arith.constant 1 : index
    %c0_61 = arith.constant 0 : index
    %c0_62 = arith.constant 0 : index
    %c0_63 = arith.constant 0 : index
    %122 = vector.load %arg4[%c1_60, %c0_61, %c0_62, %c0_63] : memref<2x4x8x7xf32, #tpu.memory_space<vmem>>, vector<1x4x8x7xf32>
    %123 = vector.shape_cast %122 : vector<1x4x8x7xf32> to vector<4x8x7xf32>
    %c1_64 = arith.constant 1 : index
    %c0_65 = arith.constant 0 : index
    %c0_66 = arith.constant 0 : index
    %c0_67 = arith.constant 0 : index
    %124 = vector.load %arg5[%c1_64, %c0_65, %c0_66, %c0_67] : memref<2x2x7x16xf32, #tpu.memory_space<vmem>>, vector<1x2x7x16xf32>
    %125 = vector.shape_cast %124 : vector<1x2x7x16xf32> to vector<2x7x16xf32>
    %c1_68 = arith.constant 1 : index
    %c0_69 = arith.constant 0 : index
    %c0_70 = arith.constant 0 : index
    %c0_71 = arith.constant 0 : index
    %126 = vector.load %arg6[%c1_68, %c0_69, %c0_70, %c0_71] : memref<2x2x16x7xf32, #tpu.memory_space<vmem>>, vector<1x2x16x7xf32>
    %127 = vector.shape_cast %126 : vector<1x2x16x7xf32> to vector<2x16x7xf32>
    %c1_72 = arith.constant 1 : index
    %c0_73 = arith.constant 0 : index
    %c0_74 = arith.constant 0 : index
    %128 = vector.load %arg7[%c1_72, %c0_73, %c0_74] : memref<2x1x16xf32, #tpu.memory_space<vmem>>, vector<1x1x16xf32>
    %129 = vector.shape_cast %128 : vector<1x1x16xf32> to vector<1x16xf32>
    %c1_75 = arith.constant 1 : index
    %c0_76 = arith.constant 0 : index
    %c0_77 = arith.constant 0 : index
    %130 = vector.load %arg8[%c1_75, %c0_76, %c0_77] : memref<2x6x7xf32, #tpu.memory_space<vmem>>, vector<1x6x7xf32>
    %131 = vector.shape_cast %130 : vector<1x6x7xf32> to vector<6x7xf32>
    %132 = vector.extract_strided_slice %131 {offsets = [0, 0], sizes = [1, 7], strides = [1, 1]} : vector<6x7xf32> to vector<1x7xf32>
    %133 = vector.extract_strided_slice %131 {offsets = [1, 0], sizes = [1, 7], strides = [1, 1]} : vector<6x7xf32> to vector<1x7xf32>
    %134 = vector.extract_strided_slice %131 {offsets = [2, 0], sizes = [1, 7], strides = [1, 1]} : vector<6x7xf32> to vector<1x7xf32>
    %135 = vector.extract_strided_slice %131 {offsets = [3, 0], sizes = [1, 7], strides = [1, 1]} : vector<6x7xf32> to vector<1x7xf32>
    %136 = vector.extract_strided_slice %131 {offsets = [4, 0], sizes = [1, 7], strides = [1, 1]} : vector<6x7xf32> to vector<1x7xf32>
    %137 = vector.extract_strided_slice %131 {offsets = [5, 0], sizes = [1, 7], strides = [1, 1]} : vector<6x7xf32> to vector<1x7xf32>
    %138 = vector.shape_cast %117 : vector<2x5x7xf32> to vector<1x2x1x5x7xf32>
    %139 = vector.shape_cast %138 : vector<1x2x1x5x7xf32> to vector<1x2x1x5x7xf32>
    %140 = vector.broadcast %139 : vector<1x2x1x5x7xf32> to vector<3x2x2x5x7xf32>
    %141 = vector.shape_cast %140 : vector<3x2x2x5x7xf32> to vector<12x5x7xf32>
    "tpu.trace_start"() <{level = 10 : i32, message = "gsd,gdk->gsk"}> : () -> ()
    %cst_78 = arith.constant dense<0.000000e+00> : vector<12x5x8xf32>
    %142 = tpu.matmul %141, %119, %cst_78 {dimension_numbers = #tpu.dot_dimension_numbers<[2], [1], [1], [2], [0, 0, 0, 1, 1, 2], [0], [0]>} : vector<12x5x7xf32>, vector<12x7x8xf32>, vector<12x5x8xf32> -> vector<12x5x8xf32>
    "tpu.trace_stop"() : () -> ()
    %143 = vector.broadcast %121 : vector<12x1x8xf32> to vector<12x5x8xf32>
    %144 = arith.addf %142, %143 : vector<12x5x8xf32>
    %145 = vector.extract_strided_slice %144 {offsets = [0, 0, 0], sizes = [4, 5, 8], strides = [1, 1, 1]} : vector<12x5x8xf32> to vector<4x5x8xf32>
    %146 = vector.extract_strided_slice %144 {offsets = [4, 0, 0], sizes = [4, 5, 8], strides = [1, 1, 1]} : vector<12x5x8xf32> to vector<4x5x8xf32>
    %147 = vector.extract_strided_slice %144 {offsets = [8, 0, 0], sizes = [4, 5, 8], strides = [1, 1, 1]} : vector<12x5x8xf32> to vector<4x5x8xf32>
    "tpu.trace_start"() <{level = 10 : i32, message = "gqd,gkd->gqk"}> : () -> ()
    %cst_79 = arith.constant dense<0.000000e+00> : vector<4x5x5xf32>
    %148 = tpu.matmul %145, %146, %cst_79 {dimension_numbers = #tpu.dot_dimension_numbers<[2], [2], [1], [1], [0, 0, 0, 1, 1, 1], [0], [0]>} : vector<4x5x8xf32>, vector<4x5x8xf32>, vector<4x5x5xf32> -> vector<4x5x5xf32>
    "tpu.trace_stop"() : () -> ()
    %149 = arith.addf %148, %1 : vector<4x5x5xf32>
    %cst_80 = arith.constant dense<0xFF800000> : vector<4x5xf32>
    %150 = vector.multi_reduction <maximumf>, %149, %cst_80 [2] : vector<4x5x5xf32> to vector<4x5xf32>
    %151 = vector.shape_cast %150 : vector<4x5xf32> to vector<4x5x1xf32>
    %152 = vector.broadcast %151 : vector<4x5x1xf32> to vector<4x5x5xf32>
    %153 = arith.subf %149, %152 : vector<4x5x5xf32>
    %154 = math.exp %153 : vector<4x5x5xf32>
    %cst_81 = arith.constant dense<0.000000e+00> : vector<4x5xf32>
    %155 = vector.multi_reduction <add>, %154, %cst_81 [2] : vector<4x5x5xf32> to vector<4x5xf32>
    %156 = vector.shape_cast %155 : vector<4x5xf32> to vector<4x5x1xf32>
    %157 = tpu.reciprocal %156 : vector<4x5x1xf32> -> vector<4x5x1xf32>
    %158 = vector.broadcast %157 : vector<4x5x1xf32> to vector<4x5x5xf32>
    %159 = arith.mulf %154, %158 : vector<4x5x5xf32>
    %c1_82 = arith.constant 1 : index
    %c0_83 = arith.constant 0 : index
    %c0_84 = arith.constant 0 : index
    %c0_85 = arith.constant 0 : index
    %160 = vector.load %arg10[%c1_82, %c0_83, %c0_84, %c0_85] : memref<2x4x5x5xf32, #tpu.memory_space<vmem>>, vector<1x4x5x5xf32>
    %161 = vector.shape_cast %160 : vector<1x4x5x5xf32> to vector<4x5x5xf32>
    %162 = vector.shape_cast %159 : vector<4x5x5xf32> to vector<1x4x5x5xf32>
    tpu.vector_store %arg10[%c1_82, %c0_83, %c0_84, %c0_85], %162 {strides = array<i32>} : memref<2x4x5x5xf32, #tpu.memory_space<vmem>>, vector<1x4x5x5xf32>,
    "tpu.trace_start"() <{level = 10 : i32, message = "gqk,gkd->gqd"}> : () -> ()
    %cst_86 = arith.constant dense<0.000000e+00> : vector<4x5x8xf32>
    %163 = tpu.matmul %159, %147, %cst_86 {dimension_numbers = #tpu.dot_dimension_numbers<[2], [1], [1], [2], [0, 0, 0, 1, 1, 2], [0], [0]>} : vector<4x5x5xf32>, vector<4x5x8xf32>, vector<4x5x8xf32> -> vector<4x5x8xf32>
    "tpu.trace_stop"() : () -> ()
    "tpu.trace_start"() <{level = 10 : i32, message = "gsv,gvd->gsd"}> : () -> ()
    %cst_87 = arith.constant dense<0.000000e+00> : vector<4x5x7xf32>
    %164 = tpu.matmul %163, %123, %cst_87 {dimension_numbers = #tpu.dot_dimension_numbers<[2], [1], [1], [2], [0, 0, 0, 1, 1, 2], [0], [0]>} : vector<4x5x8xf32>, vector<4x8x7xf32>, vector<4x5x7xf32> -> vector<4x5x7xf32>
    "tpu.trace_stop"() : () -> ()
    %165 = vector.shape_cast %164 : vector<4x5x7xf32> to vector<2x2x5x7xf32>
    %166 = vector.extract_strided_slice %165 {offsets = [0, 0, 0, 0], sizes = [2, 1, 5, 7], strides = [1, 1, 1, 1]} : vector<2x2x5x7xf32> to vector<2x1x5x7xf32>
    %167 = vector.shape_cast %166 : vector<2x1x5x7xf32> to vector<2x5x7xf32>
    %168 = vector.extract_strided_slice %165 {offsets = [0, 1, 0, 0], sizes = [2, 1, 5, 7], strides = [1, 1, 1, 1]} : vector<2x2x5x7xf32> to vector<2x1x5x7xf32>
    %169 = vector.shape_cast %168 : vector<2x1x5x7xf32> to vector<2x5x7xf32>
    %170 = arith.addf %167, %169 : vector<2x5x7xf32>
    %171 = vector.shape_cast %132 : vector<1x7xf32> to vector<1x1x7xf32>
    %172 = vector.broadcast %171 : vector<1x1x7xf32> to vector<2x5x7xf32>
    %173 = arith.addf %170, %172 : vector<2x5x7xf32>
    %174 = arith.addf %173, %117 : vector<2x5x7xf32>
    %cst_88 = arith.constant dense<0.000000e+00> : vector<2x5xf32>
    %175 = vector.multi_reduction <add>, %174, %cst_88 [2] : vector<2x5x7xf32> to vector<2x5xf32>
    %176 = vector.shape_cast %175 : vector<2x5xf32> to vector<2x5x1xf32>
    %cst_89 = arith.constant 7.000000e+00 : f32
    %177 = vector.broadcast %cst_89 : f32 to vector<2x5x1xf32>
    %178 = arith.divf %176, %177 : vector<2x5x1xf32>
    %179 = vector.broadcast %178 : vector<2x5x1xf32> to vector<2x5x7xf32>
    %180 = arith.subf %174, %179 : vector<2x5x7xf32>
    %181 = arith.mulf %180, %180 : vector<2x5x7xf32>
    %cst_90 = arith.constant dense<0.000000e+00> : vector<2x5xf32>
    %182 = vector.multi_reduction <add>, %181, %cst_90 [2] : vector<2x5x7xf32> to vector<2x5xf32>
    %183 = vector.shape_cast %182 : vector<2x5xf32> to vector<2x5x1xf32>
    %cst_91 = arith.constant 7.000000e+00 : f32
    %184 = vector.broadcast %cst_91 : f32 to vector<2x5x1xf32>
    %185 = arith.divf %183, %184 : vector<2x5x1xf32>
    %186 = vector.broadcast %178 : vector<2x5x1xf32> to vector<2x5x7xf32>
    %187 = arith.subf %174, %186 : vector<2x5x7xf32>
    %cst_92 = arith.constant 9.99999974E-6 : f32
    %188 = vector.broadcast %cst_92 : f32 to vector<2x5x1xf32>
    %189 = arith.addf %185, %188 : vector<2x5x1xf32>
    %190 = math.rsqrt %189 : vector<2x5x1xf32>
    %191 = vector.broadcast %190 : vector<2x5x1xf32> to vector<2x5x7xf32>
    %192 = arith.mulf %187, %191 : vector<2x5x7xf32>
    %193 = vector.shape_cast %133 : vector<1x7xf32> to vector<1x1x7xf32>
    %194 = vector.broadcast %193 : vector<1x1x7xf32> to vector<2x5x7xf32>
    %195 = arith.mulf %192, %194 : vector<2x5x7xf32>
    %196 = vector.shape_cast %134 : vector<1x7xf32> to vector<1x1x7xf32>
    %197 = vector.broadcast %196 : vector<1x1x7xf32> to vector<2x5x7xf32>
    %198 = arith.addf %195, %197 : vector<2x5x7xf32>
    "tpu.trace_start"() <{level = 10 : i32, message = "bsd,bdf->bsf"}> : () -> ()
    %cst_93 = arith.constant dense<0.000000e+00> : vector<2x5x16xf32>
    %199 = tpu.matmul %198, %125, %cst_93 {dimension_numbers = #tpu.dot_dimension_numbers<[2], [1], [1], [2], [0, 0, 0, 1, 1, 2], [0], [0]>} : vector<2x5x7xf32>, vector<2x7x16xf32>, vector<2x5x16xf32> -> vector<2x5x16xf32>
    "tpu.trace_stop"() : () -> ()
    %200 = vector.shape_cast %129 : vector<1x16xf32> to vector<1x1x16xf32>
    %201 = vector.broadcast %200 : vector<1x1x16xf32> to vector<2x5x16xf32>
    %202 = arith.addf %199, %201 : vector<2x5x16xf32>
    %cst_94 = arith.constant 0.000000e+00 : f32
    %203 = vector.broadcast %cst_94 : f32 to vector<2x5x16xf32>
    %204 = arith.maximumf %202, %203 : vector<2x5x16xf32>
    "tpu.trace_start"() <{level = 10 : i32, message = "bsf,bfd->bsd"}> : () -> ()
    %cst_95 = arith.constant dense<0.000000e+00> : vector<2x5x7xf32>
    %205 = tpu.matmul %204, %127, %cst_95 {dimension_numbers = #tpu.dot_dimension_numbers<[2], [1], [1], [2], [0, 0, 0, 1, 1, 2], [0], [0]>} : vector<2x5x16xf32>, vector<2x16x7xf32>, vector<2x5x7xf32> -> vector<2x5x7xf32>
    "tpu.trace_stop"() : () -> ()
    %206 = vector.shape_cast %135 : vector<1x7xf32> to vector<1x1x7xf32>
    %207 = vector.broadcast %206 : vector<1x1x7xf32> to vector<2x5x7xf32>
    %208 = arith.addf %205, %207 : vector<2x5x7xf32>
    %209 = arith.addf %208, %198 : vector<2x5x7xf32>
    %cst_96 = arith.constant dense<0.000000e+00> : vector<2x5xf32>
    %210 = vector.multi_reduction <add>, %209, %cst_96 [2] : vector<2x5x7xf32> to vector<2x5xf32>
    %211 = vector.shape_cast %210 : vector<2x5xf32> to vector<2x5x1xf32>
    %cst_97 = arith.constant 7.000000e+00 : f32
    %212 = vector.broadcast %cst_97 : f32 to vector<2x5x1xf32>
    %213 = arith.divf %211, %212 : vector<2x5x1xf32>
    %214 = vector.broadcast %213 : vector<2x5x1xf32> to vector<2x5x7xf32>
    %215 = arith.subf %209, %214 : vector<2x5x7xf32>
    %216 = arith.mulf %215, %215 : vector<2x5x7xf32>
    %cst_98 = arith.constant dense<0.000000e+00> : vector<2x5xf32>
    %217 = vector.multi_reduction <add>, %216, %cst_98 [2] : vector<2x5x7xf32> to vector<2x5xf32>
    %218 = vector.shape_cast %217 : vector<2x5xf32> to vector<2x5x1xf32>
    %cst_99 = arith.constant 7.000000e+00 : f32
    %219 = vector.broadcast %cst_99 : f32 to vector<2x5x1xf32>
    %220 = arith.divf %218, %219 : vector<2x5x1xf32>
    %221 = vector.broadcast %213 : vector<2x5x1xf32> to vector<2x5x7xf32>
    %222 = arith.subf %209, %221 : vector<2x5x7xf32>
    %cst_100 = arith.constant 9.99999974E-6 : f32
    %223 = vector.broadcast %cst_100 : f32 to vector<2x5x1xf32>
    %224 = arith.addf %220, %223 : vector<2x5x1xf32>
    %225 = math.rsqrt %224 : vector<2x5x1xf32>
    %226 = vector.broadcast %225 : vector<2x5x1xf32> to vector<2x5x7xf32>
    %227 = arith.mulf %222, %226 : vector<2x5x7xf32>
    %228 = vector.shape_cast %136 : vector<1x7xf32> to vector<1x1x7xf32>
    %229 = vector.broadcast %228 : vector<1x1x7xf32> to vector<2x5x7xf32>
    %230 = arith.mulf %227, %229 : vector<2x5x7xf32>
    %231 = vector.shape_cast %137 : vector<1x7xf32> to vector<1x1x7xf32>
    %232 = vector.broadcast %231 : vector<1x1x7xf32> to vector<2x5x7xf32>
    %233 = arith.addf %230, %232 : vector<2x5x7xf32>
    %c0_101 = arith.constant 0 : index
    %c0_102 = arith.constant 0 : index
    %c0_103 = arith.constant 0 : index
    %234 = vector.load %arg9[%c0_101, %c0_102, %c0_103] : memref<2x5x7xf32, #tpu.memory_space<vmem>>, vector<2x5x7xf32>
    tpu.vector_store %arg9[%c0_101, %c0_102, %c0_103], %233 {strides = array<i32>} : memref<2x5x7xf32, #tpu.memory_space<vmem>>, vector<2x5x7xf32>,
    return
  }
}

</mosaic_0001>

<llo_original>
// kernel: encoder_forward.1
$region0: #{encoder_forward.1}
  #allocation0 [shape = 'u32[]', space=smem, size = 0x4, offset = 0x4, fixed_abs, tag = 'smem constant byte address 0x4 - core index']
  #allocation1 [shape = 'u32[144,128]{1,0:T(1,128)}', space=vmem, size = 0x12000, scoped, tag = 'internal scratch']
  %s0 = inlined_call_operand.vmem [shape: f32[2,5,7], index: 0, kind: input, shape index: {}]
  %s1 = inlined_call_operand.vmem [shape: f32[4,5,5], index: 1, kind: input, shape index: {}]
  %s2 = inlined_call_operand.vmem [shape: f32[2,12,7,8], index: 2, kind: input, shape index: {}]
  %s3 = inlined_call_operand.vmem [shape: f32[2,12,1,8], index: 3, kind: input, shape index: {}]
  %s4 = inlined_call_operand.vmem [shape: f32[2,4,8,7], index: 4, kind: input, shape index: {}]
  %s5 = inlined_call_operand.vmem [shape: f32[2,2,7,16], index: 5, kind: input, shape index: {}]
  %s6 = inlined_call_operand.vmem [shape: f32[2,2,16,7], index: 6, kind: input, shape index: {}]
  %s7 = inlined_call_operand.vmem [shape: f32[2,1,16], index: 7, kind: input, shape index: {}]
  %s8 = inlined_call_operand.vmem [shape: f32[2,6,7], index: 8, kind: input, shape index: {}]
  %s9 = inlined_call_operand.vmem [shape: f32[2,5,7], index: 9, kind: output, shape index: {0}]
  %s10 = inlined_call_operand.vmem [shape: f32[2,4,5,5], index: 10, kind: output, shape index: {1}]
  %11 = xla_tuple %s9, %s10
  %s12 = sld [smem:[#allocation0]]
  $region54: #{encoder_forward.1} parent=0
    _
  %s14 = ssub.s32 1, %s12
  %s15 = scalar_select 0, %s14, %s12
  // Predicated region
  $region2: #{encoder_forward.1} parent=0 // pred_check
    _
  $region3: #{encoder_forward.1} parent=0 // pred_check_branch
    %17 = sbr.rel (0) target = $region5
  $region4: #{encoder_forward.1} parent=0 // pred_region
    _
  $region5: #{encoder_forward.1} parent=0 // pred_fallthru
    _
  // Predicated region
  $region6: #{encoder_forward.1} parent=0 // pred_check
    _
  $region7: #{encoder_forward.1} parent=0 // pred_check_branch
    %19 = sbr.rel (0) target = $region9
  $region8: #{encoder_forward.1} parent=0 // pred_region
    _
  $region9: #{encoder_forward.1} parent=0 // pred_fallthru
    _
  // Predicated region
  $region10: #{encoder_forward.1} parent=0 // pred_check
    _
  $region11: #{encoder_forward.1} parent=0 // pred_check_branch
    %21 = sbr.rel (0) target = $region13
  $region12: #{encoder_forward.1} parent=0 // pred_region
    _
  $region13: #{encoder_forward.1} parent=0 // pred_fallthru
    _
  // Predicated region
  $region14: #{encoder_forward.1} parent=0 // pred_check
    _
  $region15: #{encoder_forward.1} parent=0 // pred_check_branch
    %23 = sbr.rel (0) target = $region17
  $region16: #{encoder_forward.1} parent=0 // pred_region
    _
  $region17: #{encoder_forward.1} parent=0 // pred_fallthru
    _
  // Predicated region
  $region18: #{encoder_forward.1} parent=0 // pred_check
    _
  $region19: #{encoder_forward.1} parent=0 // pred_check_branch
    %25 = sbr.rel (0) target = $region21
  $region20: #{encoder_forward.1} parent=0 // pred_region
    _
  $region21: #{encoder_forward.1} parent=0 // pred_fallthru
    _
  // Predicated region
  $region22: #{encoder_forward.1} parent=0 // pred_check
    _
  $region23: #{encoder_forward.1} parent=0 // pred_check_branch
    %27 = sbr.rel (0) target = $region25
  $region24: #{encoder_forward.1} parent=0 // pred_region
    _
  $region25: #{encoder_forward.1} parent=0 // pred_fallthru
    _
  // Predicated region
  $region26: #{encoder_forward.1} parent=0 // pred_check
    _
  $region27: #{encoder_forward.1} parent=0 // pred_check_branch
    %29 = sbr.rel (0) target = $region29
  $region28: #{encoder_forward.1} parent=0 // pred_region
    _
  $region29: #{encoder_forward.1} parent=0 // pred_fallthru
    _
  // Predicated region
  $region30: #{encoder_forward.1} parent=0 // pred_check
    _
  $region31: #{encoder_forward.1} parent=0 // pred_check_branch
    %31 = sbr.rel (0) target = $region33
  $region32: #{encoder_forward.1} parent=0 // pred_region
    _
  $region33: #{encoder_forward.1} parent=0 // pred_fallthru
    _
  // Predicated region
  $region34: #{encoder_forward.1} parent=0 // pred_check
    _
  $region35: #{encoder_forward.1} parent=0 // pred_check_branch
    %33 = sbr.rel (0) target = $region37
  $region36: #{encoder_forward.1} parent=0 // pred_region
    _
  $region37: #{encoder_forward.1} parent=0 // pred_fallthru
    _
  %v34 = vld [vmem:[%s0] sm:$0x1f]
  %v35 = vld [vmem:[%s0 + $0x8] sm:$0x1f]
  %v36 = vld [vmem:[%s1] sm:$0x1f]
  %v37 = vld [vmem:[%s1 + $0x8] sm:$0x1f]
  %v38 = vld [vmem:[%s1 + $0x10] sm:$0x1f]
  %v39 = vld [vmem:[%s1 + $0x18] sm:$0x1f]
  %v40 = vld [vmem:[%s2] sm:$0x7f]
  %v41 = vld [vmem:[%s2 + $0x8] sm:$0x7f]
  %v42 = vld [vmem:[%s2 + $0x10] sm:$0x7f]
  %v43 = vld [vmem:[%s2 + $0x18] sm:$0x7f]
  %v44 = vld [vmem:[%s2 + $0x20] sm:$0x7f]
  %v45 = vld [vmem:[%s2 + $0x28] sm:$0x7f]
  %v46 = vld [vmem:[%s2 + $0x30] sm:$0x7f]
  %v47 = vld [vmem:[%s2 + $0x38] sm:$0x7f]
  %v48 = vld [vmem:[%s2 + $0x40] sm:$0x7f]
  %v49 = vld [vmem:[%s2 + $0x48] sm:$0x7f]
  %v50 = vld [vmem:[%s2 + $0x50] sm:$0x7f]
  %v51 = vld [vmem:[%s2 + $0x58] sm:$0x7f]
  %v52 = vld [vmem:[%s3] sm:$0x1]
  %v53 = vld [vmem:[%s3 + $0x1] sm:$0x1]
  %v54 = vld [vmem:[%s3 + $0x2] sm:$0x1]
  %v55 = vld [vmem:[%s3 + $0x3] sm:$0x1]
  %v56 = vld [vmem:[%s3 + $0x4] sm:$0x1]
  %v57 = vld [vmem:[%s3 + $0x5] sm:$0x1]
  %v58 = vld [vmem:[%s3 + $0x6] sm:$0x1]
  %v59 = vld [vmem:[%s3 + $0x7] sm:$0x1]
  %v60 = vld [vmem:[%s3 + $0x8] sm:$0x1]
  %v61 = vld [vmem:[%s3 + $0x9] sm:$0x1]
  %v62 = vld [vmem:[%s3 + $0xa] sm:$0x1]
  %v63 = vld [vmem:[%s3 + $0xb] sm:$0x1]
  %v64 = vld [vmem:[%s4] sm:$0xff]
  %v65 = vld [vmem:[%s4 + $0x8] sm:$0xff]
  %v66 = vld [vmem:[%s4 + $0x10] sm:$0xff]
  %v67 = vld [vmem:[%s4 + $0x18] sm:$0xff]
  %v68 = vld [vmem:[%s5] sm:$0x7f]
  %v69 = vld [vmem:[%s5 + $0x8] sm:$0x7f]
  %v70 = vld [vmem:[%s6] sm:$0xff]
  %v71 = vld [vmem:[%s6 + $0x8] sm:$0xff]
  %v72 = vld [vmem:[%s6 + $0x10] sm:$0xff]
  %v73 = vld [vmem:[%s6 + $0x18] sm:$0xff]
  %v74 = vld [vmem:[%s7] sm:$0x1]
  %v75 = vld [vmem:[%s8] sm:$0x3f]
  %v88 = vlaneseq
  %v89 = vshrl.u32 %v88, 7
  %v90 = vsub.s32 0, %v89
  %v91 = vrot.slane %v52, %v90
  %v92 = vlaneseq
  %v93 = vshrl.u32 %v92, 7
  %v94 = vsub.s32 0, %v93
  %v95 = vrot.slane %v53, %v94
  %v96 = vlaneseq
  %v97 = vshrl.u32 %v96, 7
  %v98 = vsub.s32 0, %v97
  %v99 = vrot.slane %v54, %v98
  %v100 = vlaneseq
  %v101 = vshrl.u32 %v100, 7
  %v102 = vsub.s32 0, %v101
  %v103 = vrot.slane %v55, %v102
  %v104 = vlaneseq
  %v105 = vshrl.u32 %v104, 7
  %v106 = vsub.s32 0, %v105
  %v107 = vrot.slane %v56, %v106
  %v108 = vlaneseq
  %v109 = vshrl.u32 %v108, 7
  %v110 = vsub.s32 0, %v109
  %v111 = vrot.slane %v57, %v110
  %v112 = vlaneseq
  %v113 = vshrl.u32 %v112, 7
  %v114 = vsub.s32 0, %v113
  %v115 = vrot.slane %v58, %v114
  %v116 = vlaneseq
  %v117 = vshrl.u32 %v116, 7
  %v118 = vsub.s32 0, %v117
  %v119 = vrot.slane %v59, %v118
  %v120 = vlaneseq
  %v121 = vshrl.u32 %v120, 7
  %v122 = vsub.s32 0, %v121
  %v123 = vrot.slane %v60, %v122
  %v124 = vlaneseq
  %v125 = vshrl.u32 %v124, 7
  %v126 = vsub.s32 0, %v125
  %v127 = vrot.slane %v61, %v126
  %v128 = vlaneseq
  %v129 = vshrl.u32 %v128, 7
  %v130 = vsub.s32 0, %v129
  %v131 = vrot.slane %v62, %v130
  %v132 = vlaneseq
  %v133 = vshrl.u32 %v132, 7
  %v134 = vsub.s32 0, %v133
  %v135 = vrot.slane %v63, %v134
  %vm148 = vcmask 56320
  %v150 = vsel %vm148, %v34, 0
  %vm152 = vcmask 1046528
  %v154 = vsel %vm152, %v40, 0
  %156 = vmatprep.subr.mxu0 0.0
  %157 = vmatpush1.msra.mxu0 %v154
  %158 = vmatprep.subr.mxu0 0.0
  %159 = vmatpush1.msra.mxu0 0.0
  %160 = vmatprep.subr.mxu0 0.0
  %161 = vmatpush1.msra.mxu0 0.0
  %162 = vmatprep.subr.mxu0 0.0
  %163 = vmatpush1.msra.mxu0 0.0
  %164 = vmatprep.subr.mxu0 0.0
  %165 = vmatpush1.msra.mxu0 0.0
  %166 = vmatprep.subr.mxu0 0.0
  %167 = vmatpush1.msra.mxu0 0.0
  %168 = vmatprep.subr.mxu0 0.0
  %169 = vmatpush1.msra.mxu0 0.0
  %170 = vmatprep.subr.mxu0 0.0
  %171 = vmatpush1.msra.mxu0 0.0
  %172 = vmatprep.subr.mxu0 0.0
  %173 = vmatpush1.msra.mxu0 0.0
  %174 = vmatprep.subr.mxu0 0.0
  %175 = vmatpush1.msra.mxu0 0.0
  %176 = vmatprep.subr.mxu0 0.0
  %177 = vmatpush1.msra.mxu0 0.0
  %178 = vmatprep.subr.mxu0 0.0
  %179 = vmatpush1.msra.mxu0 0.0
  %180 = vmatprep.subr.mxu0 0.0
  %181 = vmatpush1.msra.mxu0 0.0
  %182 = vmatprep.subr.mxu0 0.0
  %183 = vmatpush1.msra.mxu0 0.0
  %184 = vmatprep.subr.mxu0 0.0
  %185 = vmatpush1.msra.mxu0 0.0
  %186 = vmatprep.subr.mxu0 0.0
  %187 = vmatpush1.msra.mxu0 0.0
  %188 = vmatprep.subr.mxu0 0.0
  %189 = vmatpush1.msra.mxu0 0.0
  %190 = vmatprep.subr.mxu0 0.0
  %191 = vmatpush1.msra.mxu0 0.0
  %192 = vmatprep.subr.mxu0 0.0
  %193 = vmatpush1.msra.mxu0 0.0
  %194 = vmatprep.subr.mxu0 0.0
  %195 = vmatpush1.msra.mxu0 0.0
  %196 = vmatprep.subr.mxu0 0.0
  %197 = vmatpush1.msra.mxu0 0.0
  %198 = vmatprep.subr.mxu0 0.0
  %199 = vmatpush1.msra.mxu0 0.0
  %200 = vmatprep.subr.mxu0 0.0
  %201 = vmatpush1.msra.mxu0 0.0
  %202 = vmatprep.subr.mxu0 0.0
  %203 = vmatpush1.msra.mxu0 0.0
  %204 = vmatprep.subr.mxu0 0.0
  %205 = vmatpush1.msra.mxu0 0.0
  %206 = vmatprep.subr.mxu0 0.0
  %207 = vmatpush1.msra.mxu0 0.0
  %208 = vmatprep.subr.mxu0 0.0
  %209 = vmatpush1.msra.mxu0 0.0
  %210 = vmatprep.subr.mxu0 0.0
  %211 = vmatpush1.msra.mxu0 0.0
  %212 = vmatprep.subr.mxu0 0.0
  %213 = vmatpush1.msra.mxu0 0.0
  %214 = vmatprep.subr.mxu0 0.0
  %215 = vmatpush1.msra.mxu0 0.0
  %216 = vmatprep.subr.mxu0 0.0
  %217 = vmatpush1.msra.mxu0 0.0
  %218 = vmatprep.subr.mxu0 0.0
  %219 = vmatpush1.msra.mxu0 0.0
  %220 = vmatprep.mubr.f32.mxu0 0.0
  %221 = vmatmul.mubr.f32.gmra.mrb[0].mxu0 %v150
  %v222 = vpop.f32.mrb[0].mxu0
  %v223 = vadd.f32 %v91, %v222
  %v224 = vpop.f32.mrb[0].mxu0
  %225 = vdwg.mxu0
  %v227 = vsel %vm152, %v41, 0
  %229 = vmatprep.subr.mxu0 0.0
  %230 = vmatpush1.msra.mxu0 %v227
  %231 = vmatprep.subr.mxu0 0.0
  %232 = vmatpush1.msra.mxu0 0.0
  %233 = vmatprep.subr.mxu0 0.0
  %234 = vmatpush1.msra.mxu0 0.0
  %235 = vmatprep.subr.mxu0 0.0
  %236 = vmatpush1.msra.mxu0 0.0
  %237 = vmatprep.subr.mxu0 0.0
  %238 = vmatpush1.msra.mxu0 0.0
  %239 = vmatprep.subr.mxu0 0.0
  %240 = vmatpush1.msra.mxu0 0.0
  %241 = vmatprep.subr.mxu0 0.0
  %242 = vmatpush1.msra.mxu0 0.0
  %243 = vmatprep.subr.mxu0 0.0
  %244 = vmatpush1.msra.mxu0 0.0
  %245 = vmatprep.subr.mxu0 0.0
  %246 = vmatpush1.msra.mxu0 0.0
  %247 = vmatprep.subr.mxu0 0.0
  %248 = vmatpush1.msra.mxu0 0.0
  %249 = vmatprep.subr.mxu0 0.0
  %250 = vmatpush1.msra.mxu0 0.0
  %251 = vmatprep.subr.mxu0 0.0
  %252 = vmatpush1.msra.mxu0 0.0
  %253 = vmatprep.subr.mxu0 0.0
  %254 = vmatpush1.msra.mxu0 0.0
  %255 = vmatprep.subr.mxu0 0.0
  %256 = vmatpush1.msra.mxu0 0.0
  %257 = vmatprep.subr.mxu0 0.0
  %258 = vmatpush1.msra.mxu0 0.0
  %259 = vmatprep.subr.mxu0 0.0
  %260 = vmatpush1.msra.mxu0 0.0
  %261 = vmatprep.subr.mxu0 0.0
  %262 = vmatpush1.msra.mxu0 0.0
  %263 = vmatprep.subr.mxu0 0.0
  %264 = vmatpush1.msra.mxu0 0.0
  %265 = vmatprep.subr.mxu0 0.0
  %266 = vmatpush1.msra.mxu0 0.0
  %267 = vmatprep.subr.mxu0 0.0
  %268 = vmatpush1.msra.mxu0 0.0
  %269 = vmatprep.subr.mxu0 0.0
  %270 = vmatpush1.msra.mxu0 0.0
  %271 = vmatprep.subr.mxu0 0.0
  %272 = vmatpush1.msra.mxu0 0.0
  %273 = vmatprep.subr.mxu0 0.0
  %274 = vmatpush1.msra.mxu0 0.0
  %275 = vmatprep.subr.mxu0 0.0
  %276 = vmatpush1.msra.mxu0 0.0
  %277 = vmatprep.subr.mxu0 0.0
  %278 = vmatpush1.msra.mxu0 0.0
  %279 = vmatprep.subr.mxu0 0.0
  %280 = vmatpush1.msra.mxu0 0.0
  %281 = vmatprep.subr.mxu0 0.0
  %282 = vmatpush1.msra.mxu0 0.0
  %283 = vmatprep.subr.mxu0 0.0
  %284 = vmatpush1.msra.mxu0 0.0
  %285 = vmatprep.subr.mxu0 0.0
  %286 = vmatpush1.msra.mxu0 0.0
  %287 = vmatprep.subr.mxu0 0.0
  %288 = vmatpush1.msra.mxu0 0.0
  %289 = vmatprep.subr.mxu0 0.0
  %290 = vmatpush1.msra.mxu0 0.0
  %291 = vmatprep.subr.mxu0 0.0
  %292 = vmatpush1.msra.mxu0 0.0
  %293 = vmatprep.mubr.f32.mxu0 0.0
  %294 = vmatmul.mubr.f32.gmra.mrb[0].mxu0 %v150
  %v295 = vpop.f32.mrb[0].mxu0
  %v296 = vadd.f32 %v95, %v295
  %v297 = vpop.f32.mrb[0].mxu0
  %298 = vdwg.mxu0
  %v300 = vsel %vm148, %v35, 0
  %v303 = vsel %vm152, %v42, 0
  %305 = vmatprep.subr.mxu0 0.0
  %306 = vmatpush1.msra.mxu0 %v303
  %307 = vmatprep.subr.mxu0 0.0
  %308 = vmatpush1.msra.mxu0 0.0
  %309 = vmatprep.subr.mxu0 0.0
  %310 = vmatpush1.msra.mxu0 0.0
  %311 = vmatprep.subr.mxu0 0.0
  %312 = vmatpush1.msra.mxu0 0.0
  %313 = vmatprep.subr.mxu0 0.0
  %314 = vmatpush1.msra.mxu0 0.0
  %315 = vmatprep.subr.mxu0 0.0
  %316 = vmatpush1.msra.mxu0 0.0
  %317 = vmatprep.subr.mxu0 0.0
  %318 = vmatpush1.msra.mxu0 0.0
  %319 = vmatprep.subr.mxu0 0.0
  %320 = vmatpush1.msra.mxu0 0.0
  %321 = vmatprep.subr.mxu0 0.0
  %322 = vmatpush1.msra.mxu0 0.0
  %323 = vmatprep.subr.mxu0 0.0
  %324 = vmatpush1.msra.mxu0 0.0
  %325 = vmatprep.subr.mxu0 0.0
  %326 = vmatpush1.msra.mxu0 0.0
  %327 = vmatprep.subr.mxu0 0.0
  %328 = vmatpush1.msra.mxu0 0.0
  %329 = vmatprep.subr.mxu0 0.0
  %330 = vmatpush1.msra.mxu0 0.0
  %331 = vmatprep.subr.mxu0 0.0
  %332 = vmatpush1.msra.mxu0 0.0
  %333 = vmatprep.subr.mxu0 0.0
  %334 = vmatpush1.msra.mxu0 0.0
  %335 = vmatprep.subr.mxu0 0.0
  %336 = vmatpush1.msra.mxu0 0.0
  %337 = vmatprep.subr.mxu0 0.0
  %338 = vmatpush1.msra.mxu0 0.0
  %339 = vmatprep.subr.mxu0 0.0
  %340 = vmatpush1.msra.mxu0 0.0
  %341 = vmatprep.subr.mxu0 0.0
  %342 = vmatpush1.msra.mxu0 0.0
  %343 = vmatprep.subr.mxu0 0.0
  %344 = vmatpush1.msra.mxu0 0.0
  %345 = vmatprep.subr.mxu0 0.0
  %346 = vmatpush1.msra.mxu0 0.0
  %347 = vmatprep.subr.mxu0 0.0
  %348 = vmatpush1.msra.mxu0 0.0
  %349 = vmatprep.subr.mxu0 0.0
  %350 = vmatpush1.msra.mxu0 0.0
  %351 = vmatprep.subr.mxu0 0.0
  %352 = vmatpush1.msra.mxu0 0.0
  %353 = vmatprep.subr.mxu0 0.0
  %354 = vmatpush1.msra.mxu0 0.0
  %355 = vmatprep.subr.mxu0 0.0
  %356 = vmatpush1.msra.mxu0 0.0
  %357 = vmatprep.subr.mxu0 0.0
  %358 = vmatpush1.msra.mxu0 0.0
  %359 = vmatprep.subr.mxu0 0.0
  %360 = vmatpush1.msra.mxu0 0.0
  %361 = vmatprep.subr.mxu0 0.0
  %362 = vmatpush1.msra.mxu0 0.0
  %363 = vmatprep.subr.mxu0 0.0
  %364 = vmatpush1.msra.mxu0 0.0
  %365 = vmatprep.subr.mxu0 0.0
  %366 = vmatpush1.msra.mxu0 0.0
  %367 = vmatprep.subr.mxu0 0.0
  %368 = vmatpush1.msra.mxu0 0.0
  %369 = vmatprep.mubr.f32.mxu0 0.0
  %370 = vmatmul.mubr.f32.gmra.mrb[0].mxu0 %v300
  %v371 = vpop.f32.mrb[0].mxu0
  %v372 = vadd.f32 %v99, %v371
  %v373 = vpop.f32.mrb[0].mxu0
  %374 = vdwg.mxu0
  %v376 = vsel %vm152, %v43, 0
  %378 = vmatprep.subr.mxu0 0.0
  %379 = vmatpush1.msra.mxu0 %v376
  %380 = vmatprep.subr.mxu0 0.0
  %381 = vmatpush1.msra.mxu0 0.0
  %382 = vmatprep.subr.mxu0 0.0
  %383 = vmatpush1.msra.mxu0 0.0
  %384 = vmatprep.subr.mxu0 0.0
  %385 = vmatpush1.msra.mxu0 0.0
  %386 = vmatprep.subr.mxu0 0.0
  %387 = vmatpush1.msra.mxu0 0.0
  %388 = vmatprep.subr.mxu0 0.0
  %389 = vmatpush1.msra.mxu0 0.0
  %390 = vmatprep.subr.mxu0 0.0
  %391 = vmatpush1.msra.mxu0 0.0
  %392 = vmatprep.subr.mxu0 0.0
  %393 = vmatpush1.msra.mxu0 0.0
  %394 = vmatprep.subr.mxu0 0.0
  %395 = vmatpush1.msra.mxu0 0.0
  %396 = vmatprep.subr.mxu0 0.0
  %397 = vmatpush1.msra.mxu0 0.0
  %398 = vmatprep.subr.mxu0 0.0
  %399 = vmatpush1.msra.mxu0 0.0
  %400 = vmatprep.subr.mxu0 0.0
  %401 = vmatpush1.msra.mxu0 0.0
  %402 = vmatprep.subr.mxu0 0.0
  %403 = vmatpush1.msra.mxu0 0.0
  %404 = vmatprep.subr.mxu0 0.0
  %405 = vmatpush1.msra.mxu0 0.0
  %406 = vmatprep.subr.mxu0 0.0
  %407 = vmatpush1.msra.mxu0 0.0
  %408 = vmatprep.subr.mxu0 0.0
  %409 = vmatpush1.msra.mxu0 0.0
  %410 = vmatprep.subr.mxu0 0.0
  %411 = vmatpush1.msra.mxu0 0.0
  %412 = vmatprep.subr.mxu0 0.0
  %413 = vmatpush1.msra.mxu0 0.0
  %414 = vmatprep.subr.mxu0 0.0
  %415 = vmatpush1.msra.mxu0 0.0
  %416 = vmatprep.subr.mxu0 0.0
  %417 = vmatpush1.msra.mxu0 0.0
  %418 = vmatprep.subr.mxu0 0.0
  %419 = vmatpush1.msra.mxu0 0.0
  %420 = vmatprep.subr.mxu0 0.0
  %421 = vmatpush1.msra.mxu0 0.0
  %422 = vmatprep.subr.mxu0 0.0
  %423 = vmatpush1.msra.mxu0 0.0
  %424 = vmatprep.subr.mxu0 0.0
  %425 = vmatpush1.msra.mxu0 0.0
  %426 = vmatprep.subr.mxu0 0.0
  %427 = vmatpush1.msra.mxu0 0.0
  %428 = vmatprep.subr.mxu0 0.0
  %429 = vmatpush1.msra.mxu0 0.0
  %430 = vmatprep.subr.mxu0 0.0
  %431 = vmatpush1.msra.mxu0 0.0
  %432 = vmatprep.subr.mxu0 0.0
  %433 = vmatpush1.msra.mxu0 0.0
  %434 = vmatprep.subr.mxu0 0.0
  %435 = vmatpush1.msra.mxu0 0.0
  %436 = vmatprep.subr.mxu0 0.0
  %437 = vmatpush1.msra.mxu0 0.0
  %438 = vmatprep.subr.mxu0 0.0
  %439 = vmatpush1.msra.mxu0 0.0
  %440 = vmatprep.subr.mxu0 0.0
  %441 = vmatpush1.msra.mxu0 0.0
  %442 = vmatprep.mubr.f32.mxu0 0.0
  %443 = vmatmul.mubr.f32.gmra.mrb[0].mxu0 %v300
  %v444 = vpop.f32.mrb[0].mxu0
  %v445 = vadd.f32 %v103, %v444
  %v446 = vpop.f32.mrb[0].mxu0
  %447 = vdwg.mxu0
  %v449 = vsel %vm152, %v44, 0
  %451 = vmatprep.subr.mxu0 0.0
  %452 = vmatpush1.msra.mxu0 %v449
  %453 = vmatprep.subr.mxu0 0.0
  %454 = vmatpush1.msra.mxu0 0.0
  %455 = vmatprep.subr.mxu0 0.0
  %456 = vmatpush1.msra.mxu0 0.0
  %457 = vmatprep.subr.mxu0 0.0
  %458 = vmatpush1.msra.mxu0 0.0
  %459 = vmatprep.subr.mxu0 0.0
  %460 = vmatpush1.msra.mxu0 0.0
  %461 = vmatprep.subr.mxu0 0.0
  %462 = vmatpush1.msra.mxu0 0.0
  %463 = vmatprep.subr.mxu0 0.0
  %464 = vmatpush1.msra.mxu0 0.0
  %465 = vmatprep.subr.mxu0 0.0
  %466 = vmatpush1.msra.mxu0 0.0
  %467 = vmatprep.subr.mxu0 0.0
  %468 = vmatpush1.msra.mxu0 0.0
  %469 = vmatprep.subr.mxu0 0.0
  %470 = vmatpush1.msra.mxu0 0.0
  %471 = vmatprep.subr.mxu0 0.0
  %472 = vmatpush1.msra.mxu0 0.0
  %473 = vmatprep.subr.mxu0 0.0
  %474 = vmatpush1.msra.mxu0 0.0
  %475 = vmatprep.subr.mxu0 0.0
  %476 = vmatpush1.msra.mxu0 0.0
  %477 = vmatprep.subr.mxu0 0.0
  %478 = vmatpush1.msra.mxu0 0.0
  %479 = vmatprep.subr.mxu0 0.0
  %480 = vmatpush1.msra.mxu0 0.0
  %481 = vmatprep.subr.mxu0 0.0
  %482 = vmatpush1.msra.mxu0 0.0
  %483 = vmatprep.subr.mxu0 0.0
  %484 = vmatpush1.msra.mxu0 0.0
  %485 = vmatprep.subr.mxu0 0.0
  %486 = vmatpush1.msra.mxu0 0.0
  %487 = vmatprep.subr.mxu0 0.0
  %488 = vmatpush1.msra.mxu0 0.0
  %489 = vmatprep.subr.mxu0 0.0
  %490 = vmatpush1.msra.mxu0 0.0
  %491 = vmatprep.subr.mxu0 0.0
  %492 = vmatpush1.msra.mxu0 0.0
  %493 = vmatprep.subr.mxu0 0.0
  %494 = vmatpush1.msra.mxu0 0.0
  %495 = vmatprep.subr.mxu0 0.0
  %496 = vmatpush1.msra.mxu0 0.0
  %497 = vmatprep.subr.mxu0 0.0
  %498 = vmatpush1.msra.mxu0 0.0
  %499 = vmatprep.subr.mxu0 0.0
  %500 = vmatpush1.msra.mxu0 0.0
  %501 = vmatprep.subr.mxu0 0.0
  %502 = vmatpush1.msra.mxu0 0.0
  %503 = vmatprep.subr.mxu0 0.0
  %504 = vmatpush1.msra.mxu0 0.0
  %505 = vmatprep.subr.mxu0 0.0
  %506 = vmatpush1.msra.mxu0 0.0
  %507 = vmatprep.subr.mxu0 0.0
  %508 = vmatpush1.msra.mxu0 0.0
  %509 = vmatprep.subr.mxu0 0.0
  %510 = vmatpush1.msra.mxu0 0.0
  %511 = vmatprep.subr.mxu0 0.0
  %512 = vmatpush1.msra.mxu0 0.0
  %513 = vmatprep.subr.mxu0 0.0
  %514 = vmatpush1.msra.mxu0 0.0
  %515 = vmatprep.mubr.f32.mxu0 0.0
  %516 = vmatmul.mubr.f32.gmra.mrb[0].mxu0 %v150
  %v517 = vpop.f32.mrb[0].mxu0
  %v518 = vadd.f32 %v107, %v517
  %v519 = vpop.f32.mrb[0].mxu0
  %520 = vdwg.mxu0
  %v522 = vsel %vm152, %v45, 0
  %524 = vmatprep.subr.mxu0 0.0
  %525 = vmatpush1.msra.mxu0 %v522
  %526 = vmatprep.subr.mxu0 0.0
  %527 = vmatpush1.msra.mxu0 0.0
  %528 = vmatprep.subr.mxu0 0.0
  %529 = vmatpush1.msra.mxu0 0.0
  %530 = vmatprep.subr.mxu0 0.0
  %531 = vmatpush1.msra.mxu0 0.0
  %532 = vmatprep.subr.mxu0 0.0
  %533 = vmatpush1.msra.mxu0 0.0
  %534 = vmatprep.subr.mxu0 0.0
  %535 = vmatpush1.msra.mxu0 0.0
  %536 = vmatprep.subr.mxu0 0.0
  %537 = vmatpush1.msra.mxu0 0.0
  %538 = vmatprep.subr.mxu0 0.0
  %539 = vmatpush1.msra.mxu0 0.0
  %540 = vmatprep.subr.mxu0 0.0
  %541 = vmatpush1.msra.mxu0 0.0
  %542 = vmatprep.subr.mxu0 0.0
  %543 = vmatpush1.msra.mxu0 0.0
  %544 = vmatprep.subr.mxu0 0.0
  %545 = vmatpush1.msra.mxu0 0.0
  %546 = vmatprep.subr.mxu0 0.0
  %547 = vmatpush1.msra.mxu0 0.0
  %548 = vmatprep.subr.mxu0 0.0
  %549 = vmatpush1.msra.mxu0 0.0
  %550 = vmatprep.subr.mxu0 0.0
  %551 = vmatpush1.msra.mxu0 0.0
  %552 = vmatprep.subr.mxu0 0.0
  %553 = vmatpush1.msra.mxu0 0.0
  %554 = vmatprep.subr.mxu0 0.0
  %555 = vmatpush1.msra.mxu0 0.0
  %556 = vmatprep.subr.mxu0 0.0
  %557 = vmatpush1.msra.mxu0 0.0
  %558 = vmatprep.subr.mxu0 0.0
  %559 = vmatpush1.msra.mxu0 0.0
  %560 = vmatprep.subr.mxu0 0.0
  %561 = vmatpush1.msra.mxu0 0.0
  %562 = vmatprep.subr.mxu0 0.0
  %563 = vmatpush1.msra.mxu0 0.0
  %564 = vmatprep.subr.mxu0 0.0
  %565 = vmatpush1.msra.mxu0 0.0
  %566 = vmatprep.subr.mxu0 0.0
  %567 = vmatpush1.msra.mxu0 0.0
  %568 = vmatprep.subr.mxu0 0.0
  %569 = vmatpush1.msra.mxu0 0.0
  %570 = vmatprep.subr.mxu0 0.0
  %571 = vmatpush1.msra.mxu0 0.0
  %572 = vmatprep.subr.mxu0 0.0
  %573 = vmatpush1.msra.mxu0 0.0
  %574 = vmatprep.subr.mxu0 0.0
  %575 = vmatpush1.msra.mxu0 0.0
  %576 = vmatprep.subr.mxu0 0.0
  %577 = vmatpush1.msra.mxu0 0.0
  %578 = vmatprep.subr.mxu0 0.0
  %579 = vmatpush1.msra.mxu0 0.0
  %580 = vmatprep.subr.mxu0 0.0
  %581 = vmatpush1.msra.mxu0 0.0
  %582 = vmatprep.subr.mxu0 0.0
  %583 = vmatpush1.msra.mxu0 0.0
  %584 = vmatprep.subr.mxu0 0.0
  %585 = vmatpush1.msra.mxu0 0.0
  %586 = vmatprep.subr.mxu0 0.0
  %587 = vmatpush1.msra.mxu0 0.0
  %588 = vmatprep.mubr.f32.mxu0 0.0
  %589 = vmatmul.mubr.f32.gmra.mrb[0].mxu0 %v150
  %v590 = vpop.f32.mrb[0].mxu0
  %v591 = vadd.f32 %v111, %v590
  %v592 = vpop.f32.mrb[0].mxu0
  %593 = vdwg.mxu0
  %v595 = vsel %vm152, %v46, 0
  %597 = vmatprep.subr.mxu0 0.0
  %598 = vmatpush1.msra.mxu0 %v595
  %599 = vmatprep.subr.mxu0 0.0
  %600 = vmatpush1.msra.mxu0 0.0
  %601 = vmatprep.subr.mxu0 0.0
  %602 = vmatpush1.msra.mxu0 0.0
  %603 = vmatprep.subr.mxu0 0.0
  %604 = vmatpush1.msra.mxu0 0.0
  %605 = vmatprep.subr.mxu0 0.0
  %606 = vmatpush1.msra.mxu0 0.0
  %607 = vmatprep.subr.mxu0 0.0
  %608 = vmatpush1.msra.mxu0 0.0
  %609 = vmatprep.subr.mxu0 0.0
  %610 = vmatpush1.msra.mxu0 0.0
  %611 = vmatprep.subr.mxu0 0.0
  %612 = vmatpush1.msra.mxu0 0.0
  %613 = vmatprep.subr.mxu0 0.0
  %614 = vmatpush1.msra.mxu0 0.0
  %615 = vmatprep.subr.mxu0 0.0
  %616 = vmatpush1.msra.mxu0 0.0
  %617 = vmatprep.subr.mxu0 0.0
  %618 = vmatpush1.msra.mxu0 0.0
  %619 = vmatprep.subr.mxu0 0.0
  %620 = vmatpush1.msra.mxu0 0.0
  %621 = vmatprep.subr.mxu0 0.0
  %622 = vmatpush1.msra.mxu0 0.0
  %623 = vmatprep.subr.mxu0 0.0
  %624 = vmatpush1.msra.mxu0 0.0
  %625 = vmatprep.subr.mxu0 0.0
  %626 = vmatpush1.msra.mxu0 0.0
  %627 = vmatprep.subr.mxu0 0.0
  %628 = vmatpush1.msra.mxu0 0.0
  %629 = vmatprep.subr.mxu0 0.0
  %630 = vmatpush1.msra.mxu0 0.0
  %631 = vmatprep.subr.mxu0 0.0
  %632 = vmatpush1.msra.mxu0 0.0
  %633 = vmatprep.subr.mxu0 0.0
  %634 = vmatpush1.msra.mxu0 0.0
  %635 = vmatprep.subr.mxu0 0.0
  %636 = vmatpush1.msra.mxu0 0.0
  %637 = vmatprep.subr.mxu0 0.0
  %638 = vmatpush1.msra.mxu0 0.0
  %639 = vmatprep.subr.mxu0 0.0
  %640 = vmatpush1.msra.mxu0 0.0
  %641 = vmatprep.subr.mxu0 0.0
  %642 = vmatpush1.msra.mxu0 0.0
  %643 = vmatprep.subr.mxu0 0.0
  %644 = vmatpush1.msra.mxu0 0.0
  %645 = vmatprep.subr.mxu0 0.0
  %646 = vmatpush1.msra.mxu0 0.0
  %647 = vmatprep.subr.mxu0 0.0
  %648 = vmatpush1.msra.mxu0 0.0
  %649 = vmatprep.subr.mxu0 0.0
  %650 = vmatpush1.msra.mxu0 0.0
  %651 = vmatprep.subr.mxu0 0.0
  %652 = vmatpush1.msra.mxu0 0.0
  %653 = vmatprep.subr.mxu0 0.0
  %654 = vmatpush1.msra.mxu0 0.0
  %655 = vmatprep.subr.mxu0 0.0
  %656 = vmatpush1.msra.mxu0 0.0
  %657 = vmatprep.subr.mxu0 0.0
  %658 = vmatpush1.msra.mxu0 0.0
  %659 = vmatprep.subr.mxu0 0.0
  %660 = vmatpush1.msra.mxu0 0.0
  %661 = vmatprep.mubr.f32.mxu0 0.0
  %662 = vmatmul.mubr.f32.gmra.mrb[0].mxu0 %v300
  %v663 = vpop.f32.mrb[0].mxu0
  %v664 = vadd.f32 %v115, %v663
  %v665 = vpop.f32.mrb[0].mxu0
  %666 = vdwg.mxu0
  %v668 = vsel %vm152, %v47, 0
  %670 = vmatprep.subr.mxu0 0.0
  %671 = vmatpush1.msra.mxu0 %v668
  %672 = vmatprep.subr.mxu0 0.0
  %673 = vmatpush1.msra.mxu0 0.0
  %674 = vmatprep.subr.mxu0 0.0
  %675 = vmatpush1.msra.mxu0 0.0
  %676 = vmatprep.subr.mxu0 0.0
  %677 = vmatpush1.msra.mxu0 0.0
  %678 = vmatprep.subr.mxu0 0.0
  %679 = vmatpush1.msra.mxu0 0.0
  %680 = vmatprep.subr.mxu0 0.0
  %681 = vmatpush1.msra.mxu0 0.0
  %682 = vmatprep.subr.mxu0 0.0
  %683 = vmatpush1.msra.mxu0 0.0
  %684 = vmatprep.subr.mxu0 0.0
  %685 = vmatpush1.msra.mxu0 0.0
  %686 = vmatprep.subr.mxu0 0.0
  %687 = vmatpush1.msra.mxu0 0.0
  %688 = vmatprep.subr.mxu0 0.0
  %689 = vmatpush1.msra.mxu0 0.0
  %690 = vmatprep.subr.mxu0 0.0
  %691 = vmatpush1.msra.mxu0 0.0
  %692 = vmatprep.subr.mxu0 0.0
  %693 = vmatpush1.msra.mxu0 0.0
  %694 = vmatprep.subr.mxu0 0.0
  %695 = vmatpush1.msra.mxu0 0.0
  %696 = vmatprep.subr.mxu0 0.0
  %697 = vmatpush1.msra.mxu0 0.0
  %698 = vmatprep.subr.mxu0 0.0
  %699 = vmatpush1.msra.mxu0 0.0
  %700 = vmatprep.subr.mxu0 0.0
  %701 = vmatpush1.msra.mxu0 0.0
  %702 = vmatprep.subr.mxu0 0.0
  %703 = vmatpush1.msra.mxu0 0.0
  %704 = vmatprep.subr.mxu0 0.0
  %705 = vmatpush1.msra.mxu0 0.0
  %706 = vmatprep.subr.mxu0 0.0
  %707 = vmatpush1.msra.mxu0 0.0
  %708 = vmatprep.subr.mxu0 0.0
  %709 = vmatpush1.msra.mxu0 0.0
  %710 = vmatprep.subr.mxu0 0.0
  %711 = vmatpush1.msra.mxu0 0.0
  %712 = vmatprep.subr.mxu0 0.0
  %713 = vmatpush1.msra.mxu0 0.0
  %714 = vmatprep.subr.mxu0 0.0
  %715 = vmatpush1.msra.mxu0 0.0
  %716 = vmatprep.subr.mxu0 0.0
  %717 = vmatpush1.msra.mxu0 0.0
  %718 = vmatprep.subr.mxu0 0.0
  %719 = vmatpush1.msra.mxu0 0.0
  %720 = vmatprep.subr.mxu0 0.0
  %721 = vmatpush1.msra.mxu0 0.0
  %722 = vmatprep.subr.mxu0 0.0
  %723 = vmatpush1.msra.mxu0 0.0
  %724 = vmatprep.subr.mxu0 0.0
  %725 = vmatpush1.msra.mxu0 0.0
  %726 = vmatprep.subr.mxu0 0.0
  %727 = vmatpush1.msra.mxu0 0.0
  %728 = vmatprep.subr.mxu0 0.0
  %729 = vmatpush1.msra.mxu0 0.0
  %730 = vmatprep.subr.mxu0 0.0
  %731 = vmatpush1.msra.mxu0 0.0
  %732 = vmatprep.subr.mxu0 0.0
  %733 = vmatpush1.msra.mxu0 0.0
  %734 = vmatprep.mubr.f32.mxu0 0.0
  %735 = vmatmul.mubr.f32.gmra.mrb[0].mxu0 %v300
  %v736 = vpop.f32.mrb[0].mxu0
  %v737 = vadd.f32 %v119, %v736
  %v738 = vpop.f32.mrb[0].mxu0
  %739 = vdwg.mxu0
  %v741 = vsel %vm152, %v48, 0
  %743 = vmatprep.subr.mxu0 0.0
  %744 = vmatpush1.msra.mxu0 %v741
  %745 = vmatprep.subr.mxu0 0.0
  %746 = vmatpush1.msra.mxu0 0.0
  %747 = vmatprep.subr.mxu0 0.0
  %748 = vmatpush1.msra.mxu0 0.0
  %749 = vmatprep.subr.mxu0 0.0
  %750 = vmatpush1.msra.mxu0 0.0
  %751 = vmatprep.subr.mxu0 0.0
  %752 = vmatpush1.msra.mxu0 0.0
  %753 = vmatprep.subr.mxu0 0.0
  %754 = vmatpush1.msra.mxu0 0.0
  %755 = vmatprep.subr.mxu0 0.0
  %756 = vmatpush1.msra.mxu0 0.0
  %757 = vmatprep.subr.mxu0 0.0
  %758 = vmatpush1.msra.mxu0 0.0
  %759 = vmatprep.subr.mxu0 0.0
  %760 = vmatpush1.msra.mxu0 0.0
  %761 = vmatprep.subr.mxu0 0.0
  %762 = vmatpush1.msra.mxu0 0.0
  %763 = vmatprep.subr.mxu0 0.0
  %764 = vmatpush1.msra.mxu0 0.0
  %765 = vmatprep.subr.mxu0 0.0
  %766 = vmatpush1.msra.mxu0 0.0
  %767 = vmatprep.subr.mxu0 0.0
  %768 = vmatpush1.msra.mxu0 0.0
  %769 = vmatprep.subr.mxu0 0.0
  %770 = vmatpush1.msra.mxu0 0.0
  %771 = vmatprep.subr.mxu0 0.0
  %772 = vmatpush1.msra.mxu0 0.0
  %773 = vmatprep.subr.mxu0 0.0
  %774 = vmatpush1.msra.mxu0 0.0
  %775 = vmatprep.subr.mxu0 0.0
  %776 = vmatpush1.msra.mxu0 0.0
  %777 = vmatprep.subr.mxu0 0.0
  %778 = vmatpush1.msra.mxu0 0.0
  %779 = vmatprep.subr.mxu0 0.0
  %780 = vmatpush1.msra.mxu0 0.0
  %781 = vmatprep.subr.mxu0 0.0
  %782 = vmatpush1.msra.mxu0 0.0
  %783 = vmatprep.subr.mxu0 0.0
  %784 = vmatpush1.msra.mxu0 0.0
  %785 = vmatprep.subr.mxu0 0.0
  %786 = vmatpush1.msra.mxu0 0.0
  %787 = vmatprep.subr.mxu0 0.0
  %788 = vmatpush1.msra.mxu0 0.0
  %789 = vmatprep.subr.mxu0 0.0
  %790 = vmatpush1.msra.mxu0 0.0
  %791 = vmatprep.subr.mxu0 0.0
  %792 = vmatpush1.msra.mxu0 0.0
  %793 = vmatprep.subr.mxu0 0.0
  %794 = vmatpush1.msra.mxu0 0.0
  %795 = vmatprep.subr.mxu0 0.0
  %796 = vmatpush1.msra.mxu0 0.0
  %797 = vmatprep.subr.mxu0 0.0
  %798 = vmatpush1.msra.mxu0 0.0
  %799 = vmatprep.subr.mxu0 0.0
  %800 = vmatpush1.msra.mxu0 0.0
  %801 = vmatprep.subr.mxu0 0.0
  %802 = vmatpush1.msra.mxu0 0.0
  %803 = vmatprep.subr.mxu0 0.0
  %804 = vmatpush1.msra.mxu0 0.0
  %805 = vmatprep.subr.mxu0 0.0
  %806 = vmatpush1.msra.mxu0 0.0
  %807 = vmatprep.mubr.f32.mxu0 0.0
  %808 = vmatmul.mubr.f32.gmra.mrb[0].mxu0 %v150
  %v809 = vpop.f32.mrb[0].mxu0
  %v810 = vadd.f32 %v123, %v809
  %v811 = vpop.f32.mrb[0].mxu0
  %812 = vdwg.mxu0
  %v814 = vsel %vm152, %v49, 0
  %816 = vmatprep.subr.mxu0 0.0
  %817 = vmatpush1.msra.mxu0 %v814
  %818 = vmatprep.subr.mxu0 0.0
  %819 = vmatpush1.msra.mxu0 0.0
  %820 = vmatprep.subr.mxu0 0.0
  %821 = vmatpush1.msra.mxu0 0.0
  %822 = vmatprep.subr.mxu0 0.0
  %823 = vmatpush1.msra.mxu0 0.0
  %824 = vmatprep.subr.mxu0 0.0
  %825 = vmatpush1.msra.mxu0 0.0
  %826 = vmatprep.subr.mxu0 0.0
  %827 = vmatpush1.msra.mxu0 0.0
  %828 = vmatprep.subr.mxu0 0.0
  %829 = vmatpush1.msra.mxu0 0.0
  %830 = vmatprep.subr.mxu0 0.0
  %831 = vmatpush1.msra.mxu0 0.0
  %832 = vmatprep.subr.mxu0 0.0
  %833 = vmatpush1.msra.mxu0 0.0
  %834 = vmatprep.subr.mxu0 0.0
  %835 = vmatpush1.msra.mxu0 0.0
  %836 = vmatprep.subr.mxu0 0.0
  %837 = vmatpush1.msra.mxu0 0.0
  %838 = vmatprep.subr.mxu0 0.0
  %839 = vmatpush1.msra.mxu0 0.0
  %840 = vmatprep.subr.mxu0 0.0
  %841 = vmatpush1.msra.mxu0 0.0
  %842 = vmatprep.subr.mxu0 0.0
  %843 = vmatpush1.msra.mxu0 0.0
  %844 = vmatprep.subr.mxu0 0.0
  %845 = vmatpush1.msra.mxu0 0.0
  %846 = vmatprep.subr.mxu0 0.0
  %847 = vmatpush1.msra.mxu0 0.0
  %848 = vmatprep.subr.mxu0 0.0
  %849 = vmatpush1.msra.mxu0 0.0
  %850 = vmatprep.subr.mxu0 0.0
  %851 = vmatpush1.msra.mxu0 0.0
  %852 = vmatprep.subr.mxu0 0.0
  %853 = vmatpush1.msra.mxu0 0.0
  %854 = vmatprep.subr.mxu0 0.0
  %855 = vmatpush1.msra.mxu0 0.0
  %856 = vmatprep.subr.mxu0 0.0
  %857 = vmatpush1.msra.mxu0 0.0
  %858 = vmatprep.subr.mxu0 0.0
  %859 = vmatpush1.msra.mxu0 0.0
  %860 = vmatprep.subr.mxu0 0.0
  %861 = vmatpush1.msra.mxu0 0.0
  %862 = vmatprep.subr.mxu0 0.0
  %863 = vmatpush1.msra.mxu0 0.0
  %864 = vmatprep.subr.mxu0 0.0
  %865 = vmatpush1.msra.mxu0 0.0
  %866 = vmatprep.subr.mxu0 0.0
  %867 = vmatpush1.msra.mxu0 0.0
  %868 = vmatprep.subr.mxu0 0.0
  %869 = vmatpush1.msra.mxu0 0.0
  %870 = vmatprep.subr.mxu0 0.0
  %871 = vmatpush1.msra.mxu0 0.0
  %872 = vmatprep.subr.mxu0 0.0
  %873 = vmatpush1.msra.mxu0 0.0
  %874 = vmatprep.subr.mxu0 0.0
  %875 = vmatpush1.msra.mxu0 0.0
  %876 = vmatprep.subr.mxu0 0.0
  %877 = vmatpush1.msra.mxu0 0.0
  %878 = vmatprep.subr.mxu0 0.0
  %879 = vmatpush1.msra.mxu0 0.0
  %880 = vmatprep.mubr.f32.mxu0 0.0
  %881 = vmatmul.mubr.f32.gmra.mrb[0].mxu0 %v150
  %v882 = vpop.f32.mrb[0].mxu0
  %v883 = vadd.f32 %v127, %v882
  %v884 = vpop.f32.mrb[0].mxu0
  %885 = vdwg.mxu0
  %v887 = vsel %vm152, %v50, 0
  %889 = vmatprep.subr.mxu0 0.0
  %890 = vmatpush1.msra.mxu0 %v887
  %891 = vmatprep.subr.mxu0 0.0
  %892 = vmatpush1.msra.mxu0 0.0
  %893 = vmatprep.subr.mxu0 0.0
  %894 = vmatpush1.msra.mxu0 0.0
  %895 = vmatprep.subr.mxu0 0.0
  %896 = vmatpush1.msra.mxu0 0.0
  %897 = vmatprep.subr.mxu0 0.0
  %898 = vmatpush1.msra.mxu0 0.0
  %899 = vmatprep.subr.mxu0 0.0
  %900 = vmatpush1.msra.mxu0 0.0
  %901 = vmatprep.subr.mxu0 0.0
  %902 = vmatpush1.msra.mxu0 0.0
  %903 = vmatprep.subr.mxu0 0.0
  %904 = vmatpush1.msra.mxu0 0.0
  %905 = vmatprep.subr.mxu0 0.0
  %906 = vmatpush1.msra.mxu0 0.0
  %907 = vmatprep.subr.mxu0 0.0
  %908 = vmatpush1.msra.mxu0 0.0
  %909 = vmatprep.subr.mxu0 0.0
  %910 = vmatpush1.msra.mxu0 0.0
  %911 = vmatprep.subr.mxu0 0.0
  %912 = vmatpush1.msra.mxu0 0.0
  %913 = vmatprep.subr.mxu0 0.0
  %914 = vmatpush1.msra.mxu0 0.0
  %915 = vmatprep.subr.mxu0 0.0
  %916 = vmatpush1.msra.mxu0 0.0
  %917 = vmatprep.subr.mxu0 0.0
  %918 = vmatpush1.msra.mxu0 0.0
  %919 = vmatprep.subr.mxu0 0.0
  %920 = vmatpush1.msra.mxu0 0.0
  %921 = vmatprep.subr.mxu0 0.0
  %922 = vmatpush1.msra.mxu0 0.0
  %923 = vmatprep.subr.mxu0 0.0
  %924 = vmatpush1.msra.mxu0 0.0
  %925 = vmatprep.subr.mxu0 0.0
  %926 = vmatpush1.msra.mxu0 0.0
  %927 = vmatprep.subr.mxu0 0.0
  %928 = vmatpush1.msra.mxu0 0.0
  %929 = vmatprep.subr.mxu0 0.0
  %930 = vmatpush1.msra.mxu0 0.0
  %931 = vmatprep.subr.mxu0 0.0
  %932 = vmatpush1.msra.mxu0 0.0
  %933 = vmatprep.subr.mxu0 0.0
  %934 = vmatpush1.msra.mxu0 0.0
  %935 = vmatprep.subr.mxu0 0.0
  %936 = vmatpush1.msra.mxu0 0.0
  %937 = vmatprep.subr.mxu0 0.0
  %938 = vmatpush1.msra.mxu0 0.0
  %939 = vmatprep.subr.mxu0 0.0
  %940 = vmatpush1.msra.mxu0 0.0
  %941 = vmatprep.subr.mxu0 0.0
  %942 = vmatpush1.msra.mxu0 0.0
  %943 = vmatprep.subr.mxu0 0.0
  %944 = vmatpush1.msra.mxu0 0.0
  %945 = vmatprep.subr.mxu0 0.0
  %946 = vmatpush1.msra.mxu0 0.0
  %947 = vmatprep.subr.mxu0 0.0
  %948 = vmatpush1.msra.mxu0 0.0
  %949 = vmatprep.subr.mxu0 0.0
  %950 = vmatpush1.msra.mxu0 0.0
  %951 = vmatprep.subr.mxu0 0.0
  %952 = vmatpush1.msra.mxu0 0.0
  %953 = vmatprep.mubr.f32.mxu0 0.0
  %954 = vmatmul.mubr.f32.gmra.mrb[0].mxu0 %v300
  %v955 = vpop.f32.mrb[0].mxu0
  %v956 = vadd.f32 %v131, %v955
  %v957 = vpop.f32.mrb[0].mxu0
  %958 = vdwg.mxu0
  %v960 = vsel %vm152, %v51, 0
  %962 = vmatprep.subr.mxu0 0.0
  %963 = vmatpush1.msra.mxu0 %v960
  %964 = vmatprep.subr.mxu0 0.0
  %965 = vmatpush1.msra.mxu0 0.0
  %966 = vmatprep.subr.mxu0 0.0
  %967 = vmatpush1.msra.mxu0 0.0
  %968 = vmatprep.subr.mxu0 0.0
  %969 = vmatpush1.msra.mxu0 0.0
  %970 = vmatprep.subr.mxu0 0.0
  %971 = vmatpush1.msra.mxu0 0.0
  %972 = vmatprep.subr.mxu0 0.0
  %973 = vmatpush1.msra.mxu0 0.0
  %974 = vmatprep.subr.mxu0 0.0
  %975 = vmatpush1.msra.mxu0 0.0
  %976 = vmatprep.subr.mxu0 0.0
  %977 = vmatpush1.msra.mxu0 0.0
  %978 = vmatprep.subr.mxu0 0.0
  %979 = vmatpush1.msra.mxu0 0.0
  %980 = vmatprep.subr.mxu0 0.0
  %981 = vmatpush1.msra.mxu0 0.0
  %982 = vmatprep.subr.mxu0 0.0
  %983 = vmatpush1.msra.mxu0 0.0
  %984 = vmatprep.subr.mxu0 0.0
  %985 = vmatpush1.msra.mxu0 0.0
  %986 = vmatprep.subr.mxu0 0.0
  %987 = vmatpush1.msra.mxu0 0.0
  %988 = vmatprep.subr.mxu0 0.0
  %989 = vmatpush1.msra.mxu0 0.0
  %990 = vmatprep.subr.mxu0 0.0
  %991 = vmatpush1.msra.mxu0 0.0
  %992 = vmatprep.subr.mxu0 0.0
  %993 = vmatpush1.msra.mxu0 0.0
  %994 = vmatprep.subr.mxu0 0.0
  %995 = vmatpush1.msra.mxu0 0.0
  %996 = vmatprep.subr.mxu0 0.0
  %997 = vmatpush1.msra.mxu0 0.0
  %998 = vmatprep.subr.mxu0 0.0
  %999 = vmatpush1.msra.mxu0 0.0
  %1000 = vmatprep.subr.mxu0 0.0
  %1001 = vmatpush1.msra.mxu0 0.0
  %1002 = vmatprep.subr.mxu0 0.0
  %1003 = vmatpush1.msra.mxu0 0.0
  %1004 = vmatprep.subr.mxu0 0.0
  %1005 = vmatpush1.msra.mxu0 0.0
  %1006 = vmatprep.subr.mxu0 0.0
  %1007 = vmatpush1.msra.mxu0 0.0
  %1008 = vmatprep.subr.mxu0 0.0
  %1009 = vmatpush1.msra.mxu0 0.0
  %1010 = vmatprep.subr.mxu0 0.0
  %1011 = vmatpush1.msra.mxu0 0.0
  %1012 = vmatprep.subr.mxu0 0.0
  %1013 = vmatpush1.msra.mxu0 0.0
  %1014 = vmatprep.subr.mxu0 0.0
  %1015 = vmatpush1.msra.mxu0 0.0
  %1016 = vmatprep.subr.mxu0 0.0
  %1017 = vmatpush1.msra.mxu0 0.0
  %1018 = vmatprep.subr.mxu0 0.0
  %1019 = vmatpush1.msra.mxu0 0.0
  %1020 = vmatprep.subr.mxu0 0.0
  %1021 = vmatpush1.msra.mxu0 0.0
  %1022 = vmatprep.subr.mxu0 0.0
  %1023 = vmatpush1.msra.mxu0 0.0
  %1024 = vmatprep.subr.mxu0 0.0
  %1025 = vmatpush1.msra.mxu0 0.0
  %1026 = vmatprep.mubr.f32.mxu0 0.0
  %1027 = vmatmul.mubr.f32.gmra.mrb[0].mxu0 %v300
  %v1028 = vpop.f32.mrb[0].mxu0
  %v1029 = vadd.f32 %v135, %v1028
  %v1030 = vpop.f32.mrb[0].mxu0
  %1031 = vdwg.mxu0
  %vm1032 = vcmask 64512
  %v1034 = vsel %vm1032, %v223, 0
  %v1037 = vsel %vm1032, %v518, 0
  %1039 = vmatprep.subr.mxu0 0.0
  %1040 = vmatpush1.xpose.msra.mxu0 %v1037
  %1041 = vmatprep.subr.mxu0 0.0
  %1042 = vmatpush1.xpose.msra.mxu0 0.0
  %1043 = vmatprep.subr.mxu0 0.0
  %1044 = vmatpush1.xpose.msra.mxu0 0.0
  %1045 = vmatprep.subr.mxu0 0.0
  %1046 = vmatpush1.xpose.msra.mxu0 0.0
  %1047 = vmatprep.subr.mxu0 0.0
  %1048 = vmatpush1.xpose.msra.mxu0 0.0
  %1049 = vmatprep.subr.mxu0 0.0
  %1050 = vmatpush1.xpose.msra.mxu0 0.0
  %1051 = vmatprep.subr.mxu0 0.0
  %1052 = vmatpush1.xpose.msra.mxu0 0.0
  %1053 = vmatprep.subr.mxu0 0.0
  %1054 = vmatpush1.xpose.msra.mxu0 0.0
  %1055 = vmatprep.subr.mxu0 0.0
  %1056 = vmatpush1.xpose.msra.mxu0 0.0
  %1057 = vmatprep.subr.mxu0 0.0
  %1058 = vmatpush1.xpose.msra.mxu0 0.0
  %1059 = vmatprep.subr.mxu0 0.0
  %1060 = vmatpush1.xpose.msra.mxu0 0.0
  %1061 = vmatprep.subr.mxu0 0.0
  %1062 = vmatpush1.xpose.msra.mxu0 0.0
  %1063 = vmatprep.subr.mxu0 0.0
  %1064 = vmatpush1.xpose.msra.mxu0 0.0
  %1065 = vmatprep.subr.mxu0 0.0
  %1066 = vmatpush1.xpose.msra.mxu0 0.0
  %1067 = vmatprep.subr.mxu0 0.0
  %1068 = vmatpush1.xpose.msra.mxu0 0.0
  %1069 = vmatprep.subr.mxu0 0.0
  %1070 = vmatpush1.xpose.msra.mxu0 0.0
  %1071 = vmatprep.subr.mxu0 0.0
  %1072 = vmatpush1.xpose.msra.mxu0 0.0
  %1073 = vmatprep.subr.mxu0 0.0
  %1074 = vmatpush1.xpose.msra.mxu0 0.0
  %1075 = vmatprep.subr.mxu0 0.0
  %1076 = vmatpush1.xpose.msra.mxu0 0.0
  %1077 = vmatprep.subr.mxu0 0.0
  %1078 = vmatpush1.xpose.msra.mxu0 0.0
  %1079 = vmatprep.subr.mxu0 0.0
  %1080 = vmatpush1.xpose.msra.mxu0 0.0
  %1081 = vmatprep.subr.mxu0 0.0
  %1082 = vmatpush1.xpose.msra.mxu0 0.0
  %1083 = vmatprep.subr.mxu0 0.0
  %1084 = vmatpush1.xpose.msra.mxu0 0.0
  %1085 = vmatprep.subr.mxu0 0.0
  %1086 = vmatpush1.xpose.msra.mxu0 0.0
  %1087 = vmatprep.subr.mxu0 0.0
  %1088 = vmatpush1.xpose.msra.mxu0 0.0
  %1089 = vmatprep.subr.mxu0 0.0
  %1090 = vmatpush1.xpose.msra.mxu0 0.0
  %1091 = vmatprep.subr.mxu0 0.0
  %1092 = vmatpush1.xpose.msra.mxu0 0.0
  %1093 = vmatprep.subr.mxu0 0.0
  %1094 = vmatpush1.xpose.msra.mxu0 0.0
  %1095 = vmatprep.subr.mxu0 0.0
  %1096 = vmatpush1.xpose.msra.mxu0 0.0
  %1097 = vmatprep.subr.mxu0 0.0
  %1098 = vmatpush1.xpose.msra.mxu0 0.0
  %1099 = vmatprep.subr.mxu0 0.0
  %1100 = vmatpush1.xpose.msra.mxu0 0.0
  %1101 = vmatprep.subr.mxu0 0.0
  %1102 = vmatpush1.xpose.msra.mxu0 0.0
  %1103 = vmatprep.mubr.f32.mxu0 0.0
  %1104 = vmatmul.mubr.f32.gmra.mrb[0].mxu0 %v1034
  %v1105 = vpop.f32.mrb[0].mxu0
  %v1106 = vadd.f32 %v36, %v1105
  %v1107 = vpop.f32.mrb[0].mxu0
  %1108 = vdwg.mxu0
  %v1110 = vsel %vm1032, %v296, 0
  %v1113 = vsel %vm1032, %v591, 0
  %1115 = vmatprep.subr.mxu0 0.0
  %1116 = vmatpush1.xpose.msra.mxu0 %v1113
  %1117 = vmatprep.subr.mxu0 0.0
  %1118 = vmatpush1.xpose.msra.mxu0 0.0
  %1119 = vmatprep.subr.mxu0 0.0
  %1120 = vmatpush1.xpose.msra.mxu0 0.0
  %1121 = vmatprep.subr.mxu0 0.0
  %1122 = vmatpush1.xpose.msra.mxu0 0.0
  %1123 = vmatprep.subr.mxu0 0.0
  %1124 = vmatpush1.xpose.msra.mxu0 0.0
  %1125 = vmatprep.subr.mxu0 0.0
  %1126 = vmatpush1.xpose.msra.mxu0 0.0
  %1127 = vmatprep.subr.mxu0 0.0
  %1128 = vmatpush1.xpose.msra.mxu0 0.0
  %1129 = vmatprep.subr.mxu0 0.0
  %1130 = vmatpush1.xpose.msra.mxu0 0.0
  %1131 = vmatprep.subr.mxu0 0.0
  %1132 = vmatpush1.xpose.msra.mxu0 0.0
  %1133 = vmatprep.subr.mxu0 0.0
  %1134 = vmatpush1.xpose.msra.mxu0 0.0
  %1135 = vmatprep.subr.mxu0 0.0
  %1136 = vmatpush1.xpose.msra.mxu0 0.0
  %1137 = vmatprep.subr.mxu0 0.0
  %1138 = vmatpush1.xpose.msra.mxu0 0.0
  %1139 = vmatprep.subr.mxu0 0.0
  %1140 = vmatpush1.xpose.msra.mxu0 0.0
  %1141 = vmatprep.subr.mxu0 0.0
  %1142 = vmatpush1.xpose.msra.mxu0 0.0
  %1143 = vmatprep.subr.mxu0 0.0
  %1144 = vmatpush1.xpose.msra.mxu0 0.0
  %1145 = vmatprep.subr.mxu0 0.0
  %1146 = vmatpush1.xpose.msra.mxu0 0.0
  %1147 = vmatprep.subr.mxu0 0.0
  %1148 = vmatpush1.xpose.msra.mxu0 0.0
  %1149 = vmatprep.subr.mxu0 0.0
  %1150 = vmatpush1.xpose.msra.mxu0 0.0
  %1151 = vmatprep.subr.mxu0 0.0
  %1152 = vmatpush1.xpose.msra.mxu0 0.0
  %1153 = vmatprep.subr.mxu0 0.0
  %1154 = vmatpush1.xpose.msra.mxu0 0.0
  %1155 = vmatprep.subr.mxu0 0.0
  %1156 = vmatpush1.xpose.msra.mxu0 0.0
  %1157 = vmatprep.subr.mxu0 0.0
  %1158 = vmatpush1.xpose.msra.mxu0 0.0
  %1159 = vmatprep.subr.mxu0 0.0
  %1160 = vmatpush1.xpose.msra.mxu0 0.0
  %1161 = vmatprep.subr.mxu0 0.0
  %1162 = vmatpush1.xpose.msra.mxu0 0.0
  %1163 = vmatprep.subr.mxu0 0.0
  %1164 = vmatpush1.xpose.msra.mxu0 0.0
  %1165 = vmatprep.subr.mxu0 0.0
  %1166 = vmatpush1.xpose.msra.mxu0 0.0
  %1167 = vmatprep.subr.mxu0 0.0
  %1168 = vmatpush1.xpose.msra.mxu0 0.0
  %1169 = vmatprep.subr.mxu0 0.0
  %1170 = vmatpush1.xpose.msra.mxu0 0.0
  %1171 = vmatprep.subr.mxu0 0.0
  %1172 = vmatpush1.xpose.msra.mxu0 0.0
  %1173 = vmatprep.subr.mxu0 0.0
  %1174 = vmatpush1.xpose.msra.mxu0 0.0
  %1175 = vmatprep.subr.mxu0 0.0
  %1176 = vmatpush1.xpose.msra.mxu0 0.0
  %1177 = vmatprep.subr.mxu0 0.0
  %1178 = vmatpush1.xpose.msra.mxu0 0.0
  %1179 = vmatprep.mubr.f32.mxu0 0.0
  %1180 = vmatmul.mubr.f32.gmra.mrb[0].mxu0 %v1110
  %v1181 = vpop.f32.mrb[0].mxu0
  %v1182 = vadd.f32 %v37, %v1181
  %v1183 = vpop.f32.mrb[0].mxu0
  %1184 = vdwg.mxu0
  %v1186 = vsel %vm1032, %v372, 0
  %v1189 = vsel %vm1032, %v664, 0
  %1191 = vmatprep.subr.mxu0 0.0
  %1192 = vmatpush1.xpose.msra.mxu0 %v1189
  %1193 = vmatprep.subr.mxu0 0.0
  %1194 = vmatpush1.xpose.msra.mxu0 0.0
  %1195 = vmatprep.subr.mxu0 0.0
  %1196 = vmatpush1.xpose.msra.mxu0 0.0
  %1197 = vmatprep.subr.mxu0 0.0
  %1198 = vmatpush1.xpose.msra.mxu0 0.0
  %1199 = vmatprep.subr.mxu0 0.0
  %1200 = vmatpush1.xpose.msra.mxu0 0.0
  %1201 = vmatprep.subr.mxu0 0.0
  %1202 = vmatpush1.xpose.msra.mxu0 0.0
  %1203 = vmatprep.subr.mxu0 0.0
  %1204 = vmatpush1.xpose.msra.mxu0 0.0
  %1205 = vmatprep.subr.mxu0 0.0
  %1206 = vmatpush1.xpose.msra.mxu0 0.0
  %1207 = vmatprep.subr.mxu0 0.0
  %1208 = vmatpush1.xpose.msra.mxu0 0.0
  %1209 = vmatprep.subr.mxu0 0.0
  %1210 = vmatpush1.xpose.msra.mxu0 0.0
  %1211 = vmatprep.subr.mxu0 0.0
  %1212 = vmatpush1.xpose.msra.mxu0 0.0
  %1213 = vmatprep.subr.mxu0 0.0
  %1214 = vmatpush1.xpose.msra.mxu0 0.0
  %1215 = vmatprep.subr.mxu0 0.0
  %1216 = vmatpush1.xpose.msra.mxu0 0.0
  %1217 = vmatprep.subr.mxu0 0.0
  %1218 = vmatpush1.xpose.msra.mxu0 0.0
  %1219 = vmatprep.subr.mxu0 0.0
  %1220 = vmatpush1.xpose.msra.mxu0 0.0
  %1221 = vmatprep.subr.mxu0 0.0
  %1222 = vmatpush1.xpose.msra.mxu0 0.0
  %1223 = vmatprep.subr.mxu0 0.0
  %1224 = vmatpush1.xpose.msra.mxu0 0.0
  %1225 = vmatprep.subr.mxu0 0.0
  %1226 = vmatpush1.xpose.msra.mxu0 0.0
  %1227 = vmatprep.subr.mxu0 0.0
  %1228 = vmatpush1.xpose.msra.mxu0 0.0
  %1229 = vmatprep.subr.mxu0 0.0
  %1230 = vmatpush1.xpose.msra.mxu0 0.0
  %1231 = vmatprep.subr.mxu0 0.0
  %1232 = vmatpush1.xpose.msra.mxu0 0.0
  %1233 = vmatprep.subr.mxu0 0.0
  %1234 = vmatpush1.xpose.msra.mxu0 0.0
  %1235 = vmatprep.subr.mxu0 0.0
  %1236 = vmatpush1.xpose.msra.mxu0 0.0
  %1237 = vmatprep.subr.mxu0 0.0
  %1238 = vmatpush1.xpose.msra.mxu0 0.0
  %1239 = vmatprep.subr.mxu0 0.0
  %1240 = vmatpush1.xpose.msra.mxu0 0.0
  %1241 = vmatprep.subr.mxu0 0.0
  %1242 = vmatpush1.xpose.msra.mxu0 0.0
  %1243 = vmatprep.subr.mxu0 0.0
  %1244 = vmatpush1.xpose.msra.mxu0 0.0
  %1245 = vmatprep.subr.mxu0 0.0
  %1246 = vmatpush1.xpose.msra.mxu0 0.0
  %1247 = vmatprep.subr.mxu0 0.0
  %1248 = vmatpush1.xpose.msra.mxu0 0.0
  %1249 = vmatprep.subr.mxu0 0.0
  %1250 = vmatpush1.xpose.msra.mxu0 0.0
  %1251 = vmatprep.subr.mxu0 0.0
  %1252 = vmatpush1.xpose.msra.mxu0 0.0
  %1253 = vmatprep.subr.mxu0 0.0
  %1254 = vmatpush1.xpose.msra.mxu0 0.0
  %1255 = vmatprep.mubr.f32.mxu0 0.0
  %1256 = vmatmul.mubr.f32.gmra.mrb[0].mxu0 %v1186
  %v1257 = vpop.f32.mrb[0].mxu0
  %v1258 = vadd.f32 %v38, %v1257
  %v1259 = vpop.f32.mrb[0].mxu0
  %1260 = vdwg.mxu0
  %v1262 = vsel %vm1032, %v445, 0
  %v1265 = vsel %vm1032, %v737, 0
  %1267 = vmatprep.subr.mxu0 0.0
  %1268 = vmatpush1.xpose.msra.mxu0 %v1265
  %1269 = vmatprep.subr.mxu0 0.0
  %1270 = vmatpush1.xpose.msra.mxu0 0.0
  %1271 = vmatprep.subr.mxu0 0.0
  %1272 = vmatpush1.xpose.msra.mxu0 0.0
  %1273 = vmatprep.subr.mxu0 0.0
  %1274 = vmatpush1.xpose.msra.mxu0 0.0
  %1275 = vmatprep.subr.mxu0 0.0
  %1276 = vmatpush1.xpose.msra.mxu0 0.0
  %1277 = vmatprep.subr.mxu0 0.0
  %1278 = vmatpush1.xpose.msra.mxu0 0.0
  %1279 = vmatprep.subr.mxu0 0.0
  %1280 = vmatpush1.xpose.msra.mxu0 0.0
  %1281 = vmatprep.subr.mxu0 0.0
  %1282 = vmatpush1.xpose.msra.mxu0 0.0
  %1283 = vmatprep.subr.mxu0 0.0
  %1284 = vmatpush1.xpose.msra.mxu0 0.0
  %1285 = vmatprep.subr.mxu0 0.0
  %1286 = vmatpush1.xpose.msra.mxu0 0.0
  %1287 = vmatprep.subr.mxu0 0.0
  %1288 = vmatpush1.xpose.msra.mxu0 0.0
  %1289 = vmatprep.subr.mxu0 0.0
  %1290 = vmatpush1.xpose.msra.mxu0 0.0
  %1291 = vmatprep.subr.mxu0 0.0
  %1292 = vmatpush1.xpose.msra.mxu0 0.0
  %1293 = vmatprep.subr.mxu0 0.0
  %1294 = vmatpush1.xpose.msra.mxu0 0.0
  %1295 = vmatprep.subr.mxu0 0.0
  %1296 = vmatpush1.xpose.msra.mxu0 0.0
  %1297 = vmatprep.subr.mxu0 0.0
  %1298 = vmatpush1.xpose.msra.mxu0 0.0
  %1299 = vmatprep.subr.mxu0 0.0
  %1300 = vmatpush1.xpose.msra.mxu0 0.0
  %1301 = vmatprep.subr.mxu0 0.0
  %1302 = vmatpush1.xpose.msra.mxu0 0.0
  %1303 = vmatprep.subr.mxu0 0.0
  %1304 = vmatpush1.xpose.msra.mxu0 0.0
  %1305 = vmatprep.subr.mxu0 0.0
  %1306 = vmatpush1.xpose.msra.mxu0 0.0
  %1307 = vmatprep.subr.mxu0 0.0
  %1308 = vmatpush1.xpose.msra.mxu0 0.0
  %1309 = vmatprep.subr.mxu0 0.0
  %1310 = vmatpush1.xpose.msra.mxu0 0.0
  %1311 = vmatprep.subr.mxu0 0.0
  %1312 = vmatpush1.xpose.msra.mxu0 0.0
  %1313 = vmatprep.subr.mxu0 0.0
  %1314 = vmatpush1.xpose.msra.mxu0 0.0
  %1315 = vmatprep.subr.mxu0 0.0
  %1316 = vmatpush1.xpose.msra.mxu0 0.0
  %1317 = vmatprep.subr.mxu0 0.0
  %1318 = vmatpush1.xpose.msra.mxu0 0.0
  %1319 = vmatprep.subr.mxu0 0.0
  %1320 = vmatpush1.xpose.msra.mxu0 0.0
  %1321 = vmatprep.subr.mxu0 0.0
  %1322 = vmatpush1.xpose.msra.mxu0 0.0
  %1323 = vmatprep.subr.mxu0 0.0
  %1324 = vmatpush1.xpose.msra.mxu0 0.0
  %1325 = vmatprep.subr.mxu0 0.0
  %1326 = vmatpush1.xpose.msra.mxu0 0.0
  %1327 = vmatprep.subr.mxu0 0.0
  %1328 = vmatpush1.xpose.msra.mxu0 0.0
  %1329 = vmatprep.subr.mxu0 0.0
  %1330 = vmatpush1.xpose.msra.mxu0 0.0
  %1331 = vmatprep.mubr.f32.mxu0 0.0
  %1332 = vmatmul.mubr.f32.gmra.mrb[0].mxu0 %v1262
  %v1333 = vpop.f32.mrb[0].mxu0
  %v1334 = vadd.f32 %v39, %v1333
  %v1335 = vpop.f32.mrb[0].mxu0
  %1336 = vdwg.mxu0
  %vm1337 = vcmask 36864
  %v1338 = vsel %vm1337, %v1106, -inf
  %1339 = vmax.xlane.f32.xlu0 %v1338
  %v1340 = vpop.xlane.xlu0 %1339
  %v1341 = vsel %vm1337, %v1182, -inf
  %1342 = vmax.xlane.f32.xlu0 %v1341
  %v1343 = vpop.xlane.xlu0 %1342
  %v1344 = vsel %vm1337, %v1258, -inf
  %1345 = vmax.xlane.f32.xlu0 %v1344
  %v1346 = vpop.xlane.xlu0 %1345
  %v1347 = vsel %vm1337, %v1334, -inf
  %1348 = vmax.xlane.f32.xlu0 %v1347
  %v1349 = vpop.xlane.xlu0 %1348
  %v1350 = vsub.f32 %v1106, %v1340
  %v1351 = vsub.f32 %v1182, %v1343
  %v1352 = vsub.f32 %v1258, %v1346
  %v1353 = vsub.f32 %v1334, %v1349
  %v1354 = vmul.f32 %v1350, 1.442695
  %v1355 = vpow.pop %v1354
  %v1356 = vmul.f32 %v1351, 1.442695
  %v1357 = vpow.pop %v1356
  %v1358 = vmul.f32 %v1352, 1.442695
  %v1359 = vpow.pop %v1358
  %v1360 = vmul.f32 %v1353, 1.442695
  %v1361 = vpow.pop %v1360
  %v1362 = vsel %vm1337, %v1355, 0.0
  %1363 = vadd.xlane.f32.xlu0 %v1362
  %v1364 = vpop.xlane.xlu0 %1363
  %v1365 = vsel %vm1337, %v1357, 0.0
  %1366 = vadd.xlane.f32.xlu0 %v1365
  %v1367 = vpop.xlane.xlu0 %1366
  %v1368 = vsel %vm1337, %v1359, 0.0
  %1369 = vadd.xlane.f32.xlu0 %v1368
  %v1370 = vpop.xlane.xlu0 %1369
  %v1371 = vsel %vm1337, %v1361, 0.0
  %1372 = vadd.xlane.f32.xlu0 %v1371
  %v1373 = vpop.xlane.xlu0 %1372
  %v1374 = vrcp.pop %v1364
  %v1375 = vrcp.pop %v1367
  %v1376 = vrcp.pop %v1370
  %v1377 = vrcp.pop %v1373
  %v1378 = vmul.f32 %v1355, %v1374
  %v1379 = vmul.f32 %v1357, %v1375
  %v1380 = vmul.f32 %v1359, %v1376
  %v1381 = vmul.f32 %v1361, %v1377
  %1382 = vst.msk [vmem:[%s10] sm:$0x1f] %vm1337, %v1378
  %1383 = vst.msk [vmem:[%s10 + $0x8] sm:$0x1f] %vm1337, %v1379
  %1384 = vst.msk [vmem:[%s10 + $0x10] sm:$0x1f] %vm1337, %v1380
  %1385 = vst.msk [vmem:[%s10 + $0x18] sm:$0x1f] %vm1337, %v1381
  %vm1386 = vcmask 39936
  %v1388 = vsel %vm1386, %v1378, 0
  %vm1390 = vcmask 1044480
  %v1392 = vsel %vm1390, %v810, 0
  %1394 = vmatprep.subr.mxu0 0.0
  %1395 = vmatpush1.msra.mxu0 %v1392
  %1396 = vmatprep.subr.mxu0 0.0
  %1397 = vmatpush1.msra.mxu0 0.0
  %1398 = vmatprep.subr.mxu0 0.0
  %1399 = vmatpush1.msra.mxu0 0.0
  %1400 = vmatprep.subr.mxu0 0.0
  %1401 = vmatpush1.msra.mxu0 0.0
  %1402 = vmatprep.subr.mxu0 0.0
  %1403 = vmatpush1.msra.mxu0 0.0
  %1404 = vmatprep.subr.mxu0 0.0
  %1405 = vmatpush1.msra.mxu0 0.0
  %1406 = vmatprep.subr.mxu0 0.0
  %1407 = vmatpush1.msra.mxu0 0.0
  %1408 = vmatprep.subr.mxu0 0.0
  %1409 = vmatpush1.msra.mxu0 0.0
  %1410 = vmatprep.subr.mxu0 0.0
  %1411 = vmatpush1.msra.mxu0 0.0
  %1412 = vmatprep.subr.mxu0 0.0
  %1413 = vmatpush1.msra.mxu0 0.0
  %1414 = vmatprep.subr.mxu0 0.0
  %1415 = vmatpush1.msra.mxu0 0.0
  %1416 = vmatprep.subr.mxu0 0.0
  %1417 = vmatpush1.msra.mxu0 0.0
  %1418 = vmatprep.subr.mxu0 0.0
  %1419 = vmatpush1.msra.mxu0 0.0
  %1420 = vmatprep.subr.mxu0 0.0
  %1421 = vmatpush1.msra.mxu0 0.0
  %1422 = vmatprep.subr.mxu0 0.0
  %1423 = vmatpush1.msra.mxu0 0.0
  %1424 = vmatprep.subr.mxu0 0.0
  %1425 = vmatpush1.msra.mxu0 0.0
  %1426 = vmatprep.subr.mxu0 0.0
  %1427 = vmatpush1.msra.mxu0 0.0
  %1428 = vmatprep.subr.mxu0 0.0
  %1429 = vmatpush1.msra.mxu0 0.0
  %1430 = vmatprep.subr.mxu0 0.0
  %1431 = vmatpush1.msra.mxu0 0.0
  %1432 = vmatprep.subr.mxu0 0.0
  %1433 = vmatpush1.msra.mxu0 0.0
  %1434 = vmatprep.subr.mxu0 0.0
  %1435 = vmatpush1.msra.mxu0 0.0
  %1436 = vmatprep.subr.mxu0 0.0
  %1437 = vmatpush1.msra.mxu0 0.0
  %1438 = vmatprep.subr.mxu0 0.0
  %1439 = vmatpush1.msra.mxu0 0.0
  %1440 = vmatprep.subr.mxu0 0.0
  %1441 = vmatpush1.msra.mxu0 0.0
  %1442 = vmatprep.subr.mxu0 0.0
  %1443 = vmatpush1.msra.mxu0 0.0
  %1444 = vmatprep.subr.mxu0 0.0
  %1445 = vmatpush1.msra.mxu0 0.0
  %1446 = vmatprep.subr.mxu0 0.0
  %1447 = vmatpush1.msra.mxu0 0.0
  %1448 = vmatprep.subr.mxu0 0.0
  %1449 = vmatpush1.msra.mxu0 0.0
  %1450 = vmatprep.subr.mxu0 0.0
  %1451 = vmatpush1.msra.mxu0 0.0
  %1452 = vmatprep.subr.mxu0 0.0
  %1453 = vmatpush1.msra.mxu0 0.0
  %1454 = vmatprep.subr.mxu0 0.0
  %1455 = vmatpush1.msra.mxu0 0.0
  %1456 = vmatprep.subr.mxu0 0.0
  %1457 = vmatpush1.msra.mxu0 0.0
  %1458 = vmatprep.mubr.f32.mxu0 0.0
  %1459 = vmatmul.mubr.f32.gmra.mrb[0].mxu0 %v1388
  %v1460 = vpop.f32.mrb[0].mxu0
  %v1461 = vadd.f32 0.0, %v1460
  %v1462 = vpop.f32.mrb[0].mxu0
  %1463 = vdwg.mxu0
  %v1465 = vsel %vm1386, %v1379, 0
  %v1468 = vsel %vm1390, %v883, 0
  %1470 = vmatprep.subr.mxu0 0.0
  %1471 = vmatpush1.msra.mxu0 %v1468
  %1472 = vmatprep.subr.mxu0 0.0
  %1473 = vmatpush1.msra.mxu0 0.0
  %1474 = vmatprep.subr.mxu0 0.0
  %1475 = vmatpush1.msra.mxu0 0.0
  %1476 = vmatprep.subr.mxu0 0.0
  %1477 = vmatpush1.msra.mxu0 0.0
  %1478 = vmatprep.subr.mxu0 0.0
  %1479 = vmatpush1.msra.mxu0 0.0
  %1480 = vmatprep.subr.mxu0 0.0
  %1481 = vmatpush1.msra.mxu0 0.0
  %1482 = vmatprep.subr.mxu0 0.0
  %1483 = vmatpush1.msra.mxu0 0.0
  %1484 = vmatprep.subr.mxu0 0.0
  %1485 = vmatpush1.msra.mxu0 0.0
  %1486 = vmatprep.subr.mxu0 0.0
  %1487 = vmatpush1.msra.mxu0 0.0
  %1488 = vmatprep.subr.mxu0 0.0
  %1489 = vmatpush1.msra.mxu0 0.0
  %1490 = vmatprep.subr.mxu0 0.0
  %1491 = vmatpush1.msra.mxu0 0.0
  %1492 = vmatprep.subr.mxu0 0.0
  %1493 = vmatpush1.msra.mxu0 0.0
  %1494 = vmatprep.subr.mxu0 0.0
  %1495 = vmatpush1.msra.mxu0 0.0
  %1496 = vmatprep.subr.mxu0 0.0
  %1497 = vmatpush1.msra.mxu0 0.0
  %1498 = vmatprep.subr.mxu0 0.0
  %1499 = vmatpush1.msra.mxu0 0.0
  %1500 = vmatprep.subr.mxu0 0.0
  %1501 = vmatpush1.msra.mxu0 0.0
  %1502 = vmatprep.subr.mxu0 0.0
  %1503 = vmatpush1.msra.mxu0 0.0
  %1504 = vmatprep.subr.mxu0 0.0
  %1505 = vmatpush1.msra.mxu0 0.0
  %1506 = vmatprep.subr.mxu0 0.0
  %1507 = vmatpush1.msra.mxu0 0.0
  %1508 = vmatprep.subr.mxu0 0.0
  %1509 = vmatpush1.msra.mxu0 0.0
  %1510 = vmatprep.subr.mxu0 0.0
  %1511 = vmatpush1.msra.mxu0 0.0
  %1512 = vmatprep.subr.mxu0 0.0
  %1513 = vmatpush1.msra.mxu0 0.0
  %1514 = vmatprep.subr.mxu0 0.0
  %1515 = vmatpush1.msra.mxu0 0.0
  %1516 = vmatprep.subr.mxu0 0.0
  %1517 = vmatpush1.msra.mxu0 0.0
  %1518 = vmatprep.subr.mxu0 0.0
  %1519 = vmatpush1.msra.mxu0 0.0
  %1520 = vmatprep.subr.mxu0 0.0
  %1521 = vmatpush1.msra.mxu0 0.0
  %1522 = vmatprep.subr.mxu0 0.0
  %1523 = vmatpush1.msra.mxu0 0.0
  %1524 = vmatprep.subr.mxu0 0.0
  %1525 = vmatpush1.msra.mxu0 0.0
  %1526 = vmatprep.subr.mxu0 0.0
  %1527 = vmatpush1.msra.mxu0 0.0
  %1528 = vmatprep.subr.mxu0 0.0
  %1529 = vmatpush1.msra.mxu0 0.0
  %1530 = vmatprep.subr.mxu0 0.0
  %1531 = vmatpush1.msra.mxu0 0.0
  %1532 = vmatprep.subr.mxu0 0.0
  %1533 = vmatpush1.msra.mxu0 0.0
  %1534 = vmatprep.mubr.f32.mxu0 0.0
  %1535 = vmatmul.mubr.f32.gmra.mrb[0].mxu0 %v1465
  %v1536 = vpop.f32.mrb[0].mxu0
  %v1537 = vadd.f32 0.0, %v1536
  %v1538 = vpop.f32.mrb[0].mxu0
  %1539 = vdwg.mxu0
  %v1541 = vsel %vm1386, %v1380, 0
  %v1544 = vsel %vm1390, %v956, 0
  %1546 = vmatprep.subr.mxu0 0.0
  %1547 = vmatpush1.msra.mxu0 %v1544
  %1548 = vmatprep.subr.mxu0 0.0
  %1549 = vmatpush1.msra.mxu0 0.0
  %1550 = vmatprep.subr.mxu0 0.0
  %1551 = vmatpush1.msra.mxu0 0.0
  %1552 = vmatprep.subr.mxu0 0.0
  %1553 = vmatpush1.msra.mxu0 0.0
  %1554 = vmatprep.subr.mxu0 0.0
  %1555 = vmatpush1.msra.mxu0 0.0
  %1556 = vmatprep.subr.mxu0 0.0
  %1557 = vmatpush1.msra.mxu0 0.0
  %1558 = vmatprep.subr.mxu0 0.0
  %1559 = vmatpush1.msra.mxu0 0.0
  %1560 = vmatprep.subr.mxu0 0.0
  %1561 = vmatpush1.msra.mxu0 0.0
  %1562 = vmatprep.subr.mxu0 0.0
  %1563 = vmatpush1.msra.mxu0 0.0
  %1564 = vmatprep.subr.mxu0 0.0
  %1565 = vmatpush1.msra.mxu0 0.0
  %1566 = vmatprep.subr.mxu0 0.0
  %1567 = vmatpush1.msra.mxu0 0.0
  %1568 = vmatprep.subr.mxu0 0.0
  %1569 = vmatpush1.msra.mxu0 0.0
  %1570 = vmatprep.subr.mxu0 0.0
  %1571 = vmatpush1.msra.mxu0 0.0
  %1572 = vmatprep.subr.mxu0 0.0
  %1573 = vmatpush1.msra.mxu0 0.0
  %1574 = vmatprep.subr.mxu0 0.0
  %1575 = vmatpush1.msra.mxu0 0.0
  %1576 = vmatprep.subr.mxu0 0.0
  %1577 = vmatpush1.msra.mxu0 0.0
  %1578 = vmatprep.subr.mxu0 0.0
  %1579 = vmatpush1.msra.mxu0 0.0
  %1580 = vmatprep.subr.mxu0 0.0
  %1581 = vmatpush1.msra.mxu0 0.0
  %1582 = vmatprep.subr.mxu0 0.0
  %1583 = vmatpush1.msra.mxu0 0.0
  %1584 = vmatprep.subr.mxu0 0.0
  %1585 = vmatpush1.msra.mxu0 0.0
  %1586 = vmatprep.subr.mxu0 0.0
  %1587 = vmatpush1.msra.mxu0 0.0
  %1588 = vmatprep.subr.mxu0 0.0
  %1589 = vmatpush1.msra.mxu0 0.0
  %1590 = vmatprep.subr.mxu0 0.0
  %1591 = vmatpush1.msra.mxu0 0.0
  %1592 = vmatprep.subr.mxu0 0.0
  %1593 = vmatpush1.msra.mxu0 0.0
  %1594 = vmatprep.subr.mxu0 0.0
  %1595 = vmatpush1.msra.mxu0 0.0
  %1596 = vmatprep.subr.mxu0 0.0
  %1597 = vmatpush1.msra.mxu0 0.0
  %1598 = vmatprep.subr.mxu0 0.0
  %1599 = vmatpush1.msra.mxu0 0.0
  %1600 = vmatprep.subr.mxu0 0.0
  %1601 = vmatpush1.msra.mxu0 0.0
  %1602 = vmatprep.subr.mxu0 0.0
  %1603 = vmatpush1.msra.mxu0 0.0
  %1604 = vmatprep.subr.mxu0 0.0
  %1605 = vmatpush1.msra.mxu0 0.0
  %1606 = vmatprep.subr.mxu0 0.0
  %1607 = vmatpush1.msra.mxu0 0.0
  %1608 = vmatprep.subr.mxu0 0.0
  %1609 = vmatpush1.msra.mxu0 0.0
  %1610 = vmatprep.mubr.f32.mxu0 0.0
  %1611 = vmatmul.mubr.f32.gmra.mrb[0].mxu0 %v1541
  %v1612 = vpop.f32.mrb[0].mxu0
  %v1613 = vadd.f32 0.0, %v1612
  %v1614 = vpop.f32.mrb[0].mxu0
  %1615 = vdwg.mxu0
  %v1617 = vsel %vm1386, %v1381, 0
  %v1620 = vsel %vm1390, %v1029, 0
  %1622 = vmatprep.subr.mxu0 0.0
  %1623 = vmatpush1.msra.mxu0 %v1620
  %1624 = vmatprep.subr.mxu0 0.0
  %1625 = vmatpush1.msra.mxu0 0.0
  %1626 = vmatprep.subr.mxu0 0.0
  %1627 = vmatpush1.msra.mxu0 0.0
  %1628 = vmatprep.subr.mxu0 0.0
  %1629 = vmatpush1.msra.mxu0 0.0
  %1630 = vmatprep.subr.mxu0 0.0
  %1631 = vmatpush1.msra.mxu0 0.0
  %1632 = vmatprep.subr.mxu0 0.0
  %1633 = vmatpush1.msra.mxu0 0.0
  %1634 = vmatprep.subr.mxu0 0.0
  %1635 = vmatpush1.msra.mxu0 0.0
  %1636 = vmatprep.subr.mxu0 0.0
  %1637 = vmatpush1.msra.mxu0 0.0
  %1638 = vmatprep.subr.mxu0 0.0
  %1639 = vmatpush1.msra.mxu0 0.0
  %1640 = vmatprep.subr.mxu0 0.0
  %1641 = vmatpush1.msra.mxu0 0.0
  %1642 = vmatprep.subr.mxu0 0.0
  %1643 = vmatpush1.msra.mxu0 0.0
  %1644 = vmatprep.subr.mxu0 0.0
  %1645 = vmatpush1.msra.mxu0 0.0
  %1646 = vmatprep.subr.mxu0 0.0
  %1647 = vmatpush1.msra.mxu0 0.0
  %1648 = vmatprep.subr.mxu0 0.0
  %1649 = vmatpush1.msra.mxu0 0.0
  %1650 = vmatprep.subr.mxu0 0.0
  %1651 = vmatpush1.msra.mxu0 0.0
  %1652 = vmatprep.subr.mxu0 0.0
  %1653 = vmatpush1.msra.mxu0 0.0
  %1654 = vmatprep.subr.mxu0 0.0
  %1655 = vmatpush1.msra.mxu0 0.0
  %1656 = vmatprep.subr.mxu0 0.0
  %1657 = vmatpush1.msra.mxu0 0.0
  %1658 = vmatprep.subr.mxu0 0.0
  %1659 = vmatpush1.msra.mxu0 0.0
  %1660 = vmatprep.subr.mxu0 0.0
  %1661 = vmatpush1.msra.mxu0 0.0
  %1662 = vmatprep.subr.mxu0 0.0
  %1663 = vmatpush1.msra.mxu0 0.0
  %1664 = vmatprep.subr.mxu0 0.0
  %1665 = vmatpush1.msra.mxu0 0.0
  %1666 = vmatprep.subr.mxu0 0.0
  %1667 = vmatpush1.msra.mxu0 0.0
  %1668 = vmatprep.subr.mxu0 0.0
  %1669 = vmatpush1.msra.mxu0 0.0
  %1670 = vmatprep.subr.mxu0 0.0
  %1671 = vmatpush1.msra.mxu0 0.0
  %1672 = vmatprep.subr.mxu0 0.0
  %1673 = vmatpush1.msra.mxu0 0.0
  %1674 = vmatprep.subr.mxu0 0.0
  %1675 = vmatpush1.msra.mxu0 0.0
  %1676 = vmatprep.subr.mxu0 0.0
  %1677 = vmatpush1.msra.mxu0 0.0
  %1678 = vmatprep.subr.mxu0 0.0
  %1679 = vmatpush1.msra.mxu0 0.0
  %1680 = vmatprep.subr.mxu0 0.0
  %1681 = vmatpush1.msra.mxu0 0.0
  %1682 = vmatprep.subr.mxu0 0.0
  %1683 = vmatpush1.msra.mxu0 0.0
  %1684 = vmatprep.subr.mxu0 0.0
  %1685 = vmatpush1.msra.mxu0 0.0
  %1686 = vmatprep.mubr.f32.mxu0 0.0
  %1687 = vmatmul.mubr.f32.gmra.mrb[0].mxu0 %v1617
  %v1688 = vpop.f32.mrb[0].mxu0
  %v1689 = vadd.f32 0.0, %v1688
  %v1690 = vpop.f32.mrb[0].mxu0
  %1691 = vdwg.mxu0
  %v1693 = vsel %vm1032, %v1461, 0
  %1695 = vmatprep.subr.mxu0 0.0
  %1696 = vmatpush1.msra.mxu0 %v64
  %1697 = vmatprep.subr.mxu0 0.0
  %1698 = vmatpush1.msra.mxu0 0.0
  %1699 = vmatprep.subr.mxu0 0.0
  %1700 = vmatpush1.msra.mxu0 0.0
  %1701 = vmatprep.subr.mxu0 0.0
  %1702 = vmatpush1.msra.mxu0 0.0
  %1703 = vmatprep.subr.mxu0 0.0
  %1704 = vmatpush1.msra.mxu0 0.0
  %1705 = vmatprep.subr.mxu0 0.0
  %1706 = vmatpush1.msra.mxu0 0.0
  %1707 = vmatprep.subr.mxu0 0.0
  %1708 = vmatpush1.msra.mxu0 0.0
  %1709 = vmatprep.subr.mxu0 0.0
  %1710 = vmatpush1.msra.mxu0 0.0
  %1711 = vmatprep.subr.mxu0 0.0
  %1712 = vmatpush1.msra.mxu0 0.0
  %1713 = vmatprep.subr.mxu0 0.0
  %1714 = vmatpush1.msra.mxu0 0.0
  %1715 = vmatprep.subr.mxu0 0.0
  %1716 = vmatpush1.msra.mxu0 0.0
  %1717 = vmatprep.subr.mxu0 0.0
  %1718 = vmatpush1.msra.mxu0 0.0
  %1719 = vmatprep.subr.mxu0 0.0
  %1720 = vmatpush1.msra.mxu0 0.0
  %1721 = vmatprep.subr.mxu0 0.0
  %1722 = vmatpush1.msra.mxu0 0.0
  %1723 = vmatprep.subr.mxu0 0.0
  %1724 = vmatpush1.msra.mxu0 0.0
  %1725 = vmatprep.subr.mxu0 0.0
  %1726 = vmatpush1.msra.mxu0 0.0
  %1727 = vmatprep.subr.mxu0 0.0
  %1728 = vmatpush1.msra.mxu0 0.0
  %1729 = vmatprep.subr.mxu0 0.0
  %1730 = vmatpush1.msra.mxu0 0.0
  %1731 = vmatprep.subr.mxu0 0.0
  %1732 = vmatpush1.msra.mxu0 0.0
  %1733 = vmatprep.subr.mxu0 0.0
  %1734 = vmatpush1.msra.mxu0 0.0
  %1735 = vmatprep.subr.mxu0 0.0
  %1736 = vmatpush1.msra.mxu0 0.0
  %1737 = vmatprep.subr.mxu0 0.0
  %1738 = vmatpush1.msra.mxu0 0.0
  %1739 = vmatprep.subr.mxu0 0.0
  %1740 = vmatpush1.msra.mxu0 0.0
  %1741 = vmatprep.subr.mxu0 0.0
  %1742 = vmatpush1.msra.mxu0 0.0
  %1743 = vmatprep.subr.mxu0 0.0
  %1744 = vmatpush1.msra.mxu0 0.0
  %1745 = vmatprep.subr.mxu0 0.0
  %1746 = vmatpush1.msra.mxu0 0.0
  %1747 = vmatprep.subr.mxu0 0.0
  %1748 = vmatpush1.msra.mxu0 0.0
  %1749 = vmatprep.subr.mxu0 0.0
  %1750 = vmatpush1.msra.mxu0 0.0
  %1751 = vmatprep.subr.mxu0 0.0
  %1752 = vmatpush1.msra.mxu0 0.0
  %1753 = vmatprep.subr.mxu0 0.0
  %1754 = vmatpush1.msra.mxu0 0.0
  %1755 = vmatprep.subr.mxu0 0.0
  %1756 = vmatpush1.msra.mxu0 0.0
  %1757 = vmatprep.subr.mxu0 0.0
  %1758 = vmatpush1.msra.mxu0 0.0
  %1759 = vmatprep.mubr.f32.mxu0 0.0
  %1760 = vmatmul.mubr.f32.gmra.mrb[0].mxu0 %v1693
  %v1761 = vpop.f32.mrb[0].mxu0
  %v1762 = vadd.f32 0.0, %v1761
  %v1763 = vpop.f32.mrb[0].mxu0
  %1764 = vdwg.mxu0
  %v1766 = vsel %vm1032, %v1537, 0
  %1768 = vmatprep.subr.mxu0 0.0
  %1769 = vmatpush1.msra.mxu0 %v65
  %1770 = vmatprep.subr.mxu0 0.0
  %1771 = vmatpush1.msra.mxu0 0.0
  %1772 = vmatprep.subr.mxu0 0.0
  %1773 = vmatpush1.msra.mxu0 0.0
  %1774 = vmatprep.subr.mxu0 0.0
  %1775 = vmatpush1.msra.mxu0 0.0
  %1776 = vmatprep.subr.mxu0 0.0
  %1777 = vmatpush1.msra.mxu0 0.0
  %1778 = vmatprep.subr.mxu0 0.0
  %1779 = vmatpush1.msra.mxu0 0.0
  %1780 = vmatprep.subr.mxu0 0.0
  %1781 = vmatpush1.msra.mxu0 0.0
  %1782 = vmatprep.subr.mxu0 0.0
  %1783 = vmatpush1.msra.mxu0 0.0
  %1784 = vmatprep.subr.mxu0 0.0
  %1785 = vmatpush1.msra.mxu0 0.0
  %1786 = vmatprep.subr.mxu0 0.0
  %1787 = vmatpush1.msra.mxu0 0.0
  %1788 = vmatprep.subr.mxu0 0.0
  %1789 = vmatpush1.msra.mxu0 0.0
  %1790 = vmatprep.subr.mxu0 0.0
  %1791 = vmatpush1.msra.mxu0 0.0
  %1792 = vmatprep.subr.mxu0 0.0
  %1793 = vmatpush1.msra.mxu0 0.0
  %1794 = vmatprep.subr.mxu0 0.0
  %1795 = vmatpush1.msra.mxu0 0.0
  %1796 = vmatprep.subr.mxu0 0.0
  %1797 = vmatpush1.msra.mxu0 0.0
  %1798 = vmatprep.subr.mxu0 0.0
  %1799 = vmatpush1.msra.mxu0 0.0
  %1800 = vmatprep.subr.mxu0 0.0
  %1801 = vmatpush1.msra.mxu0 0.0
  %1802 = vmatprep.subr.mxu0 0.0
  %1803 = vmatpush1.msra.mxu0 0.0
  %1804 = vmatprep.subr.mxu0 0.0
  %1805 = vmatpush1.msra.mxu0 0.0
  %1806 = vmatprep.subr.mxu0 0.0
  %1807 = vmatpush1.msra.mxu0 0.0
  %1808 = vmatprep.subr.mxu0 0.0
  %1809 = vmatpush1.msra.mxu0 0.0
  %1810 = vmatprep.subr.mxu0 0.0
  %1811 = vmatpush1.msra.mxu0 0.0
  %1812 = vmatprep.subr.mxu0 0.0
  %1813 = vmatpush1.msra.mxu0 0.0
  %1814 = vmatprep.subr.mxu0 0.0
  %1815 = vmatpush1.msra.mxu0 0.0
  %1816 = vmatprep.subr.mxu0 0.0
  %1817 = vmatpush1.msra.mxu0 0.0
  %1818 = vmatprep.subr.mxu0 0.0
  %1819 = vmatpush1.msra.mxu0 0.0
  %1820 = vmatprep.subr.mxu0 0.0
  %1821 = vmatpush1.msra.mxu0 0.0
  %1822 = vmatprep.subr.mxu0 0.0
  %1823 = vmatpush1.msra.mxu0 0.0
  %1824 = vmatprep.subr.mxu0 0.0
  %1825 = vmatpush1.msra.mxu0 0.0
  %1826 = vmatprep.subr.mxu0 0.0
  %1827 = vmatpush1.msra.mxu0 0.0
  %1828 = vmatprep.subr.mxu0 0.0
  %1829 = vmatpush1.msra.mxu0 0.0
  %1830 = vmatprep.subr.mxu0 0.0
  %1831 = vmatpush1.msra.mxu0 0.0
  %1832 = vmatprep.mubr.f32.mxu0 0.0
  %1833 = vmatmul.mubr.f32.gmra.mrb[0].mxu0 %v1766
  %v1834 = vpop.f32.mrb[0].mxu0
  %v1835 = vadd.f32 0.0, %v1834
  %v1836 = vpop.f32.mrb[0].mxu0
  %1837 = vdwg.mxu0
  %v1839 = vsel %vm1032, %v1613, 0
  %1841 = vmatprep.subr.mxu0 0.0
  %1842 = vmatpush1.msra.mxu0 %v66
  %1843 = vmatprep.subr.mxu0 0.0
  %1844 = vmatpush1.msra.mxu0 0.0
  %1845 = vmatprep.subr.mxu0 0.0
  %1846 = vmatpush1.msra.mxu0 0.0
  %1847 = vmatprep.subr.mxu0 0.0
  %1848 = vmatpush1.msra.mxu0 0.0
  %1849 = vmatprep.subr.mxu0 0.0
  %1850 = vmatpush1.msra.mxu0 0.0
  %1851 = vmatprep.subr.mxu0 0.0
  %1852 = vmatpush1.msra.mxu0 0.0
  %1853 = vmatprep.subr.mxu0 0.0
  %1854 = vmatpush1.msra.mxu0 0.0
  %1855 = vmatprep.subr.mxu0 0.0
  %1856 = vmatpush1.msra.mxu0 0.0
  %1857 = vmatprep.subr.mxu0 0.0
  %1858 = vmatpush1.msra.mxu0 0.0
  %1859 = vmatprep.subr.mxu0 0.0
  %1860 = vmatpush1.msra.mxu0 0.0
  %1861 = vmatprep.subr.mxu0 0.0
  %1862 = vmatpush1.msra.mxu0 0.0
  %1863 = vmatprep.subr.mxu0 0.0
  %1864 = vmatpush1.msra.mxu0 0.0
  %1865 = vmatprep.subr.mxu0 0.0
  %1866 = vmatpush1.msra.mxu0 0.0
  %1867 = vmatprep.subr.mxu0 0.0
  %1868 = vmatpush1.msra.mxu0 0.0
  %1869 = vmatprep.subr.mxu0 0.0
  %1870 = vmatpush1.msra.mxu0 0.0
  %1871 = vmatprep.subr.mxu0 0.0
  %1872 = vmatpush1.msra.mxu0 0.0
  %1873 = vmatprep.subr.mxu0 0.0
  %1874 = vmatpush1.msra.mxu0 0.0
  %1875 = vmatprep.subr.mxu0 0.0
  %1876 = vmatpush1.msra.mxu0 0.0
  %1877 = vmatprep.subr.mxu0 0.0
  %1878 = vmatpush1.msra.mxu0 0.0
  %1879 = vmatprep.subr.mxu0 0.0
  %1880 = vmatpush1.msra.mxu0 0.0
  %1881 = vmatprep.subr.mxu0 0.0
  %1882 = vmatpush1.msra.mxu0 0.0
  %1883 = vmatprep.subr.mxu0 0.0
  %1884 = vmatpush1.msra.mxu0 0.0
  %1885 = vmatprep.subr.mxu0 0.0
  %1886 = vmatpush1.msra.mxu0 0.0
  %1887 = vmatprep.subr.mxu0 0.0
  %1888 = vmatpush1.msra.mxu0 0.0
  %1889 = vmatprep.subr.mxu0 0.0
  %1890 = vmatpush1.msra.mxu0 0.0
  %1891 = vmatprep.subr.mxu0 0.0
  %1892 = vmatpush1.msra.mxu0 0.0
  %1893 = vmatprep.subr.mxu0 0.0
  %1894 = vmatpush1.msra.mxu0 0.0
  %1895 = vmatprep.subr.mxu0 0.0
  %1896 = vmatpush1.msra.mxu0 0.0
  %1897 = vmatprep.subr.mxu0 0.0
  %1898 = vmatpush1.msra.mxu0 0.0
  %1899 = vmatprep.subr.mxu0 0.0
  %1900 = vmatpush1.msra.mxu0 0.0
  %1901 = vmatprep.subr.mxu0 0.0
  %1902 = vmatpush1.msra.mxu0 0.0
  %1903 = vmatprep.subr.mxu0 0.0
  %1904 = vmatpush1.msra.mxu0 0.0
  %1905 = vmatprep.mubr.f32.mxu0 0.0
  %1906 = vmatmul.mubr.f32.gmra.mrb[0].mxu0 %v1839
  %v1907 = vpop.f32.mrb[0].mxu0
  %v1908 = vadd.f32 0.0, %v1907
  %v1909 = vpop.f32.mrb[0].mxu0
  %1910 = vdwg.mxu0
  %v1912 = vsel %vm1032, %v1689, 0
  %1914 = vmatprep.subr.mxu0 0.0
  %1915 = vmatpush1.msra.mxu0 %v67
  %1916 = vmatprep.subr.mxu0 0.0
  %1917 = vmatpush1.msra.mxu0 0.0
  %1918 = vmatprep.subr.mxu0 0.0
  %1919 = vmatpush1.msra.mxu0 0.0
  %1920 = vmatprep.subr.mxu0 0.0
  %1921 = vmatpush1.msra.mxu0 0.0
  %1922 = vmatprep.subr.mxu0 0.0
  %1923 = vmatpush1.msra.mxu0 0.0
  %1924 = vmatprep.subr.mxu0 0.0
  %1925 = vmatpush1.msra.mxu0 0.0
  %1926 = vmatprep.subr.mxu0 0.0
  %1927 = vmatpush1.msra.mxu0 0.0
  %1928 = vmatprep.subr.mxu0 0.0
  %1929 = vmatpush1.msra.mxu0 0.0
  %1930 = vmatprep.subr.mxu0 0.0
  %1931 = vmatpush1.msra.mxu0 0.0
  %1932 = vmatprep.subr.mxu0 0.0
  %1933 = vmatpush1.msra.mxu0 0.0
  %1934 = vmatprep.subr.mxu0 0.0
  %1935 = vmatpush1.msra.mxu0 0.0
  %1936 = vmatprep.subr.mxu0 0.0
  %1937 = vmatpush1.msra.mxu0 0.0
  %1938 = vmatprep.subr.mxu0 0.0
  %1939 = vmatpush1.msra.mxu0 0.0
  %1940 = vmatprep.subr.mxu0 0.0
  %1941 = vmatpush1.msra.mxu0 0.0
  %1942 = vmatprep.subr.mxu0 0.0
  %1943 = vmatpush1.msra.mxu0 0.0
  %1944 = vmatprep.subr.mxu0 0.0
  %1945 = vmatpush1.msra.mxu0 0.0
  %1946 = vmatprep.subr.mxu0 0.0
  %1947 = vmatpush1.msra.mxu0 0.0
  %1948 = vmatprep.subr.mxu0 0.0
  %1949 = vmatpush1.msra.mxu0 0.0
  %1950 = vmatprep.subr.mxu0 0.0
  %1951 = vmatpush1.msra.mxu0 0.0
  %1952 = vmatprep.subr.mxu0 0.0
  %1953 = vmatpush1.msra.mxu0 0.0
  %1954 = vmatprep.subr.mxu0 0.0
  %1955 = vmatpush1.msra.mxu0 0.0
  %1956 = vmatprep.subr.mxu0 0.0
  %1957 = vmatpush1.msra.mxu0 0.0
  %1958 = vmatprep.subr.mxu0 0.0
  %1959 = vmatpush1.msra.mxu0 0.0
  %1960 = vmatprep.subr.mxu0 0.0
  %1961 = vmatpush1.msra.mxu0 0.0
  %1962 = vmatprep.subr.mxu0 0.0
  %1963 = vmatpush1.msra.mxu0 0.0
  %1964 = vmatprep.subr.mxu0 0.0
  %1965 = vmatpush1.msra.mxu0 0.0
  %1966 = vmatprep.subr.mxu0 0.0
  %1967 = vmatpush1.msra.mxu0 0.0
  %1968 = vmatprep.subr.mxu0 0.0
  %1969 = vmatpush1.msra.mxu0 0.0
  %1970 = vmatprep.subr.mxu0 0.0
  %1971 = vmatpush1.msra.mxu0 0.0
  %1972 = vmatprep.subr.mxu0 0.0
  %1973 = vmatpush1.msra.mxu0 0.0
  %1974 = vmatprep.subr.mxu0 0.0
  %1975 = vmatpush1.msra.mxu0 0.0
  %1976 = vmatprep.subr.mxu0 0.0
  %1977 = vmatpush1.msra.mxu0 0.0
  %1978 = vmatprep.mubr.f32.mxu0 0.0
  %1979 = vmatmul.mubr.f32.gmra.mrb[0].mxu0 %v1912
  %v1980 = vpop.f32.mrb[0].mxu0
  %v1981 = vadd.f32 0.0, %v1980
  %v1982 = vpop.f32.mrb[0].mxu0
  %1983 = vdwg.mxu0
  %v1984 = vadd.f32 %v1762, %v1835
  %v1985 = vadd.f32 %v1908, %v1981
  %v1986 = vlaneseq
  %v1987 = vshrl.u32 %v1986, 7
  %v1988 = vsub.s32 0, %v1987
  %v1989 = vrot.slane %v75, %v1988
  %v1990 = vadd.f32 %v1984, %v1989
  %v1991 = vadd.f32 %v1985, %v1989
  %v1992 = vadd.f32 %v1990, %v34
  %v1993 = vadd.f32 %v1991, %v35
  %vm1994 = vcmask 53248
  %v1995 = vsel %vm1994, %v1992, 0.0
  %1996 = vadd.xlane.f32.xlu0 %v1995
  %v1997 = vpop.xlane.xlu0 %1996
  %v1998 = vsel %vm1994, %v1993, 0.0
  %1999 = vadd.xlane.f32.xlu0 %v1998
  %v2000 = vpop.xlane.xlu0 %1999
  %v2001 = vrcp.pop 7.0
  %v2002 = vmul.f32 %v1997, %v2001
  %v2003 = vmul.f32 %v2000, %v2001
  %v2004 = vsub.f32 %v1992, %v2002
  %v2005 = vsub.f32 %v1993, %v2003
  %v2006 = vmul.f32 %v2004, %v2004
  %v2007 = vmul.f32 %v2005, %v2005
  %v2008 = vsel %vm1994, %v2006, 0.0
  %2009 = vadd.xlane.f32.xlu0 %v2008
  %v2010 = vpop.xlane.xlu0 %2009
  %v2011 = vsel %vm1994, %v2007, 0.0
  %2012 = vadd.xlane.f32.xlu0 %v2011
  %v2013 = vpop.xlane.xlu0 %2012
  %v2014 = vmul.f32 %v2010, %v2001
  %v2015 = vmul.f32 %v2013, %v2001
  %v2016 = vadd.f32 %v2014, 1e-05
  %v2017 = vadd.f32 %v2015, 1e-05
  %v2018 = vrsqrt.pop %v2016
  %v2019 = vrsqrt.pop %v2017
  %v2020 = vmul.f32 %v2004, %v2018
  %v2021 = vmul.f32 %v2005, %v2019
  %v2022 = vlaneseq
  %v2023 = vshrl.u32 %v2022, 7
  %v2024 = vsub.s32 1, %v2023
  %v2025 = vrot.slane %v75, %v2024
  %v2026 = vmul.f32 %v2020, %v2025
  %v2027 = vmul.f32 %v2021, %v2025
  %v2028 = vlaneseq
  %v2029 = vshrl.u32 %v2028, 7
  %v2030 = vsub.s32 2, %v2029
  %v2031 = vrot.slane %v75, %v2030
  %v2032 = vadd.f32 %v2026, %v2031
  %v2033 = vadd.f32 %v2027, %v2031
  %v2035 = vlaneseq
  %v2036 = vshrl.u32 %v2035, 7
  %v2037 = vsub.s32 0, %v2036
  %v2038 = vrot.slane %v74, %v2037
  %v2041 = vsel %vm148, %v2032, 0
  %v2044 = vsel %vm152, %v68, 0
  %2046 = vmatprep.subr.mxu0 0.0
  %2047 = vmatpush1.msra.mxu0 %v2044
  %2048 = vmatprep.subr.mxu0 0.0
  %2049 = vmatpush1.msra.mxu0 0.0
  %2050 = vmatprep.subr.mxu0 0.0
  %2051 = vmatpush1.msra.mxu0 0.0
  %2052 = vmatprep.subr.mxu0 0.0
  %2053 = vmatpush1.msra.mxu0 0.0
  %2054 = vmatprep.subr.mxu0 0.0
  %2055 = vmatpush1.msra.mxu0 0.0
  %2056 = vmatprep.subr.mxu0 0.0
  %2057 = vmatpush1.msra.mxu0 0.0
  %2058 = vmatprep.subr.mxu0 0.0
  %2059 = vmatpush1.msra.mxu0 0.0
  %2060 = vmatprep.subr.mxu0 0.0
  %2061 = vmatpush1.msra.mxu0 0.0
  %2062 = vmatprep.subr.mxu0 0.0
  %2063 = vmatpush1.msra.mxu0 0.0
  %2064 = vmatprep.subr.mxu0 0.0
  %2065 = vmatpush1.msra.mxu0 0.0
  %2066 = vmatprep.subr.mxu0 0.0
  %2067 = vmatpush1.msra.mxu0 0.0
  %2068 = vmatprep.subr.mxu0 0.0
  %2069 = vmatpush1.msra.mxu0 0.0
  %2070 = vmatprep.subr.mxu0 0.0
  %2071 = vmatpush1.msra.mxu0 0.0
  %2072 = vmatprep.subr.mxu0 0.0
  %2073 = vmatpush1.msra.mxu0 0.0
  %2074 = vmatprep.subr.mxu0 0.0
  %2075 = vmatpush1.msra.mxu0 0.0
  %2076 = vmatprep.subr.mxu0 0.0
  %2077 = vmatpush1.msra.mxu0 0.0
  %2078 = vmatprep.subr.mxu0 0.0
  %2079 = vmatpush1.msra.mxu0 0.0
  %2080 = vmatprep.subr.mxu0 0.0
  %2081 = vmatpush1.msra.mxu0 0.0
  %2082 = vmatprep.subr.mxu0 0.0
  %2083 = vmatpush1.msra.mxu0 0.0
  %2084 = vmatprep.subr.mxu0 0.0
  %2085 = vmatpush1.msra.mxu0 0.0
  %2086 = vmatprep.subr.mxu0 0.0
  %2087 = vmatpush1.msra.mxu0 0.0
  %2088 = vmatprep.subr.mxu0 0.0
  %2089 = vmatpush1.msra.mxu0 0.0
  %2090 = vmatprep.subr.mxu0 0.0
  %2091 = vmatpush1.msra.mxu0 0.0
  %2092 = vmatprep.subr.mxu0 0.0
  %2093 = vmatpush1.msra.mxu0 0.0
  %2094 = vmatprep.subr.mxu0 0.0
  %2095 = vmatpush1.msra.mxu0 0.0
  %2096 = vmatprep.subr.mxu0 0.0
  %2097 = vmatpush1.msra.mxu0 0.0
  %2098 = vmatprep.subr.mxu0 0.0
  %2099 = vmatpush1.msra.mxu0 0.0
  %2100 = vmatprep.subr.mxu0 0.0
  %2101 = vmatpush1.msra.mxu0 0.0
  %2102 = vmatprep.subr.mxu0 0.0
  %2103 = vmatpush1.msra.mxu0 0.0
  %2104 = vmatprep.subr.mxu0 0.0
  %2105 = vmatpush1.msra.mxu0 0.0
  %2106 = vmatprep.subr.mxu0 0.0
  %2107 = vmatpush1.msra.mxu0 0.0
  %2108 = vmatprep.subr.mxu0 0.0
  %2109 = vmatpush1.msra.mxu0 0.0
  %2110 = vmatprep.mubr.f32.mxu0 0.0
  %2111 = vmatmul.mubr.f32.gmra.mrb[0].mxu0 %v2041
  %v2112 = vpop.f32.mrb[0].mxu0
  %v2113 = vadd.f32 %v2038, %v2112
  %v2114 = vpop.f32.mrb[0].mxu0
  %2115 = vdwg.mxu0
  %v2117 = vsel %vm148, %v2033, 0
  %v2120 = vsel %vm152, %v69, 0
  %2122 = vmatprep.subr.mxu0 0.0
  %2123 = vmatpush1.msra.mxu0 %v2120
  %2124 = vmatprep.subr.mxu0 0.0
  %2125 = vmatpush1.msra.mxu0 0.0
  %2126 = vmatprep.subr.mxu0 0.0
  %2127 = vmatpush1.msra.mxu0 0.0
  %2128 = vmatprep.subr.mxu0 0.0
  %2129 = vmatpush1.msra.mxu0 0.0
  %2130 = vmatprep.subr.mxu0 0.0
  %2131 = vmatpush1.msra.mxu0 0.0
  %2132 = vmatprep.subr.mxu0 0.0
  %2133 = vmatpush1.msra.mxu0 0.0
  %2134 = vmatprep.subr.mxu0 0.0
  %2135 = vmatpush1.msra.mxu0 0.0
  %2136 = vmatprep.subr.mxu0 0.0
  %2137 = vmatpush1.msra.mxu0 0.0
  %2138 = vmatprep.subr.mxu0 0.0
  %2139 = vmatpush1.msra.mxu0 0.0
  %2140 = vmatprep.subr.mxu0 0.0
  %2141 = vmatpush1.msra.mxu0 0.0
  %2142 = vmatprep.subr.mxu0 0.0
  %2143 = vmatpush1.msra.mxu0 0.0
  %2144 = vmatprep.subr.mxu0 0.0
  %2145 = vmatpush1.msra.mxu0 0.0
  %2146 = vmatprep.subr.mxu0 0.0
  %2147 = vmatpush1.msra.mxu0 0.0
  %2148 = vmatprep.subr.mxu0 0.0
  %2149 = vmatpush1.msra.mxu0 0.0
  %2150 = vmatprep.subr.mxu0 0.0
  %2151 = vmatpush1.msra.mxu0 0.0
  %2152 = vmatprep.subr.mxu0 0.0
  %2153 = vmatpush1.msra.mxu0 0.0
  %2154 = vmatprep.subr.mxu0 0.0
  %2155 = vmatpush1.msra.mxu0 0.0
  %2156 = vmatprep.subr.mxu0 0.0
  %2157 = vmatpush1.msra.mxu0 0.0
  %2158 = vmatprep.subr.mxu0 0.0
  %2159 = vmatpush1.msra.mxu0 0.0
  %2160 = vmatprep.subr.mxu0 0.0
  %2161 = vmatpush1.msra.mxu0 0.0
  %2162 = vmatprep.subr.mxu0 0.0
  %2163 = vmatpush1.msra.mxu0 0.0
  %2164 = vmatprep.subr.mxu0 0.0
  %2165 = vmatpush1.msra.mxu0 0.0
  %2166 = vmatprep.subr.mxu0 0.0
  %2167 = vmatpush1.msra.mxu0 0.0
  %2168 = vmatprep.subr.mxu0 0.0
  %2169 = vmatpush1.msra.mxu0 0.0
  %2170 = vmatprep.subr.mxu0 0.0
  %2171 = vmatpush1.msra.mxu0 0.0
  %2172 = vmatprep.subr.mxu0 0.0
  %2173 = vmatpush1.msra.mxu0 0.0
  %2174 = vmatprep.subr.mxu0 0.0
  %2175 = vmatpush1.msra.mxu0 0.0
  %2176 = vmatprep.subr.mxu0 0.0
  %2177 = vmatpush1.msra.mxu0 0.0
  %2178 = vmatprep.subr.mxu0 0.0
  %2179 = vmatpush1.msra.mxu0 0.0
  %2180 = vmatprep.subr.mxu0 0.0
  %2181 = vmatpush1.msra.mxu0 0.0
  %2182 = vmatprep.subr.mxu0 0.0
  %2183 = vmatpush1.msra.mxu0 0.0
  %2184 = vmatprep.subr.mxu0 0.0
  %2185 = vmatpush1.msra.mxu0 0.0
  %2186 = vmatprep.mubr.f32.mxu0 0.0
  %2187 = vmatmul.mubr.f32.gmra.mrb[0].mxu0 %v2117
  %v2188 = vpop.f32.mrb[0].mxu0
  %v2189 = vadd.f32 %v2038, %v2188
  %v2190 = vpop.f32.mrb[0].mxu0
  %2191 = vdwg.mxu0
  %v2192 = vmax.f32 %v2113, 0.0
  %v2193 = vmax.f32 %v2189, 0.0
  %v2194 = vlaneseq
  %v2195 = vshrl.u32 %v2194, 7
  %v2196 = vsub.s32 3, %v2195
  %v2197 = vrot.slane %v75, %v2196
  %vm2198 = vcmask 130048
  %v2200 = vsel %vm2198, %v2192, 0
  %2202 = vmatprep.subr.mxu0 0.0
  %2203 = vmatpush1.msra.mxu0 %v70
  %2204 = vmatprep.subr.mxu0 0.0
  %2205 = vmatpush1.msra.mxu0 %v71
  %2206 = vmatprep.subr.mxu0 0.0
  %2207 = vmatpush1.msra.mxu0 0.0
  %2208 = vmatprep.subr.mxu0 0.0
  %2209 = vmatpush1.msra.mxu0 0.0
  %2210 = vmatprep.subr.mxu0 0.0
  %2211 = vmatpush1.msra.mxu0 0.0
  %2212 = vmatprep.subr.mxu0 0.0
  %2213 = vmatpush1.msra.mxu0 0.0
  %2214 = vmatprep.subr.mxu0 0.0
  %2215 = vmatpush1.msra.mxu0 0.0
  %2216 = vmatprep.subr.mxu0 0.0
  %2217 = vmatpush1.msra.mxu0 0.0
  %2218 = vmatprep.subr.mxu0 0.0
  %2219 = vmatpush1.msra.mxu0 0.0
  %2220 = vmatprep.subr.mxu0 0.0
  %2221 = vmatpush1.msra.mxu0 0.0
  %2222 = vmatprep.subr.mxu0 0.0
  %2223 = vmatpush1.msra.mxu0 0.0
  %2224 = vmatprep.subr.mxu0 0.0
  %2225 = vmatpush1.msra.mxu0 0.0
  %2226 = vmatprep.subr.mxu0 0.0
  %2227 = vmatpush1.msra.mxu0 0.0
  %2228 = vmatprep.subr.mxu0 0.0
  %2229 = vmatpush1.msra.mxu0 0.0
  %2230 = vmatprep.subr.mxu0 0.0
  %2231 = vmatpush1.msra.mxu0 0.0
  %2232 = vmatprep.subr.mxu0 0.0
  %2233 = vmatpush1.msra.mxu0 0.0
  %2234 = vmatprep.subr.mxu0 0.0
  %2235 = vmatpush1.msra.mxu0 0.0
  %2236 = vmatprep.subr.mxu0 0.0
  %2237 = vmatpush1.msra.mxu0 0.0
  %2238 = vmatprep.subr.mxu0 0.0
  %2239 = vmatpush1.msra.mxu0 0.0
  %2240 = vmatprep.subr.mxu0 0.0
  %2241 = vmatpush1.msra.mxu0 0.0
  %2242 = vmatprep.subr.mxu0 0.0
  %2243 = vmatpush1.msra.mxu0 0.0
  %2244 = vmatprep.subr.mxu0 0.0
  %2245 = vmatpush1.msra.mxu0 0.0
  %2246 = vmatprep.subr.mxu0 0.0
  %2247 = vmatpush1.msra.mxu0 0.0
  %2248 = vmatprep.subr.mxu0 0.0
  %2249 = vmatpush1.msra.mxu0 0.0
  %2250 = vmatprep.subr.mxu0 0.0
  %2251 = vmatpush1.msra.mxu0 0.0
  %2252 = vmatprep.subr.mxu0 0.0
  %2253 = vmatpush1.msra.mxu0 0.0
  %2254 = vmatprep.subr.mxu0 0.0
  %2255 = vmatpush1.msra.mxu0 0.0
  %2256 = vmatprep.subr.mxu0 0.0
  %2257 = vmatpush1.msra.mxu0 0.0
  %2258 = vmatprep.subr.mxu0 0.0
  %2259 = vmatpush1.msra.mxu0 0.0
  %2260 = vmatprep.subr.mxu0 0.0
  %2261 = vmatpush1.msra.mxu0 0.0
  %2262 = vmatprep.subr.mxu0 0.0
  %2263 = vmatpush1.msra.mxu0 0.0
  %2264 = vmatprep.subr.mxu0 0.0
  %2265 = vmatpush1.msra.mxu0 0.0
  %2266 = vmatprep.mubr.f32.mxu0 0.0
  %2267 = vmatmul.mubr.f32.gmra.mrb[0].mxu0 %v2200
  %v2268 = vpop.f32.mrb[0].mxu0
  %v2269 = vadd.f32 %v2197, %v2268
  %v2270 = vpop.f32.mrb[0].mxu0
  %2271 = vdwg.mxu0
  %v2273 = vsel %vm2198, %v2193, 0
  %2275 = vmatprep.subr.mxu0 0.0
  %2276 = vmatpush1.msra.mxu0 %v72
  %2277 = vmatprep.subr.mxu0 0.0
  %2278 = vmatpush1.msra.mxu0 %v73
  %2279 = vmatprep.subr.mxu0 0.0
  %2280 = vmatpush1.msra.mxu0 0.0
  %2281 = vmatprep.subr.mxu0 0.0
  %2282 = vmatpush1.msra.mxu0 0.0
  %2283 = vmatprep.subr.mxu0 0.0
  %2284 = vmatpush1.msra.mxu0 0.0
  %2285 = vmatprep.subr.mxu0 0.0
  %2286 = vmatpush1.msra.mxu0 0.0
  %2287 = vmatprep.subr.mxu0 0.0
  %2288 = vmatpush1.msra.mxu0 0.0
  %2289 = vmatprep.subr.mxu0 0.0
  %2290 = vmatpush1.msra.mxu0 0.0
  %2291 = vmatprep.subr.mxu0 0.0
  %2292 = vmatpush1.msra.mxu0 0.0
  %2293 = vmatprep.subr.mxu0 0.0
  %2294 = vmatpush1.msra.mxu0 0.0
  %2295 = vmatprep.subr.mxu0 0.0
  %2296 = vmatpush1.msra.mxu0 0.0
  %2297 = vmatprep.subr.mxu0 0.0
  %2298 = vmatpush1.msra.mxu0 0.0
  %2299 = vmatprep.subr.mxu0 0.0
  %2300 = vmatpush1.msra.mxu0 0.0
  %2301 = vmatprep.subr.mxu0 0.0
  %2302 = vmatpush1.msra.mxu0 0.0
  %2303 = vmatprep.subr.mxu0 0.0
  %2304 = vmatpush1.msra.mxu0 0.0
  %2305 = vmatprep.subr.mxu0 0.0
  %2306 = vmatpush1.msra.mxu0 0.0
  %2307 = vmatprep.subr.mxu0 0.0
  %2308 = vmatpush1.msra.mxu0 0.0
  %2309 = vmatprep.subr.mxu0 0.0
  %2310 = vmatpush1.msra.mxu0 0.0
  %2311 = vmatprep.subr.mxu0 0.0
  %2312 = vmatpush1.msra.mxu0 0.0
  %2313 = vmatprep.subr.mxu0 0.0
  %2314 = vmatpush1.msra.mxu0 0.0
  %2315 = vmatprep.subr.mxu0 0.0
  %2316 = vmatpush1.msra.mxu0 0.0
  %2317 = vmatprep.subr.mxu0 0.0
  %2318 = vmatpush1.msra.mxu0 0.0
  %2319 = vmatprep.subr.mxu0 0.0
  %2320 = vmatpush1.msra.mxu0 0.0
  %2321 = vmatprep.subr.mxu0 0.0
  %2322 = vmatpush1.msra.mxu0 0.0
  %2323 = vmatprep.subr.mxu0 0.0
  %2324 = vmatpush1.msra.mxu0 0.0
  %2325 = vmatprep.subr.mxu0 0.0
  %2326 = vmatpush1.msra.mxu0 0.0
  %2327 = vmatprep.subr.mxu0 0.0
  %2328 = vmatpush1.msra.mxu0 0.0
  %2329 = vmatprep.subr.mxu0 0.0
  %2330 = vmatpush1.msra.mxu0 0.0
  %2331 = vmatprep.subr.mxu0 0.0
  %2332 = vmatpush1.msra.mxu0 0.0
  %2333 = vmatprep.subr.mxu0 0.0
  %2334 = vmatpush1.msra.mxu0 0.0
  %2335 = vmatprep.subr.mxu0 0.0
  %2336 = vmatpush1.msra.mxu0 0.0
  %2337 = vmatprep.subr.mxu0 0.0
  %2338 = vmatpush1.msra.mxu0 0.0
  %2339 = vmatprep.mubr.f32.mxu0 0.0
  %2340 = vmatmul.mubr.f32.gmra.mrb[0].mxu0 %v2273
  %v2341 = vpop.f32.mrb[0].mxu0
  %v2342 = vadd.f32 %v2197, %v2341
  %v2343 = vpop.f32.mrb[0].mxu0
  %2344 = vdwg.mxu0
  %v2345 = vadd.f32 %v2269, %v2032
  %v2346 = vadd.f32 %v2342, %v2033
  %v2347 = vsel %vm1994, %v2345, 0.0
  %2348 = vadd.xlane.f32.xlu0 %v2347
  %v2349 = vpop.xlane.xlu0 %2348
  %v2350 = vsel %vm1994, %v2346, 0.0
  %2351 = vadd.xlane.f32.xlu0 %v2350
  %v2352 = vpop.xlane.xlu0 %2351
  %v2353 = vmul.f32 %v2349, %v2001
  %v2354 = vmul.f32 %v2352, %v2001
  %v2355 = vsub.f32 %v2345, %v2353
  %v2356 = vsub.f32 %v2346, %v2354
  %v2357 = vmul.f32 %v2355, %v2355
  %v2358 = vmul.f32 %v2356, %v2356
  %v2359 = vsel %vm1994, %v2357, 0.0
  %2360 = vadd.xlane.f32.xlu0 %v2359
  %v2361 = vpop.xlane.xlu0 %2360
  %v2362 = vsel %vm1994, %v2358, 0.0
  %2363 = vadd.xlane.f32.xlu0 %v2362
  %v2364 = vpop.xlane.xlu0 %2363
  %v2365 = vmul.f32 %v2361, %v2001
  %v2366 = vmul.f32 %v2364, %v2001
  %v2367 = vadd.f32 %v2365, 1e-05
  %v2368 = vadd.f32 %v2366, 1e-05
  %v2369 = vrsqrt.pop %v2367
  %v2370 = vrsqrt.pop %v2368
  %v2371 = vmul.f32 %v2355, %v2369
  %v2372 = vmul.f32 %v2356, %v2370
  %v2373 = vlaneseq
  %v2374 = vshrl.u32 %v2373, 7
  %v2375 = vsub.s32 4, %v2374
  %v2376 = vrot.slane %v75, %v2375
  %v2377 = vmul.f32 %v2371, %v2376
  %v2378 = vmul.f32 %v2372, %v2376
  %v2379 = vlaneseq
  %v2380 = vshrl.u32 %v2379, 7
  %v2381 = vsub.s32 5, %v2380
  %v2382 = vrot.slane %v75, %v2381
  %v2383 = vadd.f32 %v2377, %v2382
  %v2384 = vadd.f32 %v2378, %v2382
  %s2385 = scalar_lea.vmem %s2, 96
  %v2386 = vld [vmem:[%s2385] sm:$0x7f]
  %v2387 = vld [vmem:[%s2385 + $0x8] sm:$0x7f]
  %v2388 = vld [vmem:[%s2385 + $0x10] sm:$0x7f]
  %v2389 = vld [vmem:[%s2385 + $0x18] sm:$0x7f]
  %v2390 = vld [vmem:[%s2385 + $0x20] sm:$0x7f]
  %v2391 = vld [vmem:[%s2385 + $0x28] sm:$0x7f]
  %v2392 = vld [vmem:[%s2385 + $0x30] sm:$0x7f]
  %v2393 = vld [vmem:[%s2385 + $0x38] sm:$0x7f]
  %v2394 = vld [vmem:[%s2385 + $0x40] sm:$0x7f]
  %v2395 = vld [vmem:[%s2385 + $0x48] sm:$0x7f]
  %v2396 = vld [vmem:[%s2385 + $0x50] sm:$0x7f]
  %v2397 = vld [vmem:[%s2385 + $0x58] sm:$0x7f]
  %s2398 = scalar_lea.vmem %s3, 12
  %v2399 = vld [vmem:[%s2398] sm:$0x1]
  %v2400 = vld [vmem:[%s2398 + $0x1] sm:$0x1]
  %v2401 = vld [vmem:[%s2398 + $0x2] sm:$0x1]
  %v2402 = vld [vmem:[%s2398 + $0x3] sm:$0x1]
  %v2403 = vld [vmem:[%s2398 + $0x4] sm:$0x1]
  %v2404 = vld [vmem:[%s2398 + $0x5] sm:$0x1]
  %v2405 = vld [vmem:[%s2398 + $0x6] sm:$0x1]
  %v2406 = vld [vmem:[%s2398 + $0x7] sm:$0x1]
  %v2407 = vld [vmem:[%s2398 + $0x8] sm:$0x1]
  %v2408 = vld [vmem:[%s2398 + $0x9] sm:$0x1]
  %v2409 = vld [vmem:[%s2398 + $0xa] sm:$0x1]
  %v2410 = vld [vmem:[%s2398 + $0xb] sm:$0x1]
  %s2411 = scalar_lea.vmem %s4, 32
  %v2412 = vld [vmem:[%s2411] sm:$0xff]
  %v2413 = vld [vmem:[%s2411 + $0x8] sm:$0xff]
  %v2414 = vld [vmem:[%s2411 + $0x10] sm:$0xff]
  %v2415 = vld [vmem:[%s2411 + $0x18] sm:$0xff]
  %s2416 = scalar_lea.vmem %s5, 16
  %v2417 = vld [vmem:[%s2416] sm:$0x7f]
  %v2418 = vld [vmem:[%s2416 + $0x8] sm:$0x7f]
  %s2419 = scalar_lea.vmem %s6, 32
  %v2420 = vld [vmem:[%s2419] sm:$0xff]
  %v2421 = vld [vmem:[%s2419 + $0x8] sm:$0xff]
  %v2422 = vld [vmem:[%s2419 + $0x10] sm:$0xff]
  %v2423 = vld [vmem:[%s2419 + $0x18] sm:$0xff]
  %s2424 = scalar_lea.vmem %s7, 1
  %v2425 = vld [vmem:[%s2424] sm:$0x1]
  %s2426 = scalar_lea.vmem %s8, 8
  %v2427 = vld [vmem:[%s2426] sm:$0x3f]
  %v2440 = vlaneseq
  %v2441 = vshrl.u32 %v2440, 7
  %v2442 = vsub.s32 0, %v2441
  %v2443 = vrot.slane %v2399, %v2442
  %v2444 = vlaneseq
  %v2445 = vshrl.u32 %v2444, 7
  %v2446 = vsub.s32 0, %v2445
  %v2447 = vrot.slane %v2400, %v2446
  %v2448 = vlaneseq
  %v2449 = vshrl.u32 %v2448, 7
  %v2450 = vsub.s32 0, %v2449
  %v2451 = vrot.slane %v2401, %v2450
  %v2452 = vlaneseq
  %v2453 = vshrl.u32 %v2452, 7
  %v2454 = vsub.s32 0, %v2453
  %v2455 = vrot.slane %v2402, %v2454
  %v2456 = vlaneseq
  %v2457 = vshrl.u32 %v2456, 7
  %v2458 = vsub.s32 0, %v2457
  %v2459 = vrot.slane %v2403, %v2458
  %v2460 = vlaneseq
  %v2461 = vshrl.u32 %v2460, 7
  %v2462 = vsub.s32 0, %v2461
  %v2463 = vrot.slane %v2404, %v2462
  %v2464 = vlaneseq
  %v2465 = vshrl.u32 %v2464, 7
  %v2466 = vsub.s32 0, %v2465
  %v2467 = vrot.slane %v2405, %v2466
  %v2468 = vlaneseq
  %v2469 = vshrl.u32 %v2468, 7
  %v2470 = vsub.s32 0, %v2469
  %v2471 = vrot.slane %v2406, %v2470
  %v2472 = vlaneseq
  %v2473 = vshrl.u32 %v2472, 7
  %v2474 = vsub.s32 0, %v2473
  %v2475 = vrot.slane %v2407, %v2474
  %v2476 = vlaneseq
  %v2477 = vshrl.u32 %v2476, 7
  %v2478 = vsub.s32 0, %v2477
  %v2479 = vrot.slane %v2408, %v2478
  %v2480 = vlaneseq
  %v2481 = vshrl.u32 %v2480, 7
  %v2482 = vsub.s32 0, %v2481
  %v2483 = vrot.slane %v2409, %v2482
  %v2484 = vlaneseq
  %v2485 = vshrl.u32 %v2484, 7
  %v2486 = vsub.s32 0, %v2485
  %v2487 = vrot.slane %v2410, %v2486
  %v2501 = vsel %vm148, %v2383, 0
  %v2504 = vsel %vm152, %v2386, 0
  %2506 = vmatprep.subr.mxu0 0.0
  %2507 = vmatpush1.msra.mxu0 %v2504
  %2508 = vmatprep.subr.mxu0 0.0
  %2509 = vmatpush1.msra.mxu0 0.0
  %2510 = vmatprep.subr.mxu0 0.0
  %2511 = vmatpush1.msra.mxu0 0.0
  %2512 = vmatprep.subr.mxu0 0.0
  %2513 = vmatpush1.msra.mxu0 0.0
  %2514 = vmatprep.subr.mxu0 0.0
  %2515 = vmatpush1.msra.mxu0 0.0
  %2516 = vmatprep.subr.mxu0 0.0
  %2517 = vmatpush1.msra.mxu0 0.0
  %2518 = vmatprep.subr.mxu0 0.0
  %2519 = vmatpush1.msra.mxu0 0.0
  %2520 = vmatprep.subr.mxu0 0.0
  %2521 = vmatpush1.msra.mxu0 0.0
  %2522 = vmatprep.subr.mxu0 0.0
  %2523 = vmatpush1.msra.mxu0 0.0
  %2524 = vmatprep.subr.mxu0 0.0
  %2525 = vmatpush1.msra.mxu0 0.0
  %2526 = vmatprep.subr.mxu0 0.0
  %2527 = vmatpush1.msra.mxu0 0.0
  %2528 = vmatprep.subr.mxu0 0.0
  %2529 = vmatpush1.msra.mxu0 0.0
  %2530 = vmatprep.subr.mxu0 0.0
  %2531 = vmatpush1.msra.mxu0 0.0
  %2532 = vmatprep.subr.mxu0 0.0
  %2533 = vmatpush1.msra.mxu0 0.0
  %2534 = vmatprep.subr.mxu0 0.0
  %2535 = vmatpush1.msra.mxu0 0.0
  %2536 = vmatprep.subr.mxu0 0.0
  %2537 = vmatpush1.msra.mxu0 0.0
  %2538 = vmatprep.subr.mxu0 0.0
  %2539 = vmatpush1.msra.mxu0 0.0
  %2540 = vmatprep.subr.mxu0 0.0
  %2541 = vmatpush1.msra.mxu0 0.0
  %2542 = vmatprep.subr.mxu0 0.0
  %2543 = vmatpush1.msra.mxu0 0.0
  %2544 = vmatprep.subr.mxu0 0.0
  %2545 = vmatpush1.msra.mxu0 0.0
  %2546 = vmatprep.subr.mxu0 0.0
  %2547 = vmatpush1.msra.mxu0 0.0
  %2548 = vmatprep.subr.mxu0 0.0
  %2549 = vmatpush1.msra.mxu0 0.0
  %2550 = vmatprep.subr.mxu0 0.0
  %2551 = vmatpush1.msra.mxu0 0.0
  %2552 = vmatprep.subr.mxu0 0.0
  %2553 = vmatpush1.msra.mxu0 0.0
  %2554 = vmatprep.subr.mxu0 0.0
  %2555 = vmatpush1.msra.mxu0 0.0
  %2556 = vmatprep.subr.mxu0 0.0
  %2557 = vmatpush1.msra.mxu0 0.0
  %2558 = vmatprep.subr.mxu0 0.0
  %2559 = vmatpush1.msra.mxu0 0.0
  %2560 = vmatprep.subr.mxu0 0.0
  %2561 = vmatpush1.msra.mxu0 0.0
  %2562 = vmatprep.subr.mxu0 0.0
  %2563 = vmatpush1.msra.mxu0 0.0
  %2564 = vmatprep.subr.mxu0 0.0
  %2565 = vmatpush1.msra.mxu0 0.0
  %2566 = vmatprep.subr.mxu0 0.0
  %2567 = vmatpush1.msra.mxu0 0.0
  %2568 = vmatprep.subr.mxu0 0.0
  %2569 = vmatpush1.msra.mxu0 0.0
  %2570 = vmatprep.mubr.f32.mxu0 0.0
  %2571 = vmatmul.mubr.f32.gmra.mrb[0].mxu0 %v2501
  %v2572 = vpop.f32.mrb[0].mxu0
  %v2573 = vadd.f32 %v2443, %v2572
  %v2574 = vpop.f32.mrb[0].mxu0
  %2575 = vdwg.mxu0
  %v2577 = vsel %vm152, %v2387, 0
  %2579 = vmatprep.subr.mxu0 0.0
  %2580 = vmatpush1.msra.mxu0 %v2577
  %2581 = vmatprep.subr.mxu0 0.0
  %2582 = vmatpush1.msra.mxu0 0.0
  %2583 = vmatprep.subr.mxu0 0.0
  %2584 = vmatpush1.msra.mxu0 0.0
  %2585 = vmatprep.subr.mxu0 0.0
  %2586 = vmatpush1.msra.mxu0 0.0
  %2587 = vmatprep.subr.mxu0 0.0
  %2588 = vmatpush1.msra.mxu0 0.0
  %2589 = vmatprep.subr.mxu0 0.0
  %2590 = vmatpush1.msra.mxu0 0.0
  %2591 = vmatprep.subr.mxu0 0.0
  %2592 = vmatpush1.msra.mxu0 0.0
  %2593 = vmatprep.subr.mxu0 0.0
  %2594 = vmatpush1.msra.mxu0 0.0
  %2595 = vmatprep.subr.mxu0 0.0
  %2596 = vmatpush1.msra.mxu0 0.0
  %2597 = vmatprep.subr.mxu0 0.0
  %2598 = vmatpush1.msra.mxu0 0.0
  %2599 = vmatprep.subr.mxu0 0.0
  %2600 = vmatpush1.msra.mxu0 0.0
  %2601 = vmatprep.subr.mxu0 0.0
  %2602 = vmatpush1.msra.mxu0 0.0
  %2603 = vmatprep.subr.mxu0 0.0
  %2604 = vmatpush1.msra.mxu0 0.0
  %2605 = vmatprep.subr.mxu0 0.0
  %2606 = vmatpush1.msra.mxu0 0.0
  %2607 = vmatprep.subr.mxu0 0.0
  %2608 = vmatpush1.msra.mxu0 0.0
  %2609 = vmatprep.subr.mxu0 0.0
  %2610 = vmatpush1.msra.mxu0 0.0
  %2611 = vmatprep.subr.mxu0 0.0
  %2612 = vmatpush1.msra.mxu0 0.0
  %2613 = vmatprep.subr.mxu0 0.0
  %2614 = vmatpush1.msra.mxu0 0.0
  %2615 = vmatprep.subr.mxu0 0.0
  %2616 = vmatpush1.msra.mxu0 0.0
  %2617 = vmatprep.subr.mxu0 0.0
  %2618 = vmatpush1.msra.mxu0 0.0
  %2619 = vmatprep.subr.mxu0 0.0
  %2620 = vmatpush1.msra.mxu0 0.0
  %2621 = vmatprep.subr.mxu0 0.0
  %2622 = vmatpush1.msra.mxu0 0.0
  %2623 = vmatprep.subr.mxu0 0.0
  %2624 = vmatpush1.msra.mxu0 0.0
  %2625 = vmatprep.subr.mxu0 0.0
  %2626 = vmatpush1.msra.mxu0 0.0
  %2627 = vmatprep.subr.mxu0 0.0
  %2628 = vmatpush1.msra.mxu0 0.0
  %2629 = vmatprep.subr.mxu0 0.0
  %2630 = vmatpush1.msra.mxu0 0.0
  %2631 = vmatprep.subr.mxu0 0.0
  %2632 = vmatpush1.msra.mxu0 0.0
  %2633 = vmatprep.subr.mxu0 0.0
  %2634 = vmatpush1.msra.mxu0 0.0
  %2635 = vmatprep.subr.mxu0 0.0
  %2636 = vmatpush1.msra.mxu0 0.0
  %2637 = vmatprep.subr.mxu0 0.0
  %2638 = vmatpush1.msra.mxu0 0.0
  %2639 = vmatprep.subr.mxu0 0.0
  %2640 = vmatpush1.msra.mxu0 0.0
  %2641 = vmatprep.subr.mxu0 0.0
  %2642 = vmatpush1.msra.mxu0 0.0
  %2643 = vmatprep.mubr.f32.mxu0 0.0
  %2644 = vmatmul.mubr.f32.gmra.mrb[0].mxu0 %v2501
  %v2645 = vpop.f32.mrb[0].mxu0
  %v2646 = vadd.f32 %v2447, %v2645
  %v2647 = vpop.f32.mrb[0].mxu0
  %2648 = vdwg.mxu0
  %v2650 = vsel %vm148, %v2384, 0
  %v2653 = vsel %vm152, %v2388, 0
  %2655 = vmatprep.subr.mxu0 0.0
  %2656 = vmatpush1.msra.mxu0 %v2653
  %2657 = vmatprep.subr.mxu0 0.0
  %2658 = vmatpush1.msra.mxu0 0.0
  %2659 = vmatprep.subr.mxu0 0.0
  %2660 = vmatpush1.msra.mxu0 0.0
  %2661 = vmatprep.subr.mxu0 0.0
  %2662 = vmatpush1.msra.mxu0 0.0
  %2663 = vmatprep.subr.mxu0 0.0
  %2664 = vmatpush1.msra.mxu0 0.0
  %2665 = vmatprep.subr.mxu0 0.0
  %2666 = vmatpush1.msra.mxu0 0.0
  %2667 = vmatprep.subr.mxu0 0.0
  %2668 = vmatpush1.msra.mxu0 0.0
  %2669 = vmatprep.subr.mxu0 0.0
  %2670 = vmatpush1.msra.mxu0 0.0
  %2671 = vmatprep.subr.mxu0 0.0
  %2672 = vmatpush1.msra.mxu0 0.0
  %2673 = vmatprep.subr.mxu0 0.0
  %2674 = vmatpush1.msra.mxu0 0.0
  %2675 = vmatprep.subr.mxu0 0.0
  %2676 = vmatpush1.msra.mxu0 0.0
  %2677 = vmatprep.subr.mxu0 0.0
  %2678 = vmatpush1.msra.mxu0 0.0
  %2679 = vmatprep.subr.mxu0 0.0
  %2680 = vmatpush1.msra.mxu0 0.0
  %2681 = vmatprep.subr.mxu0 0.0
  %2682 = vmatpush1.msra.mxu0 0.0
  %2683 = vmatprep.subr.mxu0 0.0
  %2684 = vmatpush1.msra.mxu0 0.0
  %2685 = vmatprep.subr.mxu0 0.0
  %2686 = vmatpush1.msra.mxu0 0.0
  %2687 = vmatprep.subr.mxu0 0.0
  %2688 = vmatpush1.msra.mxu0 0.0
  %2689 = vmatprep.subr.mxu0 0.0
  %2690 = vmatpush1.msra.mxu0 0.0
  %2691 = vmatprep.subr.mxu0 0.0
  %2692 = vmatpush1.msra.mxu0 0.0
  %2693 = vmatprep.subr.mxu0 0.0
  %2694 = vmatpush1.msra.mxu0 0.0
  %2695 = vmatprep.subr.mxu0 0.0
  %2696 = vmatpush1.msra.mxu0 0.0
  %2697 = vmatprep.subr.mxu0 0.0
  %2698 = vmatpush1.msra.mxu0 0.0
  %2699 = vmatprep.subr.mxu0 0.0
  %2700 = vmatpush1.msra.mxu0 0.0
  %2701 = vmatprep.subr.mxu0 0.0
  %2702 = vmatpush1.msra.mxu0 0.0
  %2703 = vmatprep.subr.mxu0 0.0
  %2704 = vmatpush1.msra.mxu0 0.0
  %2705 = vmatprep.subr.mxu0 0.0
  %2706 = vmatpush1.msra.mxu0 0.0
  %2707 = vmatprep.subr.mxu0 0.0
  %2708 = vmatpush1.msra.mxu0 0.0
  %2709 = vmatprep.subr.mxu0 0.0
  %2710 = vmatpush1.msra.mxu0 0.0
  %2711 = vmatprep.subr.mxu0 0.0
  %2712 = vmatpush1.msra.mxu0 0.0
  %2713 = vmatprep.subr.mxu0 0.0
  %2714 = vmatpush1.msra.mxu0 0.0
  %2715 = vmatprep.subr.mxu0 0.0
  %2716 = vmatpush1.msra.mxu0 0.0
  %2717 = vmatprep.subr.mxu0 0.0
  %2718 = vmatpush1.msra.mxu0 0.0
  %2719 = vmatprep.mubr.f32.mxu0 0.0
  %2720 = vmatmul.mubr.f32.gmra.mrb[0].mxu0 %v2650
  %v2721 = vpop.f32.mrb[0].mxu0
  %v2722 = vadd.f32 %v2451, %v2721
  %v2723 = vpop.f32.mrb[0].mxu0
  %2724 = vdwg.mxu0
  %v2726 = vsel %vm152, %v2389, 0
  %2728 = vmatprep.subr.mxu0 0.0
  %2729 = vmatpush1.msra.mxu0 %v2726
  %2730 = vmatprep.subr.mxu0 0.0
  %2731 = vmatpush1.msra.mxu0 0.0
  %2732 = vmatprep.subr.mxu0 0.0
  %2733 = vmatpush1.msra.mxu0 0.0
  %2734 = vmatprep.subr.mxu0 0.0
  %2735 = vmatpush1.msra.mxu0 0.0
  %2736 = vmatprep.subr.mxu0 0.0
  %2737 = vmatpush1.msra.mxu0 0.0
  %2738 = vmatprep.subr.mxu0 0.0
  %2739 = vmatpush1.msra.mxu0 0.0
  %2740 = vmatprep.subr.mxu0 0.0
  %2741 = vmatpush1.msra.mxu0 0.0
  %2742 = vmatprep.subr.mxu0 0.0
  %2743 = vmatpush1.msra.mxu0 0.0
  %2744 = vmatprep.subr.mxu0 0.0
  %2745 = vmatpush1.msra.mxu0 0.0
  %2746 = vmatprep.subr.mxu0 0.0
  %2747 = vmatpush1.msra.mxu0 0.0
  %2748 = vmatprep.subr.mxu0 0.0
  %2749 = vmatpush1.msra.mxu0 0.0
  %2750 = vmatprep.subr.mxu0 0.0
  %2751 = vmatpush1.msra.mxu0 0.0
  %2752 = vmatprep.subr.mxu0 0.0
  %2753 = vmatpush1.msra.mxu0 0.0
  %2754 = vmatprep.subr.mxu0 0.0
  %2755 = vmatpush1.msra.mxu0 0.0
  %2756 = vmatprep.subr.mxu0 0.0
  %2757 = vmatpush1.msra.mxu0 0.0
  %2758 = vmatprep.subr.mxu0 0.0
  %2759 = vmatpush1.msra.mxu0 0.0
  %2760 = vmatprep.subr.mxu0 0.0
  %2761 = vmatpush1.msra.mxu0 0.0
  %2762 = vmatprep.subr.mxu0 0.0
  %2763 = vmatpush1.msra.mxu0 0.0
  %2764 = vmatprep.subr.mxu0 0.0
  %2765 = vmatpush1.msra.mxu0 0.0
  %2766 = vmatprep.subr.mxu0 0.0
  %2767 = vmatpush1.msra.mxu0 0.0
  %2768 = vmatprep.subr.mxu0 0.0
  %2769 = vmatpush1.msra.mxu0 0.0
  %2770 = vmatprep.subr.mxu0 0.0
  %2771 = vmatpush1.msra.mxu0 0.0
  %2772 = vmatprep.subr.mxu0 0.0
  %2773 = vmatpush1.msra.mxu0 0.0
  %2774 = vmatprep.subr.mxu0 0.0
  %2775 = vmatpush1.msra.mxu0 0.0
  %2776 = vmatprep.subr.mxu0 0.0
  %2777 = vmatpush1.msra.mxu0 0.0
  %2778 = vmatprep.subr.mxu0 0.0
  %2779 = vmatpush1.msra.mxu0 0.0
  %2780 = vmatprep.subr.mxu0 0.0
  %2781 = vmatpush1.msra.mxu0 0.0
  %2782 = vmatprep.subr.mxu0 0.0
  %2783 = vmatpush1.msra.mxu0 0.0
  %2784 = vmatprep.subr.mxu0 0.0
  %2785 = vmatpush1.msra.mxu0 0.0
  %2786 = vmatprep.subr.mxu0 0.0
  %2787 = vmatpush1.msra.mxu0 0.0
  %2788 = vmatprep.subr.mxu0 0.0
  %2789 = vmatpush1.msra.mxu0 0.0
  %2790 = vmatprep.subr.mxu0 0.0
  %2791 = vmatpush1.msra.mxu0 0.0
  %2792 = vmatprep.mubr.f32.mxu0 0.0
  %2793 = vmatmul.mubr.f32.gmra.mrb[0].mxu0 %v2650
  %v2794 = vpop.f32.mrb[0].mxu0
  %v2795 = vadd.f32 %v2455, %v2794
  %v2796 = vpop.f32.mrb[0].mxu0
  %2797 = vdwg.mxu0
  %v2799 = vsel %vm152, %v2390, 0
  %2801 = vmatprep.subr.mxu0 0.0
  %2802 = vmatpush1.msra.mxu0 %v2799
  %2803 = vmatprep.subr.mxu0 0.0
  %2804 = vmatpush1.msra.mxu0 0.0
  %2805 = vmatprep.subr.mxu0 0.0
  %2806 = vmatpush1.msra.mxu0 0.0
  %2807 = vmatprep.subr.mxu0 0.0
  %2808 = vmatpush1.msra.mxu0 0.0
  %2809 = vmatprep.subr.mxu0 0.0
  %2810 = vmatpush1.msra.mxu0 0.0
  %2811 = vmatprep.subr.mxu0 0.0
  %2812 = vmatpush1.msra.mxu0 0.0
  %2813 = vmatprep.subr.mxu0 0.0
  %2814 = vmatpush1.msra.mxu0 0.0
  %2815 = vmatprep.subr.mxu0 0.0
  %2816 = vmatpush1.msra.mxu0 0.0
  %2817 = vmatprep.subr.mxu0 0.0
  %2818 = vmatpush1.msra.mxu0 0.0
  %2819 = vmatprep.subr.mxu0 0.0
  %2820 = vmatpush1.msra.mxu0 0.0
  %2821 = vmatprep.subr.mxu0 0.0
  %2822 = vmatpush1.msra.mxu0 0.0
  %2823 = vmatprep.subr.mxu0 0.0
  %2824 = vmatpush1.msra.mxu0 0.0
  %2825 = vmatprep.subr.mxu0 0.0
  %2826 = vmatpush1.msra.mxu0 0.0
  %2827 = vmatprep.subr.mxu0 0.0
  %2828 = vmatpush1.msra.mxu0 0.0
  %2829 = vmatprep.subr.mxu0 0.0
  %2830 = vmatpush1.msra.mxu0 0.0
  %2831 = vmatprep.subr.mxu0 0.0
  %2832 = vmatpush1.msra.mxu0 0.0
  %2833 = vmatprep.subr.mxu0 0.0
  %2834 = vmatpush1.msra.mxu0 0.0
  %2835 = vmatprep.subr.mxu0 0.0
  %2836 = vmatpush1.msra.mxu0 0.0
  %2837 = vmatprep.subr.mxu0 0.0
  %2838 = vmatpush1.msra.mxu0 0.0
  %2839 = vmatprep.subr.mxu0 0.0
  %2840 = vmatpush1.msra.mxu0 0.0
  %2841 = vmatprep.subr.mxu0 0.0
  %2842 = vmatpush1.msra.mxu0 0.0
  %2843 = vmatprep.subr.mxu0 0.0
  %2844 = vmatpush1.msra.mxu0 0.0
  %2845 = vmatprep.subr.mxu0 0.0
  %2846 = vmatpush1.msra.mxu0 0.0
  %2847 = vmatprep.subr.mxu0 0.0
  %2848 = vmatpush1.msra.mxu0 0.0
  %2849 = vmatprep.subr.mxu0 0.0
  %2850 = vmatpush1.msra.mxu0 0.0
  %2851 = vmatprep.subr.mxu0 0.0
  %2852 = vmatpush1.msra.mxu0 0.0
  %2853 = vmatprep.subr.mxu0 0.0
  %2854 = vmatpush1.msra.mxu0 0.0
  %2855 = vmatprep.subr.mxu0 0.0
  %2856 = vmatpush1.msra.mxu0 0.0
  %2857 = vmatprep.subr.mxu0 0.0
  %2858 = vmatpush1.msra.mxu0 0.0
  %2859 = vmatprep.subr.mxu0 0.0
  %2860 = vmatpush1.msra.mxu0 0.0
  %2861 = vmatprep.subr.mxu0 0.0
  %2862 = vmatpush1.msra.mxu0 0.0
  %2863 = vmatprep.subr.mxu0 0.0
  %2864 = vmatpush1.msra.mxu0 0.0
  %2865 = vmatprep.mubr.f32.mxu0 0.0
  %2866 = vmatmul.mubr.f32.gmra.mrb[0].mxu0 %v2501
  %v2867 = vpop.f32.mrb[0].mxu0
  %v2868 = vadd.f32 %v2459, %v2867
  %v2869 = vpop.f32.mrb[0].mxu0
  %2870 = vdwg.mxu0
  %v2872 = vsel %vm152, %v2391, 0
  %2874 = vmatprep.subr.mxu0 0.0
  %2875 = vmatpush1.msra.mxu0 %v2872
  %2876 = vmatprep.subr.mxu0 0.0
  %2877 = vmatpush1.msra.mxu0 0.0
  %2878 = vmatprep.subr.mxu0 0.0
  %2879 = vmatpush1.msra.mxu0 0.0
  %2880 = vmatprep.subr.mxu0 0.0
  %2881 = vmatpush1.msra.mxu0 0.0
  %2882 = vmatprep.subr.mxu0 0.0
  %2883 = vmatpush1.msra.mxu0 0.0
  %2884 = vmatprep.subr.mxu0 0.0
  %2885 = vmatpush1.msra.mxu0 0.0
  %2886 = vmatprep.subr.mxu0 0.0
  %2887 = vmatpush1.msra.mxu0 0.0
  %2888 = vmatprep.subr.mxu0 0.0
  %2889 = vmatpush1.msra.mxu0 0.0
  %2890 = vmatprep.subr.mxu0 0.0
  %2891 = vmatpush1.msra.mxu0 0.0
  %2892 = vmatprep.subr.mxu0 0.0
  %2893 = vmatpush1.msra.mxu0 0.0
  %2894 = vmatprep.subr.mxu0 0.0
  %2895 = vmatpush1.msra.mxu0 0.0
  %2896 = vmatprep.subr.mxu0 0.0
  %2897 = vmatpush1.msra.mxu0 0.0
  %2898 = vmatprep.subr.mxu0 0.0
  %2899 = vmatpush1.msra.mxu0 0.0
  %2900 = vmatprep.subr.mxu0 0.0
  %2901 = vmatpush1.msra.mxu0 0.0
  %2902 = vmatprep.subr.mxu0 0.0
  %2903 = vmatpush1.msra.mxu0 0.0
  %2904 = vmatprep.subr.mxu0 0.0
  %2905 = vmatpush1.msra.mxu0 0.0
  %2906 = vmatprep.subr.mxu0 0.0
  %2907 = vmatpush1.msra.mxu0 0.0
  %2908 = vmatprep.subr.mxu0 0.0
  %2909 = vmatpush1.msra.mxu0 0.0
  %2910 = vmatprep.subr.mxu0 0.0
  %2911 = vmatpush1.msra.mxu0 0.0
  %2912 = vmatprep.subr.mxu0 0.0
  %2913 = vmatpush1.msra.mxu0 0.0
  %2914 = vmatprep.subr.mxu0 0.0
  %2915 = vmatpush1.msra.mxu0 0.0
  %2916 = vmatprep.subr.mxu0 0.0
  %2917 = vmatpush1.msra.mxu0 0.0
  %2918 = vmatprep.subr.mxu0 0.0
  %2919 = vmatpush1.msra.mxu0 0.0
  %2920 = vmatprep.subr.mxu0 0.0
  %2921 = vmatpush1.msra.mxu0 0.0
  %2922 = vmatprep.subr.mxu0 0.0
  %2923 = vmatpush1.msra.mxu0 0.0
  %2924 = vmatprep.subr.mxu0 0.0
  %2925 = vmatpush1.msra.mxu0 0.0
  %2926 = vmatprep.subr.mxu0 0.0
  %2927 = vmatpush1.msra.mxu0 0.0
  %2928 = vmatprep.subr.mxu0 0.0
  %2929 = vmatpush1.msra.mxu0 0.0
  %2930 = vmatprep.subr.mxu0 0.0
  %2931 = vmatpush1.msra.mxu0 0.0
  %2932 = vmatprep.subr.mxu0 0.0
  %2933 = vmatpush1.msra.mxu0 0.0
  %2934 = vmatprep.subr.mxu0 0.0
  %2935 = vmatpush1.msra.mxu0 0.0
  %2936 = vmatprep.subr.mxu0 0.0
  %2937 = vmatpush1.msra.mxu0 0.0
  %2938 = vmatprep.mubr.f32.mxu0 0.0
  %2939 = vmatmul.mubr.f32.gmra.mrb[0].mxu0 %v2501
  %v2940 = vpop.f32.mrb[0].mxu0
  %v2941 = vadd.f32 %v2463, %v2940
  %v2942 = vpop.f32.mrb[0].mxu0
  %2943 = vdwg.mxu0
  %v2945 = vsel %vm152, %v2392, 0
  %2947 = vmatprep.subr.mxu0 0.0
  %2948 = vmatpush1.msra.mxu0 %v2945
  %2949 = vmatprep.subr.mxu0 0.0
  %2950 = vmatpush1.msra.mxu0 0.0
  %2951 = vmatprep.subr.mxu0 0.0
  %2952 = vmatpush1.msra.mxu0 0.0
  %2953 = vmatprep.subr.mxu0 0.0
  %2954 = vmatpush1.msra.mxu0 0.0
  %2955 = vmatprep.subr.mxu0 0.0
  %2956 = vmatpush1.msra.mxu0 0.0
  %2957 = vmatprep.subr.mxu0 0.0
  %2958 = vmatpush1.msra.mxu0 0.0
  %2959 = vmatprep.subr.mxu0 0.0
  %2960 = vmatpush1.msra.mxu0 0.0
  %2961 = vmatprep.subr.mxu0 0.0
  %2962 = vmatpush1.msra.mxu0 0.0
  %2963 = vmatprep.subr.mxu0 0.0
  %2964 = vmatpush1.msra.mxu0 0.0
  %2965 = vmatprep.subr.mxu0 0.0
  %2966 = vmatpush1.msra.mxu0 0.0
  %2967 = vmatprep.subr.mxu0 0.0
  %2968 = vmatpush1.msra.mxu0 0.0
  %2969 = vmatprep.subr.mxu0 0.0
  %2970 = vmatpush1.msra.mxu0 0.0
  %2971 = vmatprep.subr.mxu0 0.0
  %2972 = vmatpush1.msra.mxu0 0.0
  %2973 = vmatprep.subr.mxu0 0.0
  %2974 = vmatpush1.msra.mxu0 0.0
  %2975 = vmatprep.subr.mxu0 0.0
  %2976 = vmatpush1.msra.mxu0 0.0
  %2977 = vmatprep.subr.mxu0 0.0
  %2978 = vmatpush1.msra.mxu0 0.0
  %2979 = vmatprep.subr.mxu0 0.0
  %2980 = vmatpush1.msra.mxu0 0.0
  %2981 = vmatprep.subr.mxu0 0.0
  %2982 = vmatpush1.msra.mxu0 0.0
  %2983 = vmatprep.subr.mxu0 0.0
  %2984 = vmatpush1.msra.mxu0 0.0
  %2985 = vmatprep.subr.mxu0 0.0
  %2986 = vmatpush1.msra.mxu0 0.0
  %2987 = vmatprep.subr.mxu0 0.0
  %2988 = vmatpush1.msra.mxu0 0.0
  %2989 = vmatprep.subr.mxu0 0.0
  %2990 = vmatpush1.msra.mxu0 0.0
  %2991 = vmatprep.subr.mxu0 0.0
  %2992 = vmatpush1.msra.mxu0 0.0
  %2993 = vmatprep.subr.mxu0 0.0
  %2994 = vmatpush1.msra.mxu0 0.0
  %2995 = vmatprep.subr.mxu0 0.0
  %2996 = vmatpush1.msra.mxu0 0.0
  %2997 = vmatprep.subr.mxu0 0.0
  %2998 = vmatpush1.msra.mxu0 0.0
  %2999 = vmatprep.subr.mxu0 0.0
  %3000 = vmatpush1.msra.mxu0 0.0
  %3001 = vmatprep.subr.mxu0 0.0
  %3002 = vmatpush1.msra.mxu0 0.0
  %3003 = vmatprep.subr.mxu0 0.0
  %3004 = vmatpush1.msra.mxu0 0.0
  %3005 = vmatprep.subr.mxu0 0.0
  %3006 = vmatpush1.msra.mxu0 0.0
  %3007 = vmatprep.subr.mxu0 0.0
  %3008 = vmatpush1.msra.mxu0 0.0
  %3009 = vmatprep.subr.mxu0 0.0
  %3010 = vmatpush1.msra.mxu0 0.0
  %3011 = vmatprep.mubr.f32.mxu0 0.0
  %3012 = vmatmul.mubr.f32.gmra.mrb[0].mxu0 %v2650
  %v3013 = vpop.f32.mrb[0].mxu0
  %v3014 = vadd.f32 %v2467, %v3013
  %v3015 = vpop.f32.mrb[0].mxu0
  %3016 = vdwg.mxu0
  %v3018 = vsel %vm152, %v2393, 0
  %3020 = vmatprep.subr.mxu0 0.0
  %3021 = vmatpush1.msra.mxu0 %v3018
  %3022 = vmatprep.subr.mxu0 0.0
  %3023 = vmatpush1.msra.mxu0 0.0
  %3024 = vmatprep.subr.mxu0 0.0
  %3025 = vmatpush1.msra.mxu0 0.0
  %3026 = vmatprep.subr.mxu0 0.0
  %3027 = vmatpush1.msra.mxu0 0.0
  %3028 = vmatprep.subr.mxu0 0.0
  %3029 = vmatpush1.msra.mxu0 0.0
  %3030 = vmatprep.subr.mxu0 0.0
  %3031 = vmatpush1.msra.mxu0 0.0
  %3032 = vmatprep.subr.mxu0 0.0
  %3033 = vmatpush1.msra.mxu0 0.0
  %3034 = vmatprep.subr.mxu0 0.0
  %3035 = vmatpush1.msra.mxu0 0.0
  %3036 = vmatprep.subr.mxu0 0.0
  %3037 = vmatpush1.msra.mxu0 0.0
  %3038 = vmatprep.subr.mxu0 0.0
  %3039 = vmatpush1.msra.mxu0 0.0
  %3040 = vmatprep.subr.mxu0 0.0
  %3041 = vmatpush1.msra.mxu0 0.0
  %3042 = vmatprep.subr.mxu0 0.0
  %3043 = vmatpush1.msra.mxu0 0.0
  %3044 = vmatprep.subr.mxu0 0.0
  %3045 = vmatpush1.msra.mxu0 0.0
  %3046 = vmatprep.subr.mxu0 0.0
  %3047 = vmatpush1.msra.mxu0 0.0
  %3048 = vmatprep.subr.mxu0 0.0
  %3049 = vmatpush1.msra.mxu0 0.0
  %3050 = vmatprep.subr.mxu0 0.0
  %3051 = vmatpush1.msra.mxu0 0.0
  %3052 = vmatprep.subr.mxu0 0.0
  %3053 = vmatpush1.msra.mxu0 0.0
  %3054 = vmatprep.subr.mxu0 0.0
  %3055 = vmatpush1.msra.mxu0 0.0
  %3056 = vmatprep.subr.mxu0 0.0
  %3057 = vmatpush1.msra.mxu0 0.0
  %3058 = vmatprep.subr.mxu0 0.0
  %3059 = vmatpush1.msra.mxu0 0.0
  %3060 = vmatprep.subr.mxu0 0.0
  %3061 = vmatpush1.msra.mxu0 0.0
  %3062 = vmatprep.subr.mxu0 0.0
  %3063 = vmatpush1.msra.mxu0 0.0
  %3064 = vmatprep.subr.mxu0 0.0
  %3065 = vmatpush1.msra.mxu0 0.0
  %3066 = vmatprep.subr.mxu0 0.0
  %3067 = vmatpush1.msra.mxu0 0.0
  %3068 = vmatprep.subr.mxu0 0.0
  %3069 = vmatpush1.msra.mxu0 0.0
  %3070 = vmatprep.subr.mxu0 0.0
  %3071 = vmatpush1.msra.mxu0 0.0
  %3072 = vmatprep.subr.mxu0 0.0
  %3073 = vmatpush1.msra.mxu0 0.0
  %3074 = vmatprep.subr.mxu0 0.0
  %3075 = vmatpush1.msra.mxu0 0.0
  %3076 = vmatprep.subr.mxu0 0.0
  %3077 = vmatpush1.msra.mxu0 0.0
  %3078 = vmatprep.subr.mxu0 0.0
  %3079 = vmatpush1.msra.mxu0 0.0
  %3080 = vmatprep.subr.mxu0 0.0
  %3081 = vmatpush1.msra.mxu0 0.0
  %3082 = vmatprep.subr.mxu0 0.0
  %3083 = vmatpush1.msra.mxu0 0.0
  %3084 = vmatprep.mubr.f32.mxu0 0.0
  %3085 = vmatmul.mubr.f32.gmra.mrb[0].mxu0 %v2650
  %v3086 = vpop.f32.mrb[0].mxu0
  %v3087 = vadd.f32 %v2471, %v3086
  %v3088 = vpop.f32.mrb[0].mxu0
  %3089 = vdwg.mxu0
  %v3091 = vsel %vm152, %v2394, 0
  %3093 = vmatprep.subr.mxu0 0.0
  %3094 = vmatpush1.msra.mxu0 %v3091
  %3095 = vmatprep.subr.mxu0 0.0
  %3096 = vmatpush1.msra.mxu0 0.0
  %3097 = vmatprep.subr.mxu0 0.0
  %3098 = vmatpush1.msra.mxu0 0.0
  %3099 = vmatprep.subr.mxu0 0.0
  %3100 = vmatpush1.msra.mxu0 0.0
  %3101 = vmatprep.subr.mxu0 0.0
  %3102 = vmatpush1.msra.mxu0 0.0
  %3103 = vmatprep.subr.mxu0 0.0
  %3104 = vmatpush1.msra.mxu0 0.0
  %3105 = vmatprep.subr.mxu0 0.0
  %3106 = vmatpush1.msra.mxu0 0.0
  %3107 = vmatprep.subr.mxu0 0.0
  %3108 = vmatpush1.msra.mxu0 0.0
  %3109 = vmatprep.subr.mxu0 0.0
  %3110 = vmatpush1.msra.mxu0 0.0
  %3111 = vmatprep.subr.mxu0 0.0
  %3112 = vmatpush1.msra.mxu0 0.0
  %3113 = vmatprep.subr.mxu0 0.0
  %3114 = vmatpush1.msra.mxu0 0.0
  %3115 = vmatprep.subr.mxu0 0.0
  %3116 = vmatpush1.msra.mxu0 0.0
  %3117 = vmatprep.subr.mxu0 0.0
  %3118 = vmatpush1.msra.mxu0 0.0
  %3119 = vmatprep.subr.mxu0 0.0
  %3120 = vmatpush1.msra.mxu0 0.0
  %3121 = vmatprep.subr.mxu0 0.0
  %3122 = vmatpush1.msra.mxu0 0.0
  %3123 = vmatprep.subr.mxu0 0.0
  %3124 = vmatpush1.msra.mxu0 0.0
  %3125 = vmatprep.subr.mxu0 0.0
  %3126 = vmatpush1.msra.mxu0 0.0
  %3127 = vmatprep.subr.mxu0 0.0
  %3128 = vmatpush1.msra.mxu0 0.0
  %3129 = vmatprep.subr.mxu0 0.0
  %3130 = vmatpush1.msra.mxu0 0.0
  %3131 = vmatprep.subr.mxu0 0.0
  %3132 = vmatpush1.msra.mxu0 0.0
  %3133 = vmatprep.subr.mxu0 0.0
  %3134 = vmatpush1.msra.mxu0 0.0
  %3135 = vmatprep.subr.mxu0 0.0
  %3136 = vmatpush1.msra.mxu0 0.0
  %3137 = vmatprep.subr.mxu0 0.0
  %3138 = vmatpush1.msra.mxu0 0.0
  %3139 = vmatprep.subr.mxu0 0.0
  %3140 = vmatpush1.msra.mxu0 0.0
  %3141 = vmatprep.subr.mxu0 0.0
  %3142 = vmatpush1.msra.mxu0 0.0
  %3143 = vmatprep.subr.mxu0 0.0
  %3144 = vmatpush1.msra.mxu0 0.0
  %3145 = vmatprep.subr.mxu0 0.0
  %3146 = vmatpush1.msra.mxu0 0.0
  %3147 = vmatprep.subr.mxu0 0.0
  %3148 = vmatpush1.msra.mxu0 0.0
  %3149 = vmatprep.subr.mxu0 0.0
  %3150 = vmatpush1.msra.mxu0 0.0
  %3151 = vmatprep.subr.mxu0 0.0
  %3152 = vmatpush1.msra.mxu0 0.0
  %3153 = vmatprep.subr.mxu0 0.0
  %3154 = vmatpush1.msra.mxu0 0.0
  %3155 = vmatprep.subr.mxu0 0.0
  %3156 = vmatpush1.msra.mxu0 0.0
  %3157 = vmatprep.mubr.f32.mxu0 0.0
  %3158 = vmatmul.mubr.f32.gmra.mrb[0].mxu0 %v2501
  %v3159 = vpop.f32.mrb[0].mxu0
  %v3160 = vadd.f32 %v2475, %v3159
  %v3161 = vpop.f32.mrb[0].mxu0
  %3162 = vdwg.mxu0
  %v3164 = vsel %vm152, %v2395, 0
  %3166 = vmatprep.subr.mxu0 0.0
  %3167 = vmatpush1.msra.mxu0 %v3164
  %3168 = vmatprep.subr.mxu0 0.0
  %3169 = vmatpush1.msra.mxu0 0.0
  %3170 = vmatprep.subr.mxu0 0.0
  %3171 = vmatpush1.msra.mxu0 0.0
  %3172 = vmatprep.subr.mxu0 0.0
  %3173 = vmatpush1.msra.mxu0 0.0
  %3174 = vmatprep.subr.mxu0 0.0
  %3175 = vmatpush1.msra.mxu0 0.0
  %3176 = vmatprep.subr.mxu0 0.0
  %3177 = vmatpush1.msra.mxu0 0.0
  %3178 = vmatprep.subr.mxu0 0.0
  %3179 = vmatpush1.msra.mxu0 0.0
  %3180 = vmatprep.subr.mxu0 0.0
  %3181 = vmatpush1.msra.mxu0 0.0
  %3182 = vmatprep.subr.mxu0 0.0
  %3183 = vmatpush1.msra.mxu0 0.0
  %3184 = vmatprep.subr.mxu0 0.0
  %3185 = vmatpush1.msra.mxu0 0.0
  %3186 = vmatprep.subr.mxu0 0.0
  %3187 = vmatpush1.msra.mxu0 0.0
  %3188 = vmatprep.subr.mxu0 0.0
  %3189 = vmatpush1.msra.mxu0 0.0
  %3190 = vmatprep.subr.mxu0 0.0
  %3191 = vmatpush1.msra.mxu0 0.0
  %3192 = vmatprep.subr.mxu0 0.0
  %3193 = vmatpush1.msra.mxu0 0.0
  %3194 = vmatprep.subr.mxu0 0.0
  %3195 = vmatpush1.msra.mxu0 0.0
  %3196 = vmatprep.subr.mxu0 0.0
  %3197 = vmatpush1.msra.mxu0 0.0
  %3198 = vmatprep.subr.mxu0 0.0
  %3199 = vmatpush1.msra.mxu0 0.0
  %3200 = vmatprep.subr.mxu0 0.0
  %3201 = vmatpush1.msra.mxu0 0.0
  %3202 = vmatprep.subr.mxu0 0.0
  %3203 = vmatpush1.msra.mxu0 0.0
  %3204 = vmatprep.subr.mxu0 0.0
  %3205 = vmatpush1.msra.mxu0 0.0
  %3206 = vmatprep.subr.mxu0 0.0
  %3207 = vmatpush1.msra.mxu0 0.0
  %3208 = vmatprep.subr.mxu0 0.0
  %3209 = vmatpush1.msra.mxu0 0.0
  %3210 = vmatprep.subr.mxu0 0.0
  %3211 = vmatpush1.msra.mxu0 0.0
  %3212 = vmatprep.subr.mxu0 0.0
  %3213 = vmatpush1.msra.mxu0 0.0
  %3214 = vmatprep.subr.mxu0 0.0
  %3215 = vmatpush1.msra.mxu0 0.0
  %3216 = vmatprep.subr.mxu0 0.0
  %3217 = vmatpush1.msra.mxu0 0.0
  %3218 = vmatprep.subr.mxu0 0.0
  %3219 = vmatpush1.msra.mxu0 0.0
  %3220 = vmatprep.subr.mxu0 0.0
  %3221 = vmatpush1.msra.mxu0 0.0
  %3222 = vmatprep.subr.mxu0 0.0
  %3223 = vmatpush1.msra.mxu0 0.0
  %3224 = vmatprep.subr.mxu0 0.0
  %3225 = vmatpush1.msra.mxu0 0.0
  %3226 = vmatprep.subr.mxu0 0.0
  %3227 = vmatpush1.msra.mxu0 0.0
  %3228 = vmatprep.subr.mxu0 0.0
  %3229 = vmatpush1.msra.mxu0 0.0
  %3230 = vmatprep.mubr.f32.mxu0 0.0
  %3231 = vmatmul.mubr.f32.gmra.mrb[0].mxu0 %v2501
  %v3232 = vpop.f32.mrb[0].mxu0
  %v3233 = vadd.f32 %v2479, %v3232
  %v3234 = vpop.f32.mrb[0].mxu0
  %3235 = vdwg.mxu0
  %v3237 = vsel %vm152, %v2396, 0
  %3239 = vmatprep.subr.mxu0 0.0
  %3240 = vmatpush1.msra.mxu0 %v3237
  %3241 = vmatprep.subr.mxu0 0.0
  %3242 = vmatpush1.msra.mxu0 0.0
  %3243 = vmatprep.subr.mxu0 0.0
  %3244 = vmatpush1.msra.mxu0 0.0
  %3245 = vmatprep.subr.mxu0 0.0
  %3246 = vmatpush1.msra.mxu0 0.0
  %3247 = vmatprep.subr.mxu0 0.0
  %3248 = vmatpush1.msra.mxu0 0.0
  %3249 = vmatprep.subr.mxu0 0.0
  %3250 = vmatpush1.msra.mxu0 0.0
  %3251 = vmatprep.subr.mxu0 0.0
  %3252 = vmatpush1.msra.mxu0 0.0
  %3253 = vmatprep.subr.mxu0 0.0
  %3254 = vmatpush1.msra.mxu0 0.0
  %3255 = vmatprep.subr.mxu0 0.0
  %3256 = vmatpush1.msra.mxu0 0.0
  %3257 = vmatprep.subr.mxu0 0.0
  %3258 = vmatpush1.msra.mxu0 0.0
  %3259 = vmatprep.subr.mxu0 0.0
  %3260 = vmatpush1.msra.mxu0 0.0
  %3261 = vmatprep.subr.mxu0 0.0
  %3262 = vmatpush1.msra.mxu0 0.0
  %3263 = vmatprep.subr.mxu0 0.0
  %3264 = vmatpush1.msra.mxu0 0.0
  %3265 = vmatprep.subr.mxu0 0.0
  %3266 = vmatpush1.msra.mxu0 0.0
  %3267 = vmatprep.subr.mxu0 0.0
  %3268 = vmatpush1.msra.mxu0 0.0
  %3269 = vmatprep.subr.mxu0 0.0
  %3270 = vmatpush1.msra.mxu0 0.0
  %3271 = vmatprep.subr.mxu0 0.0
  %3272 = vmatpush1.msra.mxu0 0.0
  %3273 = vmatprep.subr.mxu0 0.0
  %3274 = vmatpush1.msra.mxu0 0.0
  %3275 = vmatprep.subr.mxu0 0.0
  %3276 = vmatpush1.msra.mxu0 0.0
  %3277 = vmatprep.subr.mxu0 0.0
  %3278 = vmatpush1.msra.mxu0 0.0
  %3279 = vmatprep.subr.mxu0 0.0
  %3280 = vmatpush1.msra.mxu0 0.0
  %3281 = vmatprep.subr.mxu0 0.0
  %3282 = vmatpush1.msra.mxu0 0.0
  %3283 = vmatprep.subr.mxu0 0.0
  %3284 = vmatpush1.msra.mxu0 0.0
  %3285 = vmatprep.subr.mxu0 0.0
  %3286 = vmatpush1.msra.mxu0 0.0
  %3287 = vmatprep.subr.mxu0 0.0
  %3288 = vmatpush1.msra.mxu0 0.0
  %3289 = vmatprep.subr.mxu0 0.0
  %3290 = vmatpush1.msra.mxu0 0.0
  %3291 = vmatprep.subr.mxu0 0.0
  %3292 = vmatpush1.msra.mxu0 0.0
  %3293 = vmatprep.subr.mxu0 0.0
  %3294 = vmatpush1.msra.mxu0 0.0
  %3295 = vmatprep.subr.mxu0 0.0
  %3296 = vmatpush1.msra.mxu0 0.0
  %3297 = vmatprep.subr.mxu0 0.0
  %3298 = vmatpush1.msra.mxu0 0.0
  %3299 = vmatprep.subr.mxu0 0.0
  %3300 = vmatpush1.msra.mxu0 0.0
  %3301 = vmatprep.subr.mxu0 0.0
  %3302 = vmatpush1.msra.mxu0 0.0
  %3303 = vmatprep.mubr.f32.mxu0 0.0
  %3304 = vmatmul.mubr.f32.gmra.mrb[0].mxu0 %v2650
  %v3305 = vpop.f32.mrb[0].mxu0
  %v3306 = vadd.f32 %v2483, %v3305
  %v3307 = vpop.f32.mrb[0].mxu0
  %3308 = vdwg.mxu0
  %v3310 = vsel %vm152, %v2397, 0
  %3312 = vmatprep.subr.mxu0 0.0
  %3313 = vmatpush1.msra.mxu0 %v3310
  %3314 = vmatprep.subr.mxu0 0.0
  %3315 = vmatpush1.msra.mxu0 0.0
  %3316 = vmatprep.subr.mxu0 0.0
  %3317 = vmatpush1.msra.mxu0 0.0
  %3318 = vmatprep.subr.mxu0 0.0
  %3319 = vmatpush1.msra.mxu0 0.0
  %3320 = vmatprep.subr.mxu0 0.0
  %3321 = vmatpush1.msra.mxu0 0.0
  %3322 = vmatprep.subr.mxu0 0.0
  %3323 = vmatpush1.msra.mxu0 0.0
  %3324 = vmatprep.subr.mxu0 0.0
  %3325 = vmatpush1.msra.mxu0 0.0
  %3326 = vmatprep.subr.mxu0 0.0
  %3327 = vmatpush1.msra.mxu0 0.0
  %3328 = vmatprep.subr.mxu0 0.0
  %3329 = vmatpush1.msra.mxu0 0.0
  %3330 = vmatprep.subr.mxu0 0.0
  %3331 = vmatpush1.msra.mxu0 0.0
  %3332 = vmatprep.subr.mxu0 0.0
  %3333 = vmatpush1.msra.mxu0 0.0
  %3334 = vmatprep.subr.mxu0 0.0
  %3335 = vmatpush1.msra.mxu0 0.0
  %3336 = vmatprep.subr.mxu0 0.0
  %3337 = vmatpush1.msra.mxu0 0.0
  %3338 = vmatprep.subr.mxu0 0.0
  %3339 = vmatpush1.msra.mxu0 0.0
  %3340 = vmatprep.subr.mxu0 0.0
  %3341 = vmatpush1.msra.mxu0 0.0
  %3342 = vmatprep.subr.mxu0 0.0
  %3343 = vmatpush1.msra.mxu0 0.0
  %3344 = vmatprep.subr.mxu0 0.0
  %3345 = vmatpush1.msra.mxu0 0.0
  %3346 = vmatprep.subr.mxu0 0.0
  %3347 = vmatpush1.msra.mxu0 0.0
  %3348 = vmatprep.subr.mxu0 0.0
  %3349 = vmatpush1.msra.mxu0 0.0
  %3350 = vmatprep.subr.mxu0 0.0
  %3351 = vmatpush1.msra.mxu0 0.0
  %3352 = vmatprep.subr.mxu0 0.0
  %3353 = vmatpush1.msra.mxu0 0.0
  %3354 = vmatprep.subr.mxu0 0.0
  %3355 = vmatpush1.msra.mxu0 0.0
  %3356 = vmatprep.subr.mxu0 0.0
  %3357 = vmatpush1.msra.mxu0 0.0
  %3358 = vmatprep.subr.mxu0 0.0
  %3359 = vmatpush1.msra.mxu0 0.0
  %3360 = vmatprep.subr.mxu0 0.0
  %3361 = vmatpush1.msra.mxu0 0.0
  %3362 = vmatprep.subr.mxu0 0.0
  %3363 = vmatpush1.msra.mxu0 0.0
  %3364 = vmatprep.subr.mxu0 0.0
  %3365 = vmatpush1.msra.mxu0 0.0
  %3366 = vmatprep.subr.mxu0 0.0
  %3367 = vmatpush1.msra.mxu0 0.0
  %3368 = vmatprep.subr.mxu0 0.0
  %3369 = vmatpush1.msra.mxu0 0.0
  %3370 = vmatprep.subr.mxu0 0.0
  %3371 = vmatpush1.msra.mxu0 0.0
  %3372 = vmatprep.subr.mxu0 0.0
  %3373 = vmatpush1.msra.mxu0 0.0
  %3374 = vmatprep.subr.mxu0 0.0
  %3375 = vmatpush1.msra.mxu0 0.0
  %3376 = vmatprep.mubr.f32.mxu0 0.0
  %3377 = vmatmul.mubr.f32.gmra.mrb[0].mxu0 %v2650
  %v3378 = vpop.f32.mrb[0].mxu0
  %v3379 = vadd.f32 %v2487, %v3378
  %v3380 = vpop.f32.mrb[0].mxu0
  %3381 = vdwg.mxu0
  %v3383 = vsel %vm1032, %v2573, 0
  %v3386 = vsel %vm1032, %v2868, 0
  %3388 = vmatprep.subr.mxu0 0.0
  %3389 = vmatpush1.xpose.msra.mxu0 %v3386
  %3390 = vmatprep.subr.mxu0 0.0
  %3391 = vmatpush1.xpose.msra.mxu0 0.0
  %3392 = vmatprep.subr.mxu0 0.0
  %3393 = vmatpush1.xpose.msra.mxu0 0.0
  %3394 = vmatprep.subr.mxu0 0.0
  %3395 = vmatpush1.xpose.msra.mxu0 0.0
  %3396 = vmatprep.subr.mxu0 0.0
  %3397 = vmatpush1.xpose.msra.mxu0 0.0
  %3398 = vmatprep.subr.mxu0 0.0
  %3399 = vmatpush1.xpose.msra.mxu0 0.0
  %3400 = vmatprep.subr.mxu0 0.0
  %3401 = vmatpush1.xpose.msra.mxu0 0.0
  %3402 = vmatprep.subr.mxu0 0.0
  %3403 = vmatpush1.xpose.msra.mxu0 0.0
  %3404 = vmatprep.subr.mxu0 0.0
  %3405 = vmatpush1.xpose.msra.mxu0 0.0
  %3406 = vmatprep.subr.mxu0 0.0
  %3407 = vmatpush1.xpose.msra.mxu0 0.0
  %3408 = vmatprep.subr.mxu0 0.0
  %3409 = vmatpush1.xpose.msra.mxu0 0.0
  %3410 = vmatprep.subr.mxu0 0.0
  %3411 = vmatpush1.xpose.msra.mxu0 0.0
  %3412 = vmatprep.subr.mxu0 0.0
  %3413 = vmatpush1.xpose.msra.mxu0 0.0
  %3414 = vmatprep.subr.mxu0 0.0
  %3415 = vmatpush1.xpose.msra.mxu0 0.0
  %3416 = vmatprep.subr.mxu0 0.0
  %3417 = vmatpush1.xpose.msra.mxu0 0.0
  %3418 = vmatprep.subr.mxu0 0.0
  %3419 = vmatpush1.xpose.msra.mxu0 0.0
  %3420 = vmatprep.subr.mxu0 0.0
  %3421 = vmatpush1.xpose.msra.mxu0 0.0
  %3422 = vmatprep.subr.mxu0 0.0
  %3423 = vmatpush1.xpose.msra.mxu0 0.0
  %3424 = vmatprep.subr.mxu0 0.0
  %3425 = vmatpush1.xpose.msra.mxu0 0.0
  %3426 = vmatprep.subr.mxu0 0.0
  %3427 = vmatpush1.xpose.msra.mxu0 0.0
  %3428 = vmatprep.subr.mxu0 0.0
  %3429 = vmatpush1.xpose.msra.mxu0 0.0
  %3430 = vmatprep.subr.mxu0 0.0
  %3431 = vmatpush1.xpose.msra.mxu0 0.0
  %3432 = vmatprep.subr.mxu0 0.0
  %3433 = vmatpush1.xpose.msra.mxu0 0.0
  %3434 = vmatprep.subr.mxu0 0.0
  %3435 = vmatpush1.xpose.msra.mxu0 0.0
  %3436 = vmatprep.subr.mxu0 0.0
  %3437 = vmatpush1.xpose.msra.mxu0 0.0
  %3438 = vmatprep.subr.mxu0 0.0
  %3439 = vmatpush1.xpose.msra.mxu0 0.0
  %3440 = vmatprep.subr.mxu0 0.0
  %3441 = vmatpush1.xpose.msra.mxu0 0.0
  %3442 = vmatprep.subr.mxu0 0.0
  %3443 = vmatpush1.xpose.msra.mxu0 0.0
  %3444 = vmatprep.subr.mxu0 0.0
  %3445 = vmatpush1.xpose.msra.mxu0 0.0
  %3446 = vmatprep.subr.mxu0 0.0
  %3447 = vmatpush1.xpose.msra.mxu0 0.0
  %3448 = vmatprep.subr.mxu0 0.0
  %3449 = vmatpush1.xpose.msra.mxu0 0.0
  %3450 = vmatprep.subr.mxu0 0.0
  %3451 = vmatpush1.xpose.msra.mxu0 0.0
  %3452 = vmatprep.mubr.f32.mxu0 0.0
  %3453 = vmatmul.mubr.f32.gmra.mrb[0].mxu0 %v3383
  %v3454 = vpop.f32.mrb[0].mxu0
  %v3455 = vadd.f32 %v36, %v3454
  %v3456 = vpop.f32.mrb[0].mxu0
  %3457 = vdwg.mxu0
  %v3459 = vsel %vm1032, %v2646, 0
  %v3462 = vsel %vm1032, %v2941, 0
  %3464 = vmatprep.subr.mxu0 0.0
  %3465 = vmatpush1.xpose.msra.mxu0 %v3462
  %3466 = vmatprep.subr.mxu0 0.0
  %3467 = vmatpush1.xpose.msra.mxu0 0.0
  %3468 = vmatprep.subr.mxu0 0.0
  %3469 = vmatpush1.xpose.msra.mxu0 0.0
  %3470 = vmatprep.subr.mxu0 0.0
  %3471 = vmatpush1.xpose.msra.mxu0 0.0
  %3472 = vmatprep.subr.mxu0 0.0
  %3473 = vmatpush1.xpose.msra.mxu0 0.0
  %3474 = vmatprep.subr.mxu0 0.0
  %3475 = vmatpush1.xpose.msra.mxu0 0.0
  %3476 = vmatprep.subr.mxu0 0.0
  %3477 = vmatpush1.xpose.msra.mxu0 0.0
  %3478 = vmatprep.subr.mxu0 0.0
  %3479 = vmatpush1.xpose.msra.mxu0 0.0
  %3480 = vmatprep.subr.mxu0 0.0
  %3481 = vmatpush1.xpose.msra.mxu0 0.0
  %3482 = vmatprep.subr.mxu0 0.0
  %3483 = vmatpush1.xpose.msra.mxu0 0.0
  %3484 = vmatprep.subr.mxu0 0.0
  %3485 = vmatpush1.xpose.msra.mxu0 0.0
  %3486 = vmatprep.subr.mxu0 0.0
  %3487 = vmatpush1.xpose.msra.mxu0 0.0
  %3488 = vmatprep.subr.mxu0 0.0
  %3489 = vmatpush1.xpose.msra.mxu0 0.0
  %3490 = vmatprep.subr.mxu0 0.0
  %3491 = vmatpush1.xpose.msra.mxu0 0.0
  %3492 = vmatprep.subr.mxu0 0.0
  %3493 = vmatpush1.xpose.msra.mxu0 0.0
  %3494 = vmatprep.subr.mxu0 0.0
  %3495 = vmatpush1.xpose.msra.mxu0 0.0
  %3496 = vmatprep.subr.mxu0 0.0
  %3497 = vmatpush1.xpose.msra.mxu0 0.0
  %3498 = vmatprep.subr.mxu0 0.0
  %3499 = vmatpush1.xpose.msra.mxu0 0.0
  %3500 = vmatprep.subr.mxu0 0.0
  %3501 = vmatpush1.xpose.msra.mxu0 0.0
  %3502 = vmatprep.subr.mxu0 0.0
  %3503 = vmatpush1.xpose.msra.mxu0 0.0
  %3504 = vmatprep.subr.mxu0 0.0
  %3505 = vmatpush1.xpose.msra.mxu0 0.0
  %3506 = vmatprep.subr.mxu0 0.0
  %3507 = vmatpush1.xpose.msra.mxu0 0.0
  %3508 = vmatprep.subr.mxu0 0.0
  %3509 = vmatpush1.xpose.msra.mxu0 0.0
  %3510 = vmatprep.subr.mxu0 0.0
  %3511 = vmatpush1.xpose.msra.mxu0 0.0
  %3512 = vmatprep.subr.mxu0 0.0
  %3513 = vmatpush1.xpose.msra.mxu0 0.0
  %3514 = vmatprep.subr.mxu0 0.0
  %3515 = vmatpush1.xpose.msra.mxu0 0.0
  %3516 = vmatprep.subr.mxu0 0.0
  %3517 = vmatpush1.xpose.msra.mxu0 0.0
  %3518 = vmatprep.subr.mxu0 0.0
  %3519 = vmatpush1.xpose.msra.mxu0 0.0
  %3520 = vmatprep.subr.mxu0 0.0
  %3521 = vmatpush1.xpose.msra.mxu0 0.0
  %3522 = vmatprep.subr.mxu0 0.0
  %3523 = vmatpush1.xpose.msra.mxu0 0.0
  %3524 = vmatprep.subr.mxu0 0.0
  %3525 = vmatpush1.xpose.msra.mxu0 0.0
  %3526 = vmatprep.subr.mxu0 0.0
  %3527 = vmatpush1.xpose.msra.mxu0 0.0
  %3528 = vmatprep.mubr.f32.mxu0 0.0
  %3529 = vmatmul.mubr.f32.gmra.mrb[0].mxu0 %v3459
  %v3530 = vpop.f32.mrb[0].mxu0
  %v3531 = vadd.f32 %v37, %v3530
  %v3532 = vpop.f32.mrb[0].mxu0
  %3533 = vdwg.mxu0
  %v3535 = vsel %vm1032, %v2722, 0
  %v3538 = vsel %vm1032, %v3014, 0
  %3540 = vmatprep.subr.mxu0 0.0
  %3541 = vmatpush1.xpose.msra.mxu0 %v3538
  %3542 = vmatprep.subr.mxu0 0.0
  %3543 = vmatpush1.xpose.msra.mxu0 0.0
  %3544 = vmatprep.subr.mxu0 0.0
  %3545 = vmatpush1.xpose.msra.mxu0 0.0
  %3546 = vmatprep.subr.mxu0 0.0
  %3547 = vmatpush1.xpose.msra.mxu0 0.0
  %3548 = vmatprep.subr.mxu0 0.0
  %3549 = vmatpush1.xpose.msra.mxu0 0.0
  %3550 = vmatprep.subr.mxu0 0.0
  %3551 = vmatpush1.xpose.msra.mxu0 0.0
  %3552 = vmatprep.subr.mxu0 0.0
  %3553 = vmatpush1.xpose.msra.mxu0 0.0
  %3554 = vmatprep.subr.mxu0 0.0
  %3555 = vmatpush1.xpose.msra.mxu0 0.0
  %3556 = vmatprep.subr.mxu0 0.0
  %3557 = vmatpush1.xpose.msra.mxu0 0.0
  %3558 = vmatprep.subr.mxu0 0.0
  %3559 = vmatpush1.xpose.msra.mxu0 0.0
  %3560 = vmatprep.subr.mxu0 0.0
  %3561 = vmatpush1.xpose.msra.mxu0 0.0
  %3562 = vmatprep.subr.mxu0 0.0
  %3563 = vmatpush1.xpose.msra.mxu0 0.0
  %3564 = vmatprep.subr.mxu0 0.0
  %3565 = vmatpush1.xpose.msra.mxu0 0.0
  %3566 = vmatprep.subr.mxu0 0.0
  %3567 = vmatpush1.xpose.msra.mxu0 0.0
  %3568 = vmatprep.subr.mxu0 0.0
  %3569 = vmatpush1.xpose.msra.mxu0 0.0
  %3570 = vmatprep.subr.mxu0 0.0
  %3571 = vmatpush1.xpose.msra.mxu0 0.0
  %3572 = vmatprep.subr.mxu0 0.0
  %3573 = vmatpush1.xpose.msra.mxu0 0.0
  %3574 = vmatprep.subr.mxu0 0.0
  %3575 = vmatpush1.xpose.msra.mxu0 0.0
  %3576 = vmatprep.subr.mxu0 0.0
  %3577 = vmatpush1.xpose.msra.mxu0 0.0
  %3578 = vmatprep.subr.mxu0 0.0
  %3579 = vmatpush1.xpose.msra.mxu0 0.0
  %3580 = vmatprep.subr.mxu0 0.0
  %3581 = vmatpush1.xpose.msra.mxu0 0.0
  %3582 = vmatprep.subr.mxu0 0.0
  %3583 = vmatpush1.xpose.msra.mxu0 0.0
  %3584 = vmatprep.subr.mxu0 0.0
  %3585 = vmatpush1.xpose.msra.mxu0 0.0
  %3586 = vmatprep.subr.mxu0 0.0
  %3587 = vmatpush1.xpose.msra.mxu0 0.0
  %3588 = vmatprep.subr.mxu0 0.0
  %3589 = vmatpush1.xpose.msra.mxu0 0.0
  %3590 = vmatprep.subr.mxu0 0.0
  %3591 = vmatpush1.xpose.msra.mxu0 0.0
  %3592 = vmatprep.subr.mxu0 0.0
  %3593 = vmatpush1.xpose.msra.mxu0 0.0
  %3594 = vmatprep.subr.mxu0 0.0
  %3595 = vmatpush1.xpose.msra.mxu0 0.0
  %3596 = vmatprep.subr.mxu0 0.0
  %3597 = vmatpush1.xpose.msra.mxu0 0.0
  %3598 = vmatprep.subr.mxu0 0.0
  %3599 = vmatpush1.xpose.msra.mxu0 0.0
  %3600 = vmatprep.subr.mxu0 0.0
  %3601 = vmatpush1.xpose.msra.mxu0 0.0
  %3602 = vmatprep.subr.mxu0 0.0
  %3603 = vmatpush1.xpose.msra.mxu0 0.0
  %3604 = vmatprep.mubr.f32.mxu0 0.0
  %3605 = vmatmul.mubr.f32.gmra.mrb[0].mxu0 %v3535
  %v3606 = vpop.f32.mrb[0].mxu0
  %v3607 = vadd.f32 %v38, %v3606
  %v3608 = vpop.f32.mrb[0].mxu0
  %3609 = vdwg.mxu0
  %v3611 = vsel %vm1032, %v2795, 0
  %v3614 = vsel %vm1032, %v3087, 0
  %3616 = vmatprep.subr.mxu0 0.0
  %3617 = vmatpush1.xpose.msra.mxu0 %v3614
  %3618 = vmatprep.subr.mxu0 0.0
  %3619 = vmatpush1.xpose.msra.mxu0 0.0
  %3620 = vmatprep.subr.mxu0 0.0
  %3621 = vmatpush1.xpose.msra.mxu0 0.0
  %3622 = vmatprep.subr.mxu0 0.0
  %3623 = vmatpush1.xpose.msra.mxu0 0.0
  %3624 = vmatprep.subr.mxu0 0.0
  %3625 = vmatpush1.xpose.msra.mxu0 0.0
  %3626 = vmatprep.subr.mxu0 0.0
  %3627 = vmatpush1.xpose.msra.mxu0 0.0
  %3628 = vmatprep.subr.mxu0 0.0
  %3629 = vmatpush1.xpose.msra.mxu0 0.0
  %3630 = vmatprep.subr.mxu0 0.0
  %3631 = vmatpush1.xpose.msra.mxu0 0.0
  %3632 = vmatprep.subr.mxu0 0.0
  %3633 = vmatpush1.xpose.msra.mxu0 0.0
  %3634 = vmatprep.subr.mxu0 0.0
  %3635 = vmatpush1.xpose.msra.mxu0 0.0
  %3636 = vmatprep.subr.mxu0 0.0
  %3637 = vmatpush1.xpose.msra.mxu0 0.0
  %3638 = vmatprep.subr.mxu0 0.0
  %3639 = vmatpush1.xpose.msra.mxu0 0.0
  %3640 = vmatprep.subr.mxu0 0.0
  %3641 = vmatpush1.xpose.msra.mxu0 0.0
  %3642 = vmatprep.subr.mxu0 0.0
  %3643 = vmatpush1.xpose.msra.mxu0 0.0
  %3644 = vmatprep.subr.mxu0 0.0
  %3645 = vmatpush1.xpose.msra.mxu0 0.0
  %3646 = vmatprep.subr.mxu0 0.0
  %3647 = vmatpush1.xpose.msra.mxu0 0.0
  %3648 = vmatprep.subr.mxu0 0.0
  %3649 = vmatpush1.xpose.msra.mxu0 0.0
  %3650 = vmatprep.subr.mxu0 0.0
  %3651 = vmatpush1.xpose.msra.mxu0 0.0
  %3652 = vmatprep.subr.mxu0 0.0
  %3653 = vmatpush1.xpose.msra.mxu0 0.0
  %3654 = vmatprep.subr.mxu0 0.0
  %3655 = vmatpush1.xpose.msra.mxu0 0.0
  %3656 = vmatprep.subr.mxu0 0.0
  %3657 = vmatpush1.xpose.msra.mxu0 0.0
  %3658 = vmatprep.subr.mxu0 0.0
  %3659 = vmatpush1.xpose.msra.mxu0 0.0
  %3660 = vmatprep.subr.mxu0 0.0
  %3661 = vmatpush1.xpose.msra.mxu0 0.0
  %3662 = vmatprep.subr.mxu0 0.0
  %3663 = vmatpush1.xpose.msra.mxu0 0.0
  %3664 = vmatprep.subr.mxu0 0.0
  %3665 = vmatpush1.xpose.msra.mxu0 0.0
  %3666 = vmatprep.subr.mxu0 0.0
  %3667 = vmatpush1.xpose.msra.mxu0 0.0
  %3668 = vmatprep.subr.mxu0 0.0
  %3669 = vmatpush1.xpose.msra.mxu0 0.0
  %3670 = vmatprep.subr.mxu0 0.0
  %3671 = vmatpush1.xpose.msra.mxu0 0.0
  %3672 = vmatprep.subr.mxu0 0.0
  %3673 = vmatpush1.xpose.msra.mxu0 0.0
  %3674 = vmatprep.subr.mxu0 0.0
  %3675 = vmatpush1.xpose.msra.mxu0 0.0
  %3676 = vmatprep.subr.mxu0 0.0
  %3677 = vmatpush1.xpose.msra.mxu0 0.0
  %3678 = vmatprep.subr.mxu0 0.0
  %3679 = vmatpush1.xpose.msra.mxu0 0.0
  %3680 = vmatprep.mubr.f32.mxu0 0.0
  %3681 = vmatmul.mubr.f32.gmra.mrb[0].mxu0 %v3611
  %v3682 = vpop.f32.mrb[0].mxu0
  %v3683 = vadd.f32 %v39, %v3682
  %v3684 = vpop.f32.mrb[0].mxu0
  %3685 = vdwg.mxu0
  %v3686 = vsel %vm1337, %v3455, -inf
  %3687 = vmax.xlane.f32.xlu0 %v3686
  %v3688 = vpop.xlane.xlu0 %3687
  %v3689 = vsel %vm1337, %v3531, -inf
  %3690 = vmax.xlane.f32.xlu0 %v3689
  %v3691 = vpop.xlane.xlu0 %3690
  %v3692 = vsel %vm1337, %v3607, -inf
  %3693 = vmax.xlane.f32.xlu0 %v3692
  %v3694 = vpop.xlane.xlu0 %3693
  %v3695 = vsel %vm1337, %v3683, -inf
  %3696 = vmax.xlane.f32.xlu0 %v3695
  %v3697 = vpop.xlane.xlu0 %3696
  %v3698 = vsub.f32 %v3455, %v3688
  %v3699 = vsub.f32 %v3531, %v3691
  %v3700 = vsub.f32 %v3607, %v3694
  %v3701 = vsub.f32 %v3683, %v3697
  %v3702 = vmul.f32 %v3698, 1.442695
  %v3703 = vpow.pop %v3702
  %v3704 = vmul.f32 %v3699, 1.442695
  %v3705 = vpow.pop %v3704
  %v3706 = vmul.f32 %v3700, 1.442695
  %v3707 = vpow.pop %v3706
  %v3708 = vmul.f32 %v3701, 1.442695
  %v3709 = vpow.pop %v3708
  %v3710 = vsel %vm1337, %v3703, 0.0
  %3711 = vadd.xlane.f32.xlu0 %v3710
  %v3712 = vpop.xlane.xlu0 %3711
  %v3713 = vsel %vm1337, %v3705, 0.0
  %3714 = vadd.xlane.f32.xlu0 %v3713
  %v3715 = vpop.xlane.xlu0 %3714
  %v3716 = vsel %vm1337, %v3707, 0.0
  %3717 = vadd.xlane.f32.xlu0 %v3716
  %v3718 = vpop.xlane.xlu0 %3717
  %v3719 = vsel %vm1337, %v3709, 0.0
  %3720 = vadd.xlane.f32.xlu0 %v3719
  %v3721 = vpop.xlane.xlu0 %3720
  %v3722 = vrcp.pop %v3712
  %v3723 = vrcp.pop %v3715
  %v3724 = vrcp.pop %v3718
  %v3725 = vrcp.pop %v3721
  %v3726 = vmul.f32 %v3703, %v3722
  %v3727 = vmul.f32 %v3705, %v3723
  %v3728 = vmul.f32 %v3707, %v3724
  %v3729 = vmul.f32 %v3709, %v3725
  %s3730 = scalar_lea.vmem %s10, 32
  %3731 = vst.msk [vmem:[%s3730] sm:$0x1f] %vm1337, %v3726
  %3732 = vst.msk [vmem:[%s3730 + $0x8] sm:$0x1f] %vm1337, %v3727
  %3733 = vst.msk [vmem:[%s3730 + $0x10] sm:$0x1f] %vm1337, %v3728
  %3734 = vst.msk [vmem:[%s3730 + $0x18] sm:$0x1f] %vm1337, %v3729
  %v3736 = vsel %vm1386, %v3726, 0
  %v3739 = vsel %vm1390, %v3160, 0
  %3741 = vmatprep.subr.mxu0 0.0
  %3742 = vmatpush1.msra.mxu0 %v3739
  %3743 = vmatprep.subr.mxu0 0.0
  %3744 = vmatpush1.msra.mxu0 0.0
  %3745 = vmatprep.subr.mxu0 0.0
  %3746 = vmatpush1.msra.mxu0 0.0
  %3747 = vmatprep.subr.mxu0 0.0
  %3748 = vmatpush1.msra.mxu0 0.0
  %3749 = vmatprep.subr.mxu0 0.0
  %3750 = vmatpush1.msra.mxu0 0.0
  %3751 = vmatprep.subr.mxu0 0.0
  %3752 = vmatpush1.msra.mxu0 0.0
  %3753 = vmatprep.subr.mxu0 0.0
  %3754 = vmatpush1.msra.mxu0 0.0
  %3755 = vmatprep.subr.mxu0 0.0
  %3756 = vmatpush1.msra.mxu0 0.0
  %3757 = vmatprep.subr.mxu0 0.0
  %3758 = vmatpush1.msra.mxu0 0.0
  %3759 = vmatprep.subr.mxu0 0.0
  %3760 = vmatpush1.msra.mxu0 0.0
  %3761 = vmatprep.subr.mxu0 0.0
  %3762 = vmatpush1.msra.mxu0 0.0
  %3763 = vmatprep.subr.mxu0 0.0
  %3764 = vmatpush1.msra.mxu0 0.0
  %3765 = vmatprep.subr.mxu0 0.0
  %3766 = vmatpush1.msra.mxu0 0.0
  %3767 = vmatprep.subr.mxu0 0.0
  %3768 = vmatpush1.msra.mxu0 0.0
  %3769 = vmatprep.subr.mxu0 0.0
  %3770 = vmatpush1.msra.mxu0 0.0
  %3771 = vmatprep.subr.mxu0 0.0
  %3772 = vmatpush1.msra.mxu0 0.0
  %3773 = vmatprep.subr.mxu0 0.0
  %3774 = vmatpush1.msra.mxu0 0.0
  %3775 = vmatprep.subr.mxu0 0.0
  %3776 = vmatpush1.msra.mxu0 0.0
  %3777 = vmatprep.subr.mxu0 0.0
  %3778 = vmatpush1.msra.mxu0 0.0
  %3779 = vmatprep.subr.mxu0 0.0
  %3780 = vmatpush1.msra.mxu0 0.0
  %3781 = vmatprep.subr.mxu0 0.0
  %3782 = vmatpush1.msra.mxu0 0.0
  %3783 = vmatprep.subr.mxu0 0.0
  %3784 = vmatpush1.msra.mxu0 0.0
  %3785 = vmatprep.subr.mxu0 0.0
  %3786 = vmatpush1.msra.mxu0 0.0
  %3787 = vmatprep.subr.mxu0 0.0
  %3788 = vmatpush1.msra.mxu0 0.0
  %3789 = vmatprep.subr.mxu0 0.0
  %3790 = vmatpush1.msra.mxu0 0.0
  %3791 = vmatprep.subr.mxu0 0.0
  %3792 = vmatpush1.msra.mxu0 0.0
  %3793 = vmatprep.subr.mxu0 0.0
  %3794 = vmatpush1.msra.mxu0 0.0
  %3795 = vmatprep.subr.mxu0 0.0
  %3796 = vmatpush1.msra.mxu0 0.0
  %3797 = vmatprep.subr.mxu0 0.0
  %3798 = vmatpush1.msra.mxu0 0.0
  %3799 = vmatprep.subr.mxu0 0.0
  %3800 = vmatpush1.msra.mxu0 0.0
  %3801 = vmatprep.subr.mxu0 0.0
  %3802 = vmatpush1.msra.mxu0 0.0
  %3803 = vmatprep.subr.mxu0 0.0
  %3804 = vmatpush1.msra.mxu0 0.0
  %3805 = vmatprep.mubr.f32.mxu0 0.0
  %3806 = vmatmul.mubr.f32.gmra.mrb[0].mxu0 %v3736
  %v3807 = vpop.f32.mrb[0].mxu0
  %v3808 = vadd.f32 0.0, %v3807
  %v3809 = vpop.f32.mrb[0].mxu0
  %3810 = vdwg.mxu0
  %v3812 = vsel %vm1386, %v3727, 0
  %v3815 = vsel %vm1390, %v3233, 0
  %3817 = vmatprep.subr.mxu0 0.0
  %3818 = vmatpush1.msra.mxu0 %v3815
  %3819 = vmatprep.subr.mxu0 0.0
  %3820 = vmatpush1.msra.mxu0 0.0
  %3821 = vmatprep.subr.mxu0 0.0
  %3822 = vmatpush1.msra.mxu0 0.0
  %3823 = vmatprep.subr.mxu0 0.0
  %3824 = vmatpush1.msra.mxu0 0.0
  %3825 = vmatprep.subr.mxu0 0.0
  %3826 = vmatpush1.msra.mxu0 0.0
  %3827 = vmatprep.subr.mxu0 0.0
  %3828 = vmatpush1.msra.mxu0 0.0
  %3829 = vmatprep.subr.mxu0 0.0
  %3830 = vmatpush1.msra.mxu0 0.0
  %3831 = vmatprep.subr.mxu0 0.0
  %3832 = vmatpush1.msra.mxu0 0.0
  %3833 = vmatprep.subr.mxu0 0.0
  %3834 = vmatpush1.msra.mxu0 0.0
  %3835 = vmatprep.subr.mxu0 0.0
  %3836 = vmatpush1.msra.mxu0 0.0
  %3837 = vmatprep.subr.mxu0 0.0
  %3838 = vmatpush1.msra.mxu0 0.0
  %3839 = vmatprep.subr.mxu0 0.0
  %3840 = vmatpush1.msra.mxu0 0.0
  %3841 = vmatprep.subr.mxu0 0.0
  %3842 = vmatpush1.msra.mxu0 0.0
  %3843 = vmatprep.subr.mxu0 0.0
  %3844 = vmatpush1.msra.mxu0 0.0
  %3845 = vmatprep.subr.mxu0 0.0
  %3846 = vmatpush1.msra.mxu0 0.0
  %3847 = vmatprep.subr.mxu0 0.0
  %3848 = vmatpush1.msra.mxu0 0.0
  %3849 = vmatprep.subr.mxu0 0.0
  %3850 = vmatpush1.msra.mxu0 0.0
  %3851 = vmatprep.subr.mxu0 0.0
  %3852 = vmatpush1.msra.mxu0 0.0
  %3853 = vmatprep.subr.mxu0 0.0
  %3854 = vmatpush1.msra.mxu0 0.0
  %3855 = vmatprep.subr.mxu0 0.0
  %3856 = vmatpush1.msra.mxu0 0.0
  %3857 = vmatprep.subr.mxu0 0.0
  %3858 = vmatpush1.msra.mxu0 0.0
  %3859 = vmatprep.subr.mxu0 0.0
  %3860 = vmatpush1.msra.mxu0 0.0
  %3861 = vmatprep.subr.mxu0 0.0
  %3862 = vmatpush1.msra.mxu0 0.0
  %3863 = vmatprep.subr.mxu0 0.0
  %3864 = vmatpush1.msra.mxu0 0.0
  %3865 = vmatprep.subr.mxu0 0.0
  %3866 = vmatpush1.msra.mxu0 0.0
  %3867 = vmatprep.subr.mxu0 0.0
  %3868 = vmatpush1.msra.mxu0 0.0
  %3869 = vmatprep.subr.mxu0 0.0
  %3870 = vmatpush1.msra.mxu0 0.0
  %3871 = vmatprep.subr.mxu0 0.0
  %3872 = vmatpush1.msra.mxu0 0.0
  %3873 = vmatprep.subr.mxu0 0.0
  %3874 = vmatpush1.msra.mxu0 0.0
  %3875 = vmatprep.subr.mxu0 0.0
  %3876 = vmatpush1.msra.mxu0 0.0
  %3877 = vmatprep.subr.mxu0 0.0
  %3878 = vmatpush1.msra.mxu0 0.0
  %3879 = vmatprep.subr.mxu0 0.0
  %3880 = vmatpush1.msra.mxu0 0.0
  %3881 = vmatprep.mubr.f32.mxu0 0.0
  %3882 = vmatmul.mubr.f32.gmra.mrb[0].mxu0 %v3812
  %v3883 = vpop.f32.mrb[0].mxu0
  %v3884 = vadd.f32 0.0, %v3883
  %v3885 = vpop.f32.mrb[0].mxu0
  %3886 = vdwg.mxu0
  %v3888 = vsel %vm1386, %v3728, 0
  %v3891 = vsel %vm1390, %v3306, 0
  %3893 = vmatprep.subr.mxu0 0.0
  %3894 = vmatpush1.msra.mxu0 %v3891
  %3895 = vmatprep.subr.mxu0 0.0
  %3896 = vmatpush1.msra.mxu0 0.0
  %3897 = vmatprep.subr.mxu0 0.0
  %3898 = vmatpush1.msra.mxu0 0.0
  %3899 = vmatprep.subr.mxu0 0.0
  %3900 = vmatpush1.msra.mxu0 0.0
  %3901 = vmatprep.subr.mxu0 0.0
  %3902 = vmatpush1.msra.mxu0 0.0
  %3903 = vmatprep.subr.mxu0 0.0
  %3904 = vmatpush1.msra.mxu0 0.0
  %3905 = vmatprep.subr.mxu0 0.0
  %3906 = vmatpush1.msra.mxu0 0.0
  %3907 = vmatprep.subr.mxu0 0.0
  %3908 = vmatpush1.msra.mxu0 0.0
  %3909 = vmatprep.subr.mxu0 0.0
  %3910 = vmatpush1.msra.mxu0 0.0
  %3911 = vmatprep.subr.mxu0 0.0
  %3912 = vmatpush1.msra.mxu0 0.0
  %3913 = vmatprep.subr.mxu0 0.0
  %3914 = vmatpush1.msra.mxu0 0.0
  %3915 = vmatprep.subr.mxu0 0.0
  %3916 = vmatpush1.msra.mxu0 0.0
  %3917 = vmatprep.subr.mxu0 0.0
  %3918 = vmatpush1.msra.mxu0 0.0
  %3919 = vmatprep.subr.mxu0 0.0
  %3920 = vmatpush1.msra.mxu0 0.0
  %3921 = vmatprep.subr.mxu0 0.0
  %3922 = vmatpush1.msra.mxu0 0.0
  %3923 = vmatprep.subr.mxu0 0.0
  %3924 = vmatpush1.msra.mxu0 0.0
  %3925 = vmatprep.subr.mxu0 0.0
  %3926 = vmatpush1.msra.mxu0 0.0
  %3927 = vmatprep.subr.mxu0 0.0
  %3928 = vmatpush1.msra.mxu0 0.0
  %3929 = vmatprep.subr.mxu0 0.0
  %3930 = vmatpush1.msra.mxu0 0.0
  %3931 = vmatprep.subr.mxu0 0.0
  %3932 = vmatpush1.msra.mxu0 0.0
  %3933 = vmatprep.subr.mxu0 0.0
  %3934 = vmatpush1.msra.mxu0 0.0
  %3935 = vmatprep.subr.mxu0 0.0
  %3936 = vmatpush1.msra.mxu0 0.0
  %3937 = vmatprep.subr.mxu0 0.0
  %3938 = vmatpush1.msra.mxu0 0.0
  %3939 = vmatprep.subr.mxu0 0.0
  %3940 = vmatpush1.msra.mxu0 0.0
  %3941 = vmatprep.subr.mxu0 0.0
  %3942 = vmatpush1.msra.mxu0 0.0
  %3943 = vmatprep.subr.mxu0 0.0
  %3944 = vmatpush1.msra.mxu0 0.0
  %3945 = vmatprep.subr.mxu0 0.0
  %3946 = vmatpush1.msra.mxu0 0.0
  %3947 = vmatprep.subr.mxu0 0.0
  %3948 = vmatpush1.msra.mxu0 0.0
  %3949 = vmatprep.subr.mxu0 0.0
  %3950 = vmatpush1.msra.mxu0 0.0
  %3951 = vmatprep.subr.mxu0 0.0
  %3952 = vmatpush1.msra.mxu0 0.0
  %3953 = vmatprep.subr.mxu0 0.0
  %3954 = vmatpush1.msra.mxu0 0.0
  %3955 = vmatprep.subr.mxu0 0.0
  %3956 = vmatpush1.msra.mxu0 0.0
  %3957 = vmatprep.mubr.f32.mxu0 0.0
  %3958 = vmatmul.mubr.f32.gmra.mrb[0].mxu0 %v3888
  %v3959 = vpop.f32.mrb[0].mxu0
  %v3960 = vadd.f32 0.0, %v3959
  %v3961 = vpop.f32.mrb[0].mxu0
  %3962 = vdwg.mxu0
  %v3964 = vsel %vm1386, %v3729, 0
  %v3967 = vsel %vm1390, %v3379, 0
  %3969 = vmatprep.subr.mxu0 0.0
  %3970 = vmatpush1.msra.mxu0 %v3967
  %3971 = vmatprep.subr.mxu0 0.0
  %3972 = vmatpush1.msra.mxu0 0.0
  %3973 = vmatprep.subr.mxu0 0.0
  %3974 = vmatpush1.msra.mxu0 0.0
  %3975 = vmatprep.subr.mxu0 0.0
  %3976 = vmatpush1.msra.mxu0 0.0
  %3977 = vmatprep.subr.mxu0 0.0
  %3978 = vmatpush1.msra.mxu0 0.0
  %3979 = vmatprep.subr.mxu0 0.0
  %3980 = vmatpush1.msra.mxu0 0.0
  %3981 = vmatprep.subr.mxu0 0.0
  %3982 = vmatpush1.msra.mxu0 0.0
  %3983 = vmatprep.subr.mxu0 0.0
  %3984 = vmatpush1.msra.mxu0 0.0
  %3985 = vmatprep.subr.mxu0 0.0
  %3986 = vmatpush1.msra.mxu0 0.0
  %3987 = vmatprep.subr.mxu0 0.0
  %3988 = vmatpush1.msra.mxu0 0.0
  %3989 = vmatprep.subr.mxu0 0.0
  %3990 = vmatpush1.msra.mxu0 0.0
  %3991 = vmatprep.subr.mxu0 0.0
  %3992 = vmatpush1.msra.mxu0 0.0
  %3993 = vmatprep.subr.mxu0 0.0
  %3994 = vmatpush1.msra.mxu0 0.0
  %3995 = vmatprep.subr.mxu0 0.0
  %3996 = vmatpush1.msra.mxu0 0.0
  %3997 = vmatprep.subr.mxu0 0.0
  %3998 = vmatpush1.msra.mxu0 0.0
  %3999 = vmatprep.subr.mxu0 0.0
  %4000 = vmatpush1.msra.mxu0 0.0
  %4001 = vmatprep.subr.mxu0 0.0
  %4002 = vmatpush1.msra.mxu0 0.0
  %4003 = vmatprep.subr.mxu0 0.0
  %4004 = vmatpush1.msra.mxu0 0.0
  %4005 = vmatprep.subr.mxu0 0.0
  %4006 = vmatpush1.msra.mxu0 0.0
  %4007 = vmatprep.subr.mxu0 0.0
  %4008 = vmatpush1.msra.mxu0 0.0
  %4009 = vmatprep.subr.mxu0 0.0
  %4010 = vmatpush1.msra.mxu0 0.0
  %4011 = vmatprep.subr.mxu0 0.0
  %4012 = vmatpush1.msra.mxu0 0.0
  %4013 = vmatprep.subr.mxu0 0.0
  %4014 = vmatpush1.msra.mxu0 0.0
  %4015 = vmatprep.subr.mxu0 0.0
  %4016 = vmatpush1.msra.mxu0 0.0
  %4017 = vmatprep.subr.mxu0 0.0
  %4018 = vmatpush1.msra.mxu0 0.0
  %4019 = vmatprep.subr.mxu0 0.0
  %4020 = vmatpush1.msra.mxu0 0.0
  %4021 = vmatprep.subr.mxu0 0.0
  %4022 = vmatpush1.msra.mxu0 0.0
  %4023 = vmatprep.subr.mxu0 0.0
  %4024 = vmatpush1.msra.mxu0 0.0
  %4025 = vmatprep.subr.mxu0 0.0
  %4026 = vmatpush1.msra.mxu0 0.0
  %4027 = vmatprep.subr.mxu0 0.0
  %4028 = vmatpush1.msra.mxu0 0.0
  %4029 = vmatprep.subr.mxu0 0.0
  %4030 = vmatpush1.msra.mxu0 0.0
  %4031 = vmatprep.subr.mxu0 0.0
  %4032 = vmatpush1.msra.mxu0 0.0
  %4033 = vmatprep.mubr.f32.mxu0 0.0
  %4034 = vmatmul.mubr.f32.gmra.mrb[0].mxu0 %v3964
  %v4035 = vpop.f32.mrb[0].mxu0
  %v4036 = vadd.f32 0.0, %v4035
  %v4037 = vpop.f32.mrb[0].mxu0
  %4038 = vdwg.mxu0
  %v4040 = vsel %vm1032, %v3808, 0
  %4042 = vmatprep.subr.mxu0 0.0
  %4043 = vmatpush1.msra.mxu0 %v2412
  %4044 = vmatprep.subr.mxu0 0.0
  %4045 = vmatpush1.msra.mxu0 0.0
  %4046 = vmatprep.subr.mxu0 0.0
  %4047 = vmatpush1.msra.mxu0 0.0
  %4048 = vmatprep.subr.mxu0 0.0
  %4049 = vmatpush1.msra.mxu0 0.0
  %4050 = vmatprep.subr.mxu0 0.0
  %4051 = vmatpush1.msra.mxu0 0.0
  %4052 = vmatprep.subr.mxu0 0.0
  %4053 = vmatpush1.msra.mxu0 0.0
  %4054 = vmatprep.subr.mxu0 0.0
  %4055 = vmatpush1.msra.mxu0 0.0
  %4056 = vmatprep.subr.mxu0 0.0
  %4057 = vmatpush1.msra.mxu0 0.0
  %4058 = vmatprep.subr.mxu0 0.0
  %4059 = vmatpush1.msra.mxu0 0.0
  %4060 = vmatprep.subr.mxu0 0.0
  %4061 = vmatpush1.msra.mxu0 0.0
  %4062 = vmatprep.subr.mxu0 0.0
  %4063 = vmatpush1.msra.mxu0 0.0
  %4064 = vmatprep.subr.mxu0 0.0
  %4065 = vmatpush1.msra.mxu0 0.0
  %4066 = vmatprep.subr.mxu0 0.0
  %4067 = vmatpush1.msra.mxu0 0.0
  %4068 = vmatprep.subr.mxu0 0.0
  %4069 = vmatpush1.msra.mxu0 0.0
  %4070 = vmatprep.subr.mxu0 0.0
  %4071 = vmatpush1.msra.mxu0 0.0
  %4072 = vmatprep.subr.mxu0 0.0
  %4073 = vmatpush1.msra.mxu0 0.0
  %4074 = vmatprep.subr.mxu0 0.0
  %4075 = vmatpush1.msra.mxu0 0.0
  %4076 = vmatprep.subr.mxu0 0.0
  %4077 = vmatpush1.msra.mxu0 0.0
  %4078 = vmatprep.subr.mxu0 0.0
  %4079 = vmatpush1.msra.mxu0 0.0
  %4080 = vmatprep.subr.mxu0 0.0
  %4081 = vmatpush1.msra.mxu0 0.0
  %4082 = vmatprep.subr.mxu0 0.0
  %4083 = vmatpush1.msra.mxu0 0.0
  %4084 = vmatprep.subr.mxu0 0.0
  %4085 = vmatpush1.msra.mxu0 0.0
  %4086 = vmatprep.subr.mxu0 0.0
  %4087 = vmatpush1.msra.mxu0 0.0
  %4088 = vmatprep.subr.mxu0 0.0
  %4089 = vmatpush1.msra.mxu0 0.0
  %4090 = vmatprep.subr.mxu0 0.0
  %4091 = vmatpush1.msra.mxu0 0.0
  %4092 = vmatprep.subr.mxu0 0.0
  %4093 = vmatpush1.msra.mxu0 0.0
  %4094 = vmatprep.subr.mxu0 0.0
  %4095 = vmatpush1.msra.mxu0 0.0
  %4096 = vmatprep.subr.mxu0 0.0
  %4097 = vmatpush1.msra.mxu0 0.0
  %4098 = vmatprep.subr.mxu0 0.0
  %4099 = vmatpush1.msra.mxu0 0.0
  %4100 = vmatprep.subr.mxu0 0.0
  %4101 = vmatpush1.msra.mxu0 0.0
  %4102 = vmatprep.subr.mxu0 0.0
  %4103 = vmatpush1.msra.mxu0 0.0
  %4104 = vmatprep.subr.mxu0 0.0
  %4105 = vmatpush1.msra.mxu0 0.0
  %4106 = vmatprep.mubr.f32.mxu0 0.0
  %4107 = vmatmul.mubr.f32.gmra.mrb[0].mxu0 %v4040
  %v4108 = vpop.f32.mrb[0].mxu0
  %v4109 = vadd.f32 0.0, %v4108
  %v4110 = vpop.f32.mrb[0].mxu0
  %4111 = vdwg.mxu0
  %v4113 = vsel %vm1032, %v3884, 0
  %4115 = vmatprep.subr.mxu0 0.0
  %4116 = vmatpush1.msra.mxu0 %v2413
  %4117 = vmatprep.subr.mxu0 0.0
  %4118 = vmatpush1.msra.mxu0 0.0
  %4119 = vmatprep.subr.mxu0 0.0
  %4120 = vmatpush1.msra.mxu0 0.0
  %4121 = vmatprep.subr.mxu0 0.0
  %4122 = vmatpush1.msra.mxu0 0.0
  %4123 = vmatprep.subr.mxu0 0.0
  %4124 = vmatpush1.msra.mxu0 0.0
  %4125 = vmatprep.subr.mxu0 0.0
  %4126 = vmatpush1.msra.mxu0 0.0
  %4127 = vmatprep.subr.mxu0 0.0
  %4128 = vmatpush1.msra.mxu0 0.0
  %4129 = vmatprep.subr.mxu0 0.0
  %4130 = vmatpush1.msra.mxu0 0.0
  %4131 = vmatprep.subr.mxu0 0.0
  %4132 = vmatpush1.msra.mxu0 0.0
  %4133 = vmatprep.subr.mxu0 0.0
  %4134 = vmatpush1.msra.mxu0 0.0
  %4135 = vmatprep.subr.mxu0 0.0
  %4136 = vmatpush1.msra.mxu0 0.0
  %4137 = vmatprep.subr.mxu0 0.0
  %4138 = vmatpush1.msra.mxu0 0.0
  %4139 = vmatprep.subr.mxu0 0.0
  %4140 = vmatpush1.msra.mxu0 0.0
  %4141 = vmatprep.subr.mxu0 0.0
  %4142 = vmatpush1.msra.mxu0 0.0
  %4143 = vmatprep.subr.mxu0 0.0
  %4144 = vmatpush1.msra.mxu0 0.0
  %4145 = vmatprep.subr.mxu0 0.0
  %4146 = vmatpush1.msra.mxu0 0.0
  %4147 = vmatprep.subr.mxu0 0.0
  %4148 = vmatpush1.msra.mxu0 0.0
  %4149 = vmatprep.subr.mxu0 0.0
  %4150 = vmatpush1.msra.mxu0 0.0
  %4151 = vmatprep.subr.mxu0 0.0
  %4152 = vmatpush1.msra.mxu0 0.0
  %4153 = vmatprep.subr.mxu0 0.0
  %4154 = vmatpush1.msra.mxu0 0.0
  %4155 = vmatprep.subr.mxu0 0.0
  %4156 = vmatpush1.msra.mxu0 0.0
  %4157 = vmatprep.subr.mxu0 0.0
  %4158 = vmatpush1.msra.mxu0 0.0
  %4159 = vmatprep.subr.mxu0 0.0
  %4160 = vmatpush1.msra.mxu0 0.0
  %4161 = vmatprep.subr.mxu0 0.0
  %4162 = vmatpush1.msra.mxu0 0.0
  %4163 = vmatprep.subr.mxu0 0.0
  %4164 = vmatpush1.msra.mxu0 0.0
  %4165 = vmatprep.subr.mxu0 0.0
  %4166 = vmatpush1.msra.mxu0 0.0
  %4167 = vmatprep.subr.mxu0 0.0
  %4168 = vmatpush1.msra.mxu0 0.0
  %4169 = vmatprep.subr.mxu0 0.0
  %4170 = vmatpush1.msra.mxu0 0.0
  %4171 = vmatprep.subr.mxu0 0.0
  %4172 = vmatpush1.msra.mxu0 0.0
  %4173 = vmatprep.subr.mxu0 0.0
  %4174 = vmatpush1.msra.mxu0 0.0
  %4175 = vmatprep.subr.mxu0 0.0
  %4176 = vmatpush1.msra.mxu0 0.0
  %4177 = vmatprep.subr.mxu0 0.0
  %4178 = vmatpush1.msra.mxu0 0.0
  %4179 = vmatprep.mubr.f32.mxu0 0.0
  %4180 = vmatmul.mubr.f32.gmra.mrb[0].mxu0 %v4113
  %v4181 = vpop.f32.mrb[0].mxu0
  %v4182 = vadd.f32 0.0, %v4181
  %v4183 = vpop.f32.mrb[0].mxu0
  %4184 = vdwg.mxu0
  %v4186 = vsel %vm1032, %v3960, 0
  %4188 = vmatprep.subr.mxu0 0.0
  %4189 = vmatpush1.msra.mxu0 %v2414
  %4190 = vmatprep.subr.mxu0 0.0
  %4191 = vmatpush1.msra.mxu0 0.0
  %4192 = vmatprep.subr.mxu0 0.0
  %4193 = vmatpush1.msra.mxu0 0.0
  %4194 = vmatprep.subr.mxu0 0.0
  %4195 = vmatpush1.msra.mxu0 0.0
  %4196 = vmatprep.subr.mxu0 0.0
  %4197 = vmatpush1.msra.mxu0 0.0
  %4198 = vmatprep.subr.mxu0 0.0
  %4199 = vmatpush1.msra.mxu0 0.0
  %4200 = vmatprep.subr.mxu0 0.0
  %4201 = vmatpush1.msra.mxu0 0.0
  %4202 = vmatprep.subr.mxu0 0.0
  %4203 = vmatpush1.msra.mxu0 0.0
  %4204 = vmatprep.subr.mxu0 0.0
  %4205 = vmatpush1.msra.mxu0 0.0
  %4206 = vmatprep.subr.mxu0 0.0
  %4207 = vmatpush1.msra.mxu0 0.0
  %4208 = vmatprep.subr.mxu0 0.0
  %4209 = vmatpush1.msra.mxu0 0.0
  %4210 = vmatprep.subr.mxu0 0.0
  %4211 = vmatpush1.msra.mxu0 0.0
  %4212 = vmatprep.subr.mxu0 0.0
  %4213 = vmatpush1.msra.mxu0 0.0
  %4214 = vmatprep.subr.mxu0 0.0
  %4215 = vmatpush1.msra.mxu0 0.0
  %4216 = vmatprep.subr.mxu0 0.0
  %4217 = vmatpush1.msra.mxu0 0.0
  %4218 = vmatprep.subr.mxu0 0.0
  %4219 = vmatpush1.msra.mxu0 0.0
  %4220 = vmatprep.subr.mxu0 0.0
  %4221 = vmatpush1.msra.mxu0 0.0
  %4222 = vmatprep.subr.mxu0 0.0
  %4223 = vmatpush1.msra.mxu0 0.0
  %4224 = vmatprep.subr.mxu0 0.0
  %4225 = vmatpush1.msra.mxu0 0.0
  %4226 = vmatprep.subr.mxu0 0.0
  %4227 = vmatpush1.msra.mxu0 0.0
  %4228 = vmatprep.subr.mxu0 0.0
  %4229 = vmatpush1.msra.mxu0 0.0
  %4230 = vmatprep.subr.mxu0 0.0
  %4231 = vmatpush1.msra.mxu0 0.0
  %4232 = vmatprep.subr.mxu0 0.0
  %4233 = vmatpush1.msra.mxu0 0.0
  %4234 = vmatprep.subr.mxu0 0.0
  %4235 = vmatpush1.msra.mxu0 0.0
  %4236 = vmatprep.subr.mxu0 0.0
  %4237 = vmatpush1.msra.mxu0 0.0
  %4238 = vmatprep.subr.mxu0 0.0
  %4239 = vmatpush1.msra.mxu0 0.0
  %4240 = vmatprep.subr.mxu0 0.0
  %4241 = vmatpush1.msra.mxu0 0.0
  %4242 = vmatprep.subr.mxu0 0.0
  %4243 = vmatpush1.msra.mxu0 0.0
  %4244 = vmatprep.subr.mxu0 0.0
  %4245 = vmatpush1.msra.mxu0 0.0
  %4246 = vmatprep.subr.mxu0 0.0
  %4247 = vmatpush1.msra.mxu0 0.0
  %4248 = vmatprep.subr.mxu0 0.0
  %4249 = vmatpush1.msra.mxu0 0.0
  %4250 = vmatprep.subr.mxu0 0.0
  %4251 = vmatpush1.msra.mxu0 0.0
  %4252 = vmatprep.mubr.f32.mxu0 0.0
  %4253 = vmatmul.mubr.f32.gmra.mrb[0].mxu0 %v4186
  %v4254 = vpop.f32.mrb[0].mxu0
  %v4255 = vadd.f32 0.0, %v4254
  %v4256 = vpop.f32.mrb[0].mxu0
  %4257 = vdwg.mxu0
  %v4259 = vsel %vm1032, %v4036, 0
  %4261 = vmatprep.subr.mxu0 0.0
  %4262 = vmatpush1.msra.mxu0 %v2415
  %4263 = vmatprep.subr.mxu0 0.0
  %4264 = vmatpush1.msra.mxu0 0.0
  %4265 = vmatprep.subr.mxu0 0.0
  %4266 = vmatpush1.msra.mxu0 0.0
  %4267 = vmatprep.subr.mxu0 0.0
  %4268 = vmatpush1.msra.mxu0 0.0
  %4269 = vmatprep.subr.mxu0 0.0
  %4270 = vmatpush1.msra.mxu0 0.0
  %4271 = vmatprep.subr.mxu0 0.0
  %4272 = vmatpush1.msra.mxu0 0.0
  %4273 = vmatprep.subr.mxu0 0.0
  %4274 = vmatpush1.msra.mxu0 0.0
  %4275 = vmatprep.subr.mxu0 0.0
  %4276 = vmatpush1.msra.mxu0 0.0
  %4277 = vmatprep.subr.mxu0 0.0
  %4278 = vmatpush1.msra.mxu0 0.0
  %4279 = vmatprep.subr.mxu0 0.0
  %4280 = vmatpush1.msra.mxu0 0.0
  %4281 = vmatprep.subr.mxu0 0.0
  %4282 = vmatpush1.msra.mxu0 0.0
  %4283 = vmatprep.subr.mxu0 0.0
  %4284 = vmatpush1.msra.mxu0 0.0
  %4285 = vmatprep.subr.mxu0 0.0
  %4286 = vmatpush1.msra.mxu0 0.0
  %4287 = vmatprep.subr.mxu0 0.0
  %4288 = vmatpush1.msra.mxu0 0.0
  %4289 = vmatprep.subr.mxu0 0.0
  %4290 = vmatpush1.msra.mxu0 0.0
  %4291 = vmatprep.subr.mxu0 0.0
  %4292 = vmatpush1.msra.mxu0 0.0
  %4293 = vmatprep.subr.mxu0 0.0
  %4294 = vmatpush1.msra.mxu0 0.0
  %4295 = vmatprep.subr.mxu0 0.0
  %4296 = vmatpush1.msra.mxu0 0.0
  %4297 = vmatprep.subr.mxu0 0.0
  %4298 = vmatpush1.msra.mxu0 0.0
  %4299 = vmatprep.subr.mxu0 0.0
  %4300 = vmatpush1.msra.mxu0 0.0
  %4301 = vmatprep.subr.mxu0 0.0
  %4302 = vmatpush1.msra.mxu0 0.0
  %4303 = vmatprep.subr.mxu0 0.0
  %4304 = vmatpush1.msra.mxu0 0.0
  %4305 = vmatprep.subr.mxu0 0.0
  %4306 = vmatpush1.msra.mxu0 0.0
  %4307 = vmatprep.subr.mxu0 0.0
  %4308 = vmatpush1.msra.mxu0 0.0
  %4309 = vmatprep.subr.mxu0 0.0
  %4310 = vmatpush1.msra.mxu0 0.0
  %4311 = vmatprep.subr.mxu0 0.0
  %4312 = vmatpush1.msra.mxu0 0.0
  %4313 = vmatprep.subr.mxu0 0.0
  %4314 = vmatpush1.msra.mxu0 0.0
  %4315 = vmatprep.subr.mxu0 0.0
  %4316 = vmatpush1.msra.mxu0 0.0
  %4317 = vmatprep.subr.mxu0 0.0
  %4318 = vmatpush1.msra.mxu0 0.0
  %4319 = vmatprep.subr.mxu0 0.0
  %4320 = vmatpush1.msra.mxu0 0.0
  %4321 = vmatprep.subr.mxu0 0.0
  %4322 = vmatpush1.msra.mxu0 0.0
  %4323 = vmatprep.subr.mxu0 0.0
  %4324 = vmatpush1.msra.mxu0 0.0
  %4325 = vmatprep.mubr.f32.mxu0 0.0
  %4326 = vmatmul.mubr.f32.gmra.mrb[0].mxu0 %v4259
  %v4327 = vpop.f32.mrb[0].mxu0
  %v4328 = vadd.f32 0.0, %v4327
  %v4329 = vpop.f32.mrb[0].mxu0
  %4330 = vdwg.mxu0
  %v4331 = vadd.f32 %v4109, %v4182
  %v4332 = vadd.f32 %v4255, %v4328
  %v4333 = vlaneseq
  %v4334 = vshrl.u32 %v4333, 7
  %v4335 = vsub.s32 0, %v4334
  %v4336 = vrot.slane %v2427, %v4335
  %v4337 = vadd.f32 %v4331, %v4336
  %v4338 = vadd.f32 %v4332, %v4336
  %v4339 = vadd.f32 %v4337, %v2383
  %v4340 = vadd.f32 %v4338, %v2384
  %v4341 = vsel %vm1994, %v4339, 0.0
  %4342 = vadd.xlane.f32.xlu0 %v4341
  %v4343 = vpop.xlane.xlu0 %4342
  %v4344 = vsel %vm1994, %v4340, 0.0
  %4345 = vadd.xlane.f32.xlu0 %v4344
  %v4346 = vpop.xlane.xlu0 %4345
  %v4347 = vmul.f32 %v4343, %v2001
  %v4348 = vmul.f32 %v4346, %v2001
  %v4349 = vsub.f32 %v4339, %v4347
  %v4350 = vsub.f32 %v4340, %v4348
  %v4351 = vmul.f32 %v4349, %v4349
  %v4352 = vmul.f32 %v4350, %v4350
  %v4353 = vsel %vm1994, %v4351, 0.0
  %4354 = vadd.xlane.f32.xlu0 %v4353
  %v4355 = vpop.xlane.xlu0 %4354
  %v4356 = vsel %vm1994, %v4352, 0.0
  %4357 = vadd.xlane.f32.xlu0 %v4356
  %v4358 = vpop.xlane.xlu0 %4357
  %v4359 = vmul.f32 %v4355, %v2001
  %v4360 = vmul.f32 %v4358, %v2001
  %v4361 = vadd.f32 %v4359, 1e-05
  %v4362 = vadd.f32 %v4360, 1e-05
  %v4363 = vrsqrt.pop %v4361
  %v4364 = vrsqrt.pop %v4362
  %v4365 = vmul.f32 %v4349, %v4363
  %v4366 = vmul.f32 %v4350, %v4364
  %v4367 = vlaneseq
  %v4368 = vshrl.u32 %v4367, 7
  %v4369 = vsub.s32 1, %v4368
  %v4370 = vrot.slane %v2427, %v4369
  %v4371 = vmul.f32 %v4365, %v4370
  %v4372 = vmul.f32 %v4366, %v4370
  %v4373 = vlaneseq
  %v4374 = vshrl.u32 %v4373, 7
  %v4375 = vsub.s32 2, %v4374
  %v4376 = vrot.slane %v2427, %v4375
  %v4377 = vadd.f32 %v4371, %v4376
  %v4378 = vadd.f32 %v4372, %v4376
  %v4380 = vlaneseq
  %v4381 = vshrl.u32 %v4380, 7
  %v4382 = vsub.s32 0, %v4381
  %v4383 = vrot.slane %v2425, %v4382
  %v4386 = vsel %vm148, %v4377, 0
  %v4389 = vsel %vm152, %v2417, 0
  %4391 = vmatprep.subr.mxu0 0.0
  %4392 = vmatpush1.msra.mxu0 %v4389
  %4393 = vmatprep.subr.mxu0 0.0
  %4394 = vmatpush1.msra.mxu0 0.0
  %4395 = vmatprep.subr.mxu0 0.0
  %4396 = vmatpush1.msra.mxu0 0.0
  %4397 = vmatprep.subr.mxu0 0.0
  %4398 = vmatpush1.msra.mxu0 0.0
  %4399 = vmatprep.subr.mxu0 0.0
  %4400 = vmatpush1.msra.mxu0 0.0
  %4401 = vmatprep.subr.mxu0 0.0
  %4402 = vmatpush1.msra.mxu0 0.0
  %4403 = vmatprep.subr.mxu0 0.0
  %4404 = vmatpush1.msra.mxu0 0.0
  %4405 = vmatprep.subr.mxu0 0.0
  %4406 = vmatpush1.msra.mxu0 0.0
  %4407 = vmatprep.subr.mxu0 0.0
  %4408 = vmatpush1.msra.mxu0 0.0
  %4409 = vmatprep.subr.mxu0 0.0
  %4410 = vmatpush1.msra.mxu0 0.0
  %4411 = vmatprep.subr.mxu0 0.0
  %4412 = vmatpush1.msra.mxu0 0.0
  %4413 = vmatprep.subr.mxu0 0.0
  %4414 = vmatpush1.msra.mxu0 0.0
  %4415 = vmatprep.subr.mxu0 0.0
  %4416 = vmatpush1.msra.mxu0 0.0
  %4417 = vmatprep.subr.mxu0 0.0
  %4418 = vmatpush1.msra.mxu0 0.0
  %4419 = vmatprep.subr.mxu0 0.0
  %4420 = vmatpush1.msra.mxu0 0.0
  %4421 = vmatprep.subr.mxu0 0.0
  %4422 = vmatpush1.msra.mxu0 0.0
  %4423 = vmatprep.subr.mxu0 0.0
  %4424 = vmatpush1.msra.mxu0 0.0
  %4425 = vmatprep.subr.mxu0 0.0
  %4426 = vmatpush1.msra.mxu0 0.0
  %4427 = vmatprep.subr.mxu0 0.0
  %4428 = vmatpush1.msra.mxu0 0.0
  %4429 = vmatprep.subr.mxu0 0.0
  %4430 = vmatpush1.msra.mxu0 0.0
  %4431 = vmatprep.subr.mxu0 0.0
  %4432 = vmatpush1.msra.mxu0 0.0
  %4433 = vmatprep.subr.mxu0 0.0
  %4434 = vmatpush1.msra.mxu0 0.0
  %4435 = vmatprep.subr.mxu0 0.0
  %4436 = vmatpush1.msra.mxu0 0.0
  %4437 = vmatprep.subr.mxu0 0.0
  %4438 = vmatpush1.msra.mxu0 0.0
  %4439 = vmatprep.subr.mxu0 0.0
  %4440 = vmatpush1.msra.mxu0 0.0
  %4441 = vmatprep.subr.mxu0 0.0
  %4442 = vmatpush1.msra.mxu0 0.0
  %4443 = vmatprep.subr.mxu0 0.0
  %4444 = vmatpush1.msra.mxu0 0.0
  %4445 = vmatprep.subr.mxu0 0.0
  %4446 = vmatpush1.msra.mxu0 0.0
  %4447 = vmatprep.subr.mxu0 0.0
  %4448 = vmatpush1.msra.mxu0 0.0
  %4449 = vmatprep.subr.mxu0 0.0
  %4450 = vmatpush1.msra.mxu0 0.0
  %4451 = vmatprep.subr.mxu0 0.0
  %4452 = vmatpush1.msra.mxu0 0.0
  %4453 = vmatprep.subr.mxu0 0.0
  %4454 = vmatpush1.msra.mxu0 0.0
  %4455 = vmatprep.mubr.f32.mxu0 0.0
  %4456 = vmatmul.mubr.f32.gmra.mrb[0].mxu0 %v4386
  %v4457 = vpop.f32.mrb[0].mxu0
  %v4458 = vadd.f32 %v4383, %v4457
  %v4459 = vpop.f32.mrb[0].mxu0
  %4460 = vdwg.mxu0
  %v4462 = vsel %vm148, %v4378, 0
  %v4465 = vsel %vm152, %v2418, 0
  %4467 = vmatprep.subr.mxu0 0.0
  %4468 = vmatpush1.msra.mxu0 %v4465
  %4469 = vmatprep.subr.mxu0 0.0
  %4470 = vmatpush1.msra.mxu0 0.0
  %4471 = vmatprep.subr.mxu0 0.0
  %4472 = vmatpush1.msra.mxu0 0.0
  %4473 = vmatprep.subr.mxu0 0.0
  %4474 = vmatpush1.msra.mxu0 0.0
  %4475 = vmatprep.subr.mxu0 0.0
  %4476 = vmatpush1.msra.mxu0 0.0
  %4477 = vmatprep.subr.mxu0 0.0
  %4478 = vmatpush1.msra.mxu0 0.0
  %4479 = vmatprep.subr.mxu0 0.0
  %4480 = vmatpush1.msra.mxu0 0.0
  %4481 = vmatprep.subr.mxu0 0.0
  %4482 = vmatpush1.msra.mxu0 0.0
  %4483 = vmatprep.subr.mxu0 0.0
  %4484 = vmatpush1.msra.mxu0 0.0
  %4485 = vmatprep.subr.mxu0 0.0
  %4486 = vmatpush1.msra.mxu0 0.0
  %4487 = vmatprep.subr.mxu0 0.0
  %4488 = vmatpush1.msra.mxu0 0.0
  %4489 = vmatprep.subr.mxu0 0.0
  %4490 = vmatpush1.msra.mxu0 0.0
  %4491 = vmatprep.subr.mxu0 0.0
  %4492 = vmatpush1.msra.mxu0 0.0
  %4493 = vmatprep.subr.mxu0 0.0
  %4494 = vmatpush1.msra.mxu0 0.0
  %4495 = vmatprep.subr.mxu0 0.0
  %4496 = vmatpush1.msra.mxu0 0.0
  %4497 = vmatprep.subr.mxu0 0.0
  %4498 = vmatpush1.msra.mxu0 0.0
  %4499 = vmatprep.subr.mxu0 0.0
  %4500 = vmatpush1.msra.mxu0 0.0
  %4501 = vmatprep.subr.mxu0 0.0
  %4502 = vmatpush1.msra.mxu0 0.0
  %4503 = vmatprep.subr.mxu0 0.0
  %4504 = vmatpush1.msra.mxu0 0.0
  %4505 = vmatprep.subr.mxu0 0.0
  %4506 = vmatpush1.msra.mxu0 0.0
  %4507 = vmatprep.subr.mxu0 0.0
  %4508 = vmatpush1.msra.mxu0 0.0
  %4509 = vmatprep.subr.mxu0 0.0
  %4510 = vmatpush1.msra.mxu0 0.0
  %4511 = vmatprep.subr.mxu0 0.0
  %4512 = vmatpush1.msra.mxu0 0.0
  %4513 = vmatprep.subr.mxu0 0.0
  %4514 = vmatpush1.msra.mxu0 0.0
  %4515 = vmatprep.subr.mxu0 0.0
  %4516 = vmatpush1.msra.mxu0 0.0
  %4517 = vmatprep.subr.mxu0 0.0
  %4518 = vmatpush1.msra.mxu0 0.0
  %4519 = vmatprep.subr.mxu0 0.0
  %4520 = vmatpush1.msra.mxu0 0.0
  %4521 = vmatprep.subr.mxu0 0.0
  %4522 = vmatpush1.msra.mxu0 0.0
  %4523 = vmatprep.subr.mxu0 0.0
  %4524 = vmatpush1.msra.mxu0 0.0
  %4525 = vmatprep.subr.mxu0 0.0
  %4526 = vmatpush1.msra.mxu0 0.0
  %4527 = vmatprep.subr.mxu0 0.0
  %4528 = vmatpush1.msra.mxu0 0.0
  %4529 = vmatprep.subr.mxu0 0.0
  %4530 = vmatpush1.msra.mxu0 0.0
  %4531 = vmatprep.mubr.f32.mxu0 0.0
  %4532 = vmatmul.mubr.f32.gmra.mrb[0].mxu0 %v4462
  %v4533 = vpop.f32.mrb[0].mxu0
  %v4534 = vadd.f32 %v4383, %v4533
  %v4535 = vpop.f32.mrb[0].mxu0
  %4536 = vdwg.mxu0
  %v4537 = vmax.f32 %v4458, 0.0
  %v4538 = vmax.f32 %v4534, 0.0
  %v4539 = vlaneseq
  %v4540 = vshrl.u32 %v4539, 7
  %v4541 = vsub.s32 3, %v4540
  %v4542 = vrot.slane %v2427, %v4541
  %v4544 = vsel %vm2198, %v4537, 0
  %4546 = vmatprep.subr.mxu0 0.0
  %4547 = vmatpush1.msra.mxu0 %v2420
  %4548 = vmatprep.subr.mxu0 0.0
  %4549 = vmatpush1.msra.mxu0 %v2421
  %4550 = vmatprep.subr.mxu0 0.0
  %4551 = vmatpush1.msra.mxu0 0.0
  %4552 = vmatprep.subr.mxu0 0.0
  %4553 = vmatpush1.msra.mxu0 0.0
  %4554 = vmatprep.subr.mxu0 0.0
  %4555 = vmatpush1.msra.mxu0 0.0
  %4556 = vmatprep.subr.mxu0 0.0
  %4557 = vmatpush1.msra.mxu0 0.0
  %4558 = vmatprep.subr.mxu0 0.0
  %4559 = vmatpush1.msra.mxu0 0.0
  %4560 = vmatprep.subr.mxu0 0.0
  %4561 = vmatpush1.msra.mxu0 0.0
  %4562 = vmatprep.subr.mxu0 0.0
  %4563 = vmatpush1.msra.mxu0 0.0
  %4564 = vmatprep.subr.mxu0 0.0
  %4565 = vmatpush1.msra.mxu0 0.0
  %4566 = vmatprep.subr.mxu0 0.0
  %4567 = vmatpush1.msra.mxu0 0.0
  %4568 = vmatprep.subr.mxu0 0.0
  %4569 = vmatpush1.msra.mxu0 0.0
  %4570 = vmatprep.subr.mxu0 0.0
  %4571 = vmatpush1.msra.mxu0 0.0
  %4572 = vmatprep.subr.mxu0 0.0
  %4573 = vmatpush1.msra.mxu0 0.0
  %4574 = vmatprep.subr.mxu0 0.0
  %4575 = vmatpush1.msra.mxu0 0.0
  %4576 = vmatprep.subr.mxu0 0.0
  %4577 = vmatpush1.msra.mxu0 0.0
  %4578 = vmatprep.subr.mxu0 0.0
  %4579 = vmatpush1.msra.mxu0 0.0
  %4580 = vmatprep.subr.mxu0 0.0
  %4581 = vmatpush1.msra.mxu0 0.0
  %4582 = vmatprep.subr.mxu0 0.0
  %4583 = vmatpush1.msra.mxu0 0.0
  %4584 = vmatprep.subr.mxu0 0.0
  %4585 = vmatpush1.msra.mxu0 0.0
  %4586 = vmatprep.subr.mxu0 0.0
  %4587 = vmatpush1.msra.mxu0 0.0
  %4588 = vmatprep.subr.mxu0 0.0
  %4589 = vmatpush1.msra.mxu0 0.0
  %4590 = vmatprep.subr.mxu0 0.0
  %4591 = vmatpush1.msra.mxu0 0.0
  %4592 = vmatprep.subr.mxu0 0.0
  %4593 = vmatpush1.msra.mxu0 0.0
  %4594 = vmatprep.subr.mxu0 0.0
  %4595 = vmatpush1.msra.mxu0 0.0
  %4596 = vmatprep.subr.mxu0 0.0
  %4597 = vmatpush1.msra.mxu0 0.0
  %4598 = vmatprep.subr.mxu0 0.0
  %4599 = vmatpush1.msra.mxu0 0.0
  %4600 = vmatprep.subr.mxu0 0.0
  %4601 = vmatpush1.msra.mxu0 0.0
  %4602 = vmatprep.subr.mxu0 0.0
  %4603 = vmatpush1.msra.mxu0 0.0
  %4604 = vmatprep.subr.mxu0 0.0
  %4605 = vmatpush1.msra.mxu0 0.0
  %4606 = vmatprep.subr.mxu0 0.0
  %4607 = vmatpush1.msra.mxu0 0.0
  %4608 = vmatprep.subr.mxu0 0.0
  %4609 = vmatpush1.msra.mxu0 0.0
  %4610 = vmatprep.mubr.f32.mxu0 0.0
  %4611 = vmatmul.mubr.f32.gmra.mrb[0].mxu0 %v4544
  %v4612 = vpop.f32.mrb[0].mxu0
  %v4613 = vadd.f32 %v4542, %v4612
  %v4614 = vpop.f32.mrb[0].mxu0
  %4615 = vdwg.mxu0
  %v4617 = vsel %vm2198, %v4538, 0
  %4619 = vmatprep.subr.mxu0 0.0
  %4620 = vmatpush1.msra.mxu0 %v2422
  %4621 = vmatprep.subr.mxu0 0.0
  %4622 = vmatpush1.msra.mxu0 %v2423
  %4623 = vmatprep.subr.mxu0 0.0
  %4624 = vmatpush1.msra.mxu0 0.0
  %4625 = vmatprep.subr.mxu0 0.0
  %4626 = vmatpush1.msra.mxu0 0.0
  %4627 = vmatprep.subr.mxu0 0.0
  %4628 = vmatpush1.msra.mxu0 0.0
  %4629 = vmatprep.subr.mxu0 0.0
  %4630 = vmatpush1.msra.mxu0 0.0
  %4631 = vmatprep.subr.mxu0 0.0
  %4632 = vmatpush1.msra.mxu0 0.0
  %4633 = vmatprep.subr.mxu0 0.0
  %4634 = vmatpush1.msra.mxu0 0.0
  %4635 = vmatprep.subr.mxu0 0.0
  %4636 = vmatpush1.msra.mxu0 0.0
  %4637 = vmatprep.subr.mxu0 0.0
  %4638 = vmatpush1.msra.mxu0 0.0
  %4639 = vmatprep.subr.mxu0 0.0
  %4640 = vmatpush1.msra.mxu0 0.0
  %4641 = vmatprep.subr.mxu0 0.0
  %4642 = vmatpush1.msra.mxu0 0.0
  %4643 = vmatprep.subr.mxu0 0.0
  %4644 = vmatpush1.msra.mxu0 0.0
  %4645 = vmatprep.subr.mxu0 0.0
  %4646 = vmatpush1.msra.mxu0 0.0
  %4647 = vmatprep.subr.mxu0 0.0
  %4648 = vmatpush1.msra.mxu0 0.0
  %4649 = vmatprep.subr.mxu0 0.0
  %4650 = vmatpush1.msra.mxu0 0.0
  %4651 = vmatprep.subr.mxu0 0.0
  %4652 = vmatpush1.msra.mxu0 0.0
  %4653 = vmatprep.subr.mxu0 0.0
  %4654 = vmatpush1.msra.mxu0 0.0
  %4655 = vmatprep.subr.mxu0 0.0
  %4656 = vmatpush1.msra.mxu0 0.0
  %4657 = vmatprep.subr.mxu0 0.0
  %4658 = vmatpush1.msra.mxu0 0.0
  %4659 = vmatprep.subr.mxu0 0.0
  %4660 = vmatpush1.msra.mxu0 0.0
  %4661 = vmatprep.subr.mxu0 0.0
  %4662 = vmatpush1.msra.mxu0 0.0
  %4663 = vmatprep.subr.mxu0 0.0
  %4664 = vmatpush1.msra.mxu0 0.0
  %4665 = vmatprep.subr.mxu0 0.0
  %4666 = vmatpush1.msra.mxu0 0.0
  %4667 = vmatprep.subr.mxu0 0.0
  %4668 = vmatpush1.msra.mxu0 0.0
  %4669 = vmatprep.subr.mxu0 0.0
  %4670 = vmatpush1.msra.mxu0 0.0
  %4671 = vmatprep.subr.mxu0 0.0
  %4672 = vmatpush1.msra.mxu0 0.0
  %4673 = vmatprep.subr.mxu0 0.0
  %4674 = vmatpush1.msra.mxu0 0.0
  %4675 = vmatprep.subr.mxu0 0.0
  %4676 = vmatpush1.msra.mxu0 0.0
  %4677 = vmatprep.subr.mxu0 0.0
  %4678 = vmatpush1.msra.mxu0 0.0
  %4679 = vmatprep.subr.mxu0 0.0
  %4680 = vmatpush1.msra.mxu0 0.0
  %4681 = vmatprep.subr.mxu0 0.0
  %4682 = vmatpush1.msra.mxu0 0.0
  %4683 = vmatprep.mubr.f32.mxu0 0.0
  %4684 = vmatmul.mubr.f32.gmra.mrb[0].mxu0 %v4617
  %v4685 = vpop.f32.mrb[0].mxu0
  %v4686 = vadd.f32 %v4542, %v4685
  %v4687 = vpop.f32.mrb[0].mxu0
  %4688 = vdwg.mxu0
  %v4689 = vadd.f32 %v4613, %v4377
  %v4690 = vadd.f32 %v4686, %v4378
  %v4691 = vsel %vm1994, %v4689, 0.0
  %4692 = vadd.xlane.f32.xlu0 %v4691
  %v4693 = vpop.xlane.xlu0 %4692
  %v4694 = vsel %vm1994, %v4690, 0.0
  %4695 = vadd.xlane.f32.xlu0 %v4694
  %v4696 = vpop.xlane.xlu0 %4695
  %v4697 = vmul.f32 %v4693, %v2001
  %v4698 = vmul.f32 %v4696, %v2001
  %v4699 = vsub.f32 %v4689, %v4697
  %v4700 = vsub.f32 %v4690, %v4698
  %v4701 = vmul.f32 %v4699, %v4699
  %v4702 = vmul.f32 %v4700, %v4700
  %v4703 = vsel %vm1994, %v4701, 0.0
  %4704 = vadd.xlane.f32.xlu0 %v4703
  %v4705 = vpop.xlane.xlu0 %4704
  %v4706 = vsel %vm1994, %v4702, 0.0
  %4707 = vadd.xlane.f32.xlu0 %v4706
  %v4708 = vpop.xlane.xlu0 %4707
  %v4709 = vmul.f32 %v4705, %v2001
  %v4710 = vmul.f32 %v4708, %v2001
  %v4711 = vadd.f32 %v4709, 1e-05
  %v4712 = vadd.f32 %v4710, 1e-05
  %v4713 = vrsqrt.pop %v4711
  %v4714 = vrsqrt.pop %v4712
  %v4715 = vmul.f32 %v4699, %v4713
  %v4716 = vmul.f32 %v4700, %v4714
  %v4717 = vlaneseq
  %v4718 = vshrl.u32 %v4717, 7
  %v4719 = vsub.s32 4, %v4718
  %v4720 = vrot.slane %v2427, %v4719
  %v4721 = vmul.f32 %v4715, %v4720
  %v4722 = vmul.f32 %v4716, %v4720
  %v4723 = vlaneseq
  %v4724 = vshrl.u32 %v4723, 7
  %v4725 = vsub.s32 5, %v4724
  %v4726 = vrot.slane %v2427, %v4725
  %v4727 = vadd.f32 %v4721, %v4726
  %v4728 = vadd.f32 %v4722, %v4726
  %4729 = vst.msk [vmem:[%s9] sm:$0x1f] %vm1994, %v4727
  %4730 = vst.msk [vmem:[%s9 + $0x8] sm:$0x1f] %vm1994, %v4728
  // Predicated region
  $region38: #{encoder_forward.1} parent=0 // pred_check
    _
  $region39: #{encoder_forward.1} parent=0 // pred_check_branch
    %4732 = sbr.rel (0) target = $region41
  $region40: #{encoder_forward.1} parent=0 // pred_region
    _
  $region41: #{encoder_forward.1} parent=0 // pred_fallthru
    _
  // Predicated region
  $region42: #{encoder_forward.1} parent=0 // pred_check
    _
  $region43: #{encoder_forward.1} parent=0 // pred_check_branch
    %4734 = sbr.rel (0) target = $region45
  $region44: #{encoder_forward.1} parent=0 // pred_region
    _
  $region45: #{encoder_forward.1} parent=0 // pred_fallthru
    _
  // Predicated region
  $region46: #{encoder_forward.1} parent=0 // pred_check
    _
  $region47: #{encoder_forward.1} parent=0 // pred_check_branch
    %4736 = sbr.rel (0) target = $region49
  $region48: #{encoder_forward.1} parent=0 // pred_region
    _
  $region49: #{encoder_forward.1} parent=0 // pred_fallthru
    _
  // Predicated region
  $region50: #{encoder_forward.1} parent=0 // pred_check
    _
  $region51: #{encoder_forward.1} parent=0 // pred_check_branch
    %4738 = sbr.rel (0) target = $region53
  $region52: #{encoder_forward.1} parent=0 // pred_region
    _
  $region53: #{encoder_forward.1} parent=0 // pred_fallthru
    _

</llo_original>
